<compile_context>
chip_gen: v7x
topology: tpu7x:2x2x1
jax: 0.10.0
libtpu: 0.0.40
codegen_flags: <defaults>
</compile_context>

<pallas_src>
import functools

import jax
import jax.numpy as jnp
from jax.experimental import pallas as pl
from jax.experimental.pallas import tpu as pltpu

MIDDLE_DIM = 1024   # hard-coded in the PyTorch module (__init__)
T_FIXED = 5         # forward's reshape(b, 5, -1) forces t == 5
HW = 6              # forward's reshape(bt, f, 3, 2) forces hw == 6

VMEM_LIMIT_BYTES = 60 * 1024 * 1024   # headroom under v7x's 64 MiB physical VMEM


def temporal_attention_kernel(x_ref, w2_ref, b2_ref, w1_ref, b1_ref, out_ref):
    # x_ref : (t, tb, hw*f)  f32    t-major rows of the (bt, hw, f) input, hw-major flatten
    # w2_ref: (hw*f, 1024)   bf16   Conv2d([3,2]) == dense projection (hw-major flatten)
    # b2_ref: (1, 1024)      f32
    # w1_ref: (1024, 3)      bf16   Conv1d taps k = 0, 1, 2
    # b1_ref: (1, 1)         f32    SMEM scalar
    # out_ref:(tb, f)        f32
    #
    # NOTE: for a partial last b tile, the rows past b are padded/undefined; all
    # math below is strictly row-wise, so garbage stays in those rows and the
    # writeback is clipped by Pallas.  Do not introduce cross-row reductions.
    t, tb, kd = x_ref.shape
    f = out_ref.shape[1]
    b1 = b1_ref[0, 0]

    # ---- fused Conv2d (dense 3x2 projection) + bias + ReLU for ALL t at once ----
    # (t, tb, kd) -> (t*tb, kd) is a free reshape: tb % 8 == 0, so every t-slab
    # is a whole number of (8,128) tiles.  Cast to bf16 only for the MXU operand.
    x2d = x_ref[...].reshape(t * tb, kd).astype(jnp.bfloat16)
    a = jnp.dot(x2d, w2_ref[...], preferred_element_type=jnp.float32)     # (t*tb, 1024)
    a = jnp.maximum(a + b2_ref[...], 0.0)

    # ---- fused Conv1d tap scores: taps[:, k] = ReLU(conv2d) @ w1[:, k] ----
    taps = jnp.dot(a.astype(jnp.bfloat16), w1_ref[...],
                   preferred_element_type=jnp.float32)                    # (t*tb, 3)

    # Conv1d(1024->1, k=3, padding=1) over t + bias + ReLU -> per-time logits (tb, 1)
    # tap k=0 reads time ti-1, k=1 reads ti, k=2 reads ti+1 (zero-padded ends).
    logits = []
    for ti in range(t):
        l = taps[ti * tb:(ti + 1) * tb, 1:2] + b1
        if ti > 0:
            l = l + taps[(ti - 1) * tb:ti * tb, 0:1]
        if ti < t - 1:
            l = l + taps[(ti + 1) * tb:(ti + 2) * tb, 2:3]
        logits.append(jnp.maximum(l, 0.0))

    # softmax over t with a per-batch-row max
    m = logits[0]
    for ti in range(1, t):
        m = jnp.maximum(m, logits[ti])
    e = [jnp.exp(logits[ti] - m) for ti in range(t)]
    denom = e[0]
    for ti in range(1, t):
        denom = denom + e[ti]
    inv_denom = pl.reciprocal(denom, approx=True)                         # (tb, 1), EUP

    # ---- weighted sum of avg-pooled features, re-sliced from the resident x block ----
    # avg_pool2d over the full 3x2 extent == mean of the 6 contiguous f32 lane slices.
    out = None
    for ti in range(t):
        w = (e[ti] * inv_denom) * (1.0 / HW)                              # fold pool scale
        pooled = x_ref[ti, :, 0:f]
        for p in range(1, HW):
            pooled = pooled + x_ref[ti, :, p * f:(p + 1) * f]
        term = w * pooled
        out = term if out is None else out + term
    out_ref[...] = out


def _pick_b_tile(b_pad):
    """Pick the per-grid-step b tile. `b_pad` is a multiple of 8.

    - cap at 512: f32 x block + fused f32 activations stay ~40 MiB, which fits
      v7x's 64 MiB VMEM with headroom (and v5e/v6e comfortably with the explicit
      vmem_limit_bytes below)
    - once b_pad >= 128, force >= 2 grid steps so the "parallel" axis keeps both
      v7x TensorCores busy (no effect on single-TC v5e/v6e beyond ~0.35 us/step)
    """
    if b_pad < 128:
        return b_pad
    half = (((b_pad + 1) // 2) + 7) // 8 * 8   # >= 2 steps, multiple of 8
    return min(512, half)


@functools.partial(jax.jit, static_argnames=("b", "t"))
def temporal_attention(x, params, b, t):
    bt, hw, f = x.shape
    assert hw == HW, "module requires hw == 6 (reshaped to 3x2)"
    assert t == T_FIXED, "module requires t == 5 (reshape(b, 5, -1))"
    assert bt == b * t

    w2 = params['conv2d_w']   # (1024, f, 3, 2)
    b2 = params['conv2d_b']   # (1024,)
    w1 = params['conv1d_w']   # (1, 1024, 3)
    b1 = params['conv1d_b']   # (1,)

    k_dim = hw * f
    # hw-major flatten of the Conv2d weight so that x.reshape(bt, hw*f) needs NO transpose:
    #   w2mat[(h*2 + w)*f + c, o] = w2[o, c, h, w]
    w2mat = jnp.transpose(w2, (2, 3, 1, 0)).reshape(k_dim, MIDDLE_DIM).astype(jnp.bfloat16)
    b2row = b2.reshape(1, MIDDLE_DIM).astype(jnp.float32)
    w1mat = w1.reshape(MIDDLE_DIM, 3).astype(jnp.bfloat16)
    b1sc = b1.reshape(1, 1).astype(jnp.float32)

    # x stays f32: free metadata reshape only (rows are t-major, hw-major flatten).
    # The kernel casts to bf16 just for the MXU operand; pooling reads f32.
    xin = x.reshape(t, b, k_dim)

    # Pad b up to a multiple of 8 (sublane rule) so tiles stay aligned; slice output back.
    b_pad = ((b + 7) // 8) * 8
    if b_pad != b:
        xin = jnp.pad(xin, ((0, 0), (0, b_pad - b), (0, 0)))

    tb = _pick_b_tile(b_pad)
    grid = (pl.cdiv(b_pad, tb),)

    out = pl.pallas_call(
        temporal_attention_kernel,
        out_shape=jax.ShapeDtypeStruct((b_pad, f), jnp.float32),
        grid_spec=pltpu.PrefetchScalarGridSpec(
            num_scalar_prefetch=0,
            grid=grid,
            in_specs=[
                pl.BlockSpec((t, tb, k_dim), lambda i: (0, i, 0)),    # per-b tile of x (f32)
                pl.BlockSpec((k_dim, MIDDLE_DIM), lambda i: (0, 0)),  # W2 stays resident
                pl.BlockSpec((1, MIDDLE_DIM), lambda i: (0, 0)),
                pl.BlockSpec((MIDDLE_DIM, 3), lambda i: (0, 0)),
                pl.BlockSpec(memory_space=pltpu.MemorySpace.SMEM),    # scalar Conv1d bias
            ],
            out_specs=pl.BlockSpec((tb, f), lambda i: (i, 0)),
        ),
        compiler_params=pltpu.CompilerParams(
            dimension_semantics=("parallel",),
            vmem_limit_bytes=VMEM_LIMIT_BYTES),
    )(xin, w2mat, b2row, w1mat, b1sc)

    return out[:b] if b_pad != b else out


def reference(x, params, b, t):
    """Pure-JAX mirror of the PyTorch forward (for self-check)."""
    bt, hw, f = x.shape
    w2, b2, w1, b1 = (params['conv2d_w'], params['conv2d_b'],
                      params['conv1d_w'], params['conv1d_b'])
    xc = jnp.transpose(x, (0, 2, 1)).reshape(bt, f, 3, 2)
    a = jnp.einsum('nchw,ochw->no', xc, w2, precision='highest') + b2
    a = jnp.maximum(a, 0.0)                                                  # (bt, 1024)
    a = a.reshape(t, b, MIDDLE_DIM).transpose(1, 2, 0)                       # (b, 1024, t)
    ap = jnp.pad(a, ((0, 0), (0, 0), (1, 1)))
    conv1d = sum(jnp.einsum('bct,c->bt', ap[:, :, k:k + t], w1[0, :, k], precision='highest')
                 for k in range(3)) + b1[0]
    att = jax.nn.softmax(jnp.maximum(conv1d, 0.0), axis=1)                   # (b, t)
    xp = jnp.mean(xc, axis=(2, 3))                                           # (bt, f)
    xr = xp.reshape(t, b, f).transpose(1, 0, 2)                              # (b, t, f)
    return jnp.sum(xr * att[:, :, None], axis=1)                             # (b, f)


if __name__ == "__main__":
    b, t, feat_dim = 2, 5, 128
    bt = b * t

    key = jax.random.PRNGKey(0)
    k1, k2, k3, k4, k5 = jax.random.split(key, 5)
    params = {
        'conv2d_w': 0.05 * jax.random.normal(k1, (MIDDLE_DIM, feat_dim, 3, 2), jnp.float32),
        'conv2d_b': 0.05 * jax.random.normal(k2, (MIDDLE_DIM,), jnp.float32),
        'conv1d_w': 0.05 * jax.random.normal(k3, (1, MIDDLE_DIM, 3), jnp.float32),
        'conv1d_b': 0.05 * jax.random.normal(k4, (1,), jnp.float32),
    }
    x = jax.random.normal(k5, (bt, HW, feat_dim), jnp.float32)

    out = temporal_attention(x, params, b, t)
    out = jax.block_until_ready(out)
    assert out.shape == (b, feat_dim)

    ref = reference(x, params, b, t)
    assert bool(jnp.allclose(out, ref, rtol=2e-2, atol=2e-2)), "kernel output mismatch vs reference"

    print("KERNEL_OK")
</pallas_src>

<mosaic_0001>
module attributes {stable_mosaic.version = 11 : i64} {
  func.func @temporal_attention_kernel(%arg0: i32, %arg1: memref<5x8x768xf32, #tpu.memory_space<vmem>>, %arg2: memref<768x1024xbf16, #tpu.memory_space<vmem>>, %arg3: memref<1x1024xf32, #tpu.memory_space<vmem>>, %arg4: memref<1024x3xbf16, #tpu.memory_space<vmem>>, %arg5: memref<1x1xf32, #tpu.memory_space<smem>>, %arg6: memref<8x128xf32, #tpu.memory_space<vmem>>) attributes {dimension_semantics = [#tpu.dimension_semantics<parallel>], iteration_bounds = array<i64: 1>, scalar_prefetch = 0 : i64, scratch_operands = 0 : i64, tpu.core_type = #tpu.core_type<tc>, window_params = [{transform_indices = @transform_0, window_bounds = array<i64: 5, 8, 768>}, {pipeline_mode = #tpu.pipeline_mode<synchronous>, transform_indices = @transform_1, window_bounds = array<i64: 768, 1024>}, {pipeline_mode = #tpu.pipeline_mode<synchronous>, transform_indices = @transform_2, window_bounds = array<i64: 1, 1024>}, {pipeline_mode = #tpu.pipeline_mode<synchronous>, transform_indices = @transform_3, window_bounds = array<i64: 1024, 3>}, {transform_indices = @transform_4, window_bounds = array<i64: 1, 1>}, {transform_indices = @transform_5, window_bounds = array<i64: 8, 128>}]} {
    %c0 = arith.constant 0 : index
    %c0_0 = arith.constant 0 : index
    %0 = memref.load %arg5[%c0, %c0_0] : memref<1x1xf32, #tpu.memory_space<smem>>
    %c0_1 = arith.constant 0 : index
    %c0_2 = arith.constant 0 : index
    %c0_3 = arith.constant 0 : index
    %1 = vector.load %arg1[%c0_1, %c0_2, %c0_3] : memref<5x8x768xf32, #tpu.memory_space<vmem>>, vector<5x8x768xf32>
    %2 = vector.shape_cast %1 : vector<5x8x768xf32> to vector<40x768xf32>
    %3 = arith.truncf %2 : vector<40x768xf32> to vector<40x768xbf16>
    %c0_4 = arith.constant 0 : index
    %c0_5 = arith.constant 0 : index
    %4 = vector.load %arg2[%c0_4, %c0_5] : memref<768x1024xbf16, #tpu.memory_space<vmem>>, vector<768x1024xbf16>
    %cst = arith.constant dense<0.000000e+00> : vector<40x1024xf32>
    %5 = tpu.matmul %3, %4, %cst {dimension_numbers = #tpu.dot_dimension_numbers<[1], [0], [0], [1], [0, 0, 1, 1], [], []>} : vector<40x768xbf16>, vector<768x1024xbf16>, vector<40x1024xf32> -> vector<40x1024xf32>
    %c0_6 = arith.constant 0 : index
    %c0_7 = arith.constant 0 : index
    %6 = vector.load %arg3[%c0_6, %c0_7] : memref<1x1024xf32, #tpu.memory_space<vmem>>, vector<1x1024xf32>
    %7 = vector.broadcast %6 : vector<1x1024xf32> to vector<40x1024xf32>
    %8 = arith.addf %5, %7 : vector<40x1024xf32>
    %cst_8 = arith.constant 0.000000e+00 : f32
    %9 = vector.broadcast %cst_8 : f32 to vector<40x1024xf32>
    %10 = arith.maximumf %8, %9 : vector<40x1024xf32>
    %11 = arith.truncf %10 : vector<40x1024xf32> to vector<40x1024xbf16>
    %c0_9 = arith.constant 0 : index
    %c0_10 = arith.constant 0 : index
    %12 = vector.load %arg4[%c0_9, %c0_10] : memref<1024x3xbf16, #tpu.memory_space<vmem>>, vector<1024x3xbf16>
    %cst_11 = arith.constant dense<0.000000e+00> : vector<40x3xf32>
    %13 = tpu.matmul %11, %12, %cst_11 {dimension_numbers = #tpu.dot_dimension_numbers<[1], [0], [0], [1], [0, 0, 1, 1], [], []>} : vector<40x1024xbf16>, vector<1024x3xbf16>, vector<40x3xf32> -> vector<40x3xf32>
    %14 = vector.extract_strided_slice %13 {offsets = [0, 1], sizes = [8, 1], strides = [1, 1]} : vector<40x3xf32> to vector<8x1xf32>
    %15 = vector.broadcast %0 : f32 to vector<8x1xf32>
    %16 = arith.addf %14, %15 : vector<8x1xf32>
    %17 = vector.extract_strided_slice %13 {offsets = [8, 2], sizes = [8, 1], strides = [1, 1]} : vector<40x3xf32> to vector<8x1xf32>
    %18 = arith.addf %16, %17 : vector<8x1xf32>
    %cst_12 = arith.constant 0.000000e+00 : f32
    %19 = vector.broadcast %cst_12 : f32 to vector<8x1xf32>
    %20 = arith.maximumf %18, %19 : vector<8x1xf32>
    %21 = vector.extract_strided_slice %13 {offsets = [8, 1], sizes = [8, 1], strides = [1, 1]} : vector<40x3xf32> to vector<8x1xf32>
    %22 = vector.broadcast %0 : f32 to vector<8x1xf32>
    %23 = arith.addf %21, %22 : vector<8x1xf32>
    %24 = vector.extract_strided_slice %13 {offsets = [0, 0], sizes = [8, 1], strides = [1, 1]} : vector<40x3xf32> to vector<8x1xf32>
    %25 = arith.addf %23, %24 : vector<8x1xf32>
    %26 = vector.extract_strided_slice %13 {offsets = [16, 2], sizes = [8, 1], strides = [1, 1]} : vector<40x3xf32> to vector<8x1xf32>
    %27 = arith.addf %25, %26 : vector<8x1xf32>
    %cst_13 = arith.constant 0.000000e+00 : f32
    %28 = vector.broadcast %cst_13 : f32 to vector<8x1xf32>
    %29 = arith.maximumf %27, %28 : vector<8x1xf32>
    %30 = vector.extract_strided_slice %13 {offsets = [16, 1], sizes = [8, 1], strides = [1, 1]} : vector<40x3xf32> to vector<8x1xf32>
    %31 = vector.broadcast %0 : f32 to vector<8x1xf32>
    %32 = arith.addf %30, %31 : vector<8x1xf32>
    %33 = vector.extract_strided_slice %13 {offsets = [8, 0], sizes = [8, 1], strides = [1, 1]} : vector<40x3xf32> to vector<8x1xf32>
    %34 = arith.addf %32, %33 : vector<8x1xf32>
    %35 = vector.extract_strided_slice %13 {offsets = [24, 2], sizes = [8, 1], strides = [1, 1]} : vector<40x3xf32> to vector<8x1xf32>
    %36 = arith.addf %34, %35 : vector<8x1xf32>
    %cst_14 = arith.constant 0.000000e+00 : f32
    %37 = vector.broadcast %cst_14 : f32 to vector<8x1xf32>
    %38 = arith.maximumf %36, %37 : vector<8x1xf32>
    %39 = vector.extract_strided_slice %13 {offsets = [24, 1], sizes = [8, 1], strides = [1, 1]} : vector<40x3xf32> to vector<8x1xf32>
    %40 = vector.broadcast %0 : f32 to vector<8x1xf32>
    %41 = arith.addf %39, %40 : vector<8x1xf32>
    %42 = vector.extract_strided_slice %13 {offsets = [16, 0], sizes = [8, 1], strides = [1, 1]} : vector<40x3xf32> to vector<8x1xf32>
    %43 = arith.addf %41, %42 : vector<8x1xf32>
    %44 = vector.extract_strided_slice %13 {offsets = [32, 2], sizes = [8, 1], strides = [1, 1]} : vector<40x3xf32> to vector<8x1xf32>
    %45 = arith.addf %43, %44 : vector<8x1xf32>
    %cst_15 = arith.constant 0.000000e+00 : f32
    %46 = vector.broadcast %cst_15 : f32 to vector<8x1xf32>
    %47 = arith.maximumf %45, %46 : vector<8x1xf32>
    %48 = vector.extract_strided_slice %13 {offsets = [32, 1], sizes = [8, 1], strides = [1, 1]} : vector<40x3xf32> to vector<8x1xf32>
    %49 = vector.broadcast %0 : f32 to vector<8x1xf32>
    %50 = arith.addf %48, %49 : vector<8x1xf32>
    %51 = vector.extract_strided_slice %13 {offsets = [24, 0], sizes = [8, 1], strides = [1, 1]} : vector<40x3xf32> to vector<8x1xf32>
    %52 = arith.addf %50, %51 : vector<8x1xf32>
    %cst_16 = arith.constant 0.000000e+00 : f32
    %53 = vector.broadcast %cst_16 : f32 to vector<8x1xf32>
    %54 = arith.maximumf %52, %53 : vector<8x1xf32>
    %55 = arith.maximumf %20, %29 : vector<8x1xf32>
    %56 = arith.maximumf %55, %38 : vector<8x1xf32>
    %57 = arith.maximumf %56, %47 : vector<8x1xf32>
    %58 = arith.maximumf %57, %54 : vector<8x1xf32>
    %59 = arith.subf %20, %58 : vector<8x1xf32>
    %60 = math.exp %59 : vector<8x1xf32>
    %61 = arith.subf %29, %58 : vector<8x1xf32>
    %62 = math.exp %61 : vector<8x1xf32>
    %63 = arith.subf %38, %58 : vector<8x1xf32>
    %64 = math.exp %63 : vector<8x1xf32>
    %65 = arith.subf %47, %58 : vector<8x1xf32>
    %66 = math.exp %65 : vector<8x1xf32>
    %67 = arith.subf %54, %58 : vector<8x1xf32>
    %68 = math.exp %67 : vector<8x1xf32>
    %69 = arith.addf %60, %62 : vector<8x1xf32>
    %70 = arith.addf %69, %64 : vector<8x1xf32>
    %71 = arith.addf %70, %66 : vector<8x1xf32>
    %72 = arith.addf %71, %68 : vector<8x1xf32>
    %73 = tpu.reciprocal %72 {approx = true} : vector<8x1xf32> -> vector<8x1xf32>
    %74 = arith.mulf %60, %73 : vector<8x1xf32>
    %cst_17 = arith.constant 0.166666672 : f32
    %75 = vector.broadcast %cst_17 : f32 to vector<8x1xf32>
    %76 = arith.mulf %74, %75 : vector<8x1xf32>
    %c0_18 = arith.constant 0 : index
    %c0_19 = arith.constant 0 : index
    %c0_20 = arith.constant 0 : index
    %77 = vector.load %arg1[%c0_18, %c0_19, %c0_20] : memref<5x8x768xf32, #tpu.memory_space<vmem>>, vector<1x8x128xf32>
    %78 = vector.shape_cast %77 : vector<1x8x128xf32> to vector<8x128xf32>
    %c0_21 = arith.constant 0 : index
    %c0_22 = arith.constant 0 : index
    %c128 = arith.constant 128 : index
    %79 = vector.load %arg1[%c0_21, %c0_22, %c128] : memref<5x8x768xf32, #tpu.memory_space<vmem>>, vector<1x8x128xf32>
    %80 = vector.shape_cast %79 : vector<1x8x128xf32> to vector<8x128xf32>
    %81 = arith.addf %78, %80 : vector<8x128xf32>
    %c0_23 = arith.constant 0 : index
    %c0_24 = arith.constant 0 : index
    %c256 = arith.constant 256 : index
    %82 = vector.load %arg1[%c0_23, %c0_24, %c256] : memref<5x8x768xf32, #tpu.memory_space<vmem>>, vector<1x8x128xf32>
    %83 = vector.shape_cast %82 : vector<1x8x128xf32> to vector<8x128xf32>
    %84 = arith.addf %81, %83 : vector<8x128xf32>
    %c0_25 = arith.constant 0 : index
    %c0_26 = arith.constant 0 : index
    %c384 = arith.constant 384 : index
    %85 = vector.load %arg1[%c0_25, %c0_26, %c384] : memref<5x8x768xf32, #tpu.memory_space<vmem>>, vector<1x8x128xf32>
    %86 = vector.shape_cast %85 : vector<1x8x128xf32> to vector<8x128xf32>
    %87 = arith.addf %84, %86 : vector<8x128xf32>
    %c0_27 = arith.constant 0 : index
    %c0_28 = arith.constant 0 : index
    %c512 = arith.constant 512 : index
    %88 = vector.load %arg1[%c0_27, %c0_28, %c512] : memref<5x8x768xf32, #tpu.memory_space<vmem>>, vector<1x8x128xf32>
    %89 = vector.shape_cast %88 : vector<1x8x128xf32> to vector<8x128xf32>
    %90 = arith.addf %87, %89 : vector<8x128xf32>
    %c0_29 = arith.constant 0 : index
    %c0_30 = arith.constant 0 : index
    %c640 = arith.constant 640 : index
    %91 = vector.load %arg1[%c0_29, %c0_30, %c640] : memref<5x8x768xf32, #tpu.memory_space<vmem>>, vector<1x8x128xf32>
    %92 = vector.shape_cast %91 : vector<1x8x128xf32> to vector<8x128xf32>
    %93 = arith.addf %90, %92 : vector<8x128xf32>
    %94 = vector.broadcast %76 : vector<8x1xf32> to vector<8x128xf32>
    %95 = arith.mulf %94, %93 : vector<8x128xf32>
    %96 = arith.mulf %62, %73 : vector<8x1xf32>
    %cst_31 = arith.constant 0.166666672 : f32
    %97 = vector.broadcast %cst_31 : f32 to vector<8x1xf32>
    %98 = arith.mulf %96, %97 : vector<8x1xf32>
    %c1 = arith.constant 1 : index
    %c0_32 = arith.constant 0 : index
    %c0_33 = arith.constant 0 : index
    %99 = vector.load %arg1[%c1, %c0_32, %c0_33] : memref<5x8x768xf32, #tpu.memory_space<vmem>>, vector<1x8x128xf32>
    %100 = vector.shape_cast %99 : vector<1x8x128xf32> to vector<8x128xf32>
    %c1_34 = arith.constant 1 : index
    %c0_35 = arith.constant 0 : index
    %c128_36 = arith.constant 128 : index
    %101 = vector.load %arg1[%c1_34, %c0_35, %c128_36] : memref<5x8x768xf32, #tpu.memory_space<vmem>>, vector<1x8x128xf32>
    %102 = vector.shape_cast %101 : vector<1x8x128xf32> to vector<8x128xf32>
    %103 = arith.addf %100, %102 : vector<8x128xf32>
    %c1_37 = arith.constant 1 : index
    %c0_38 = arith.constant 0 : index
    %c256_39 = arith.constant 256 : index
    %104 = vector.load %arg1[%c1_37, %c0_38, %c256_39] : memref<5x8x768xf32, #tpu.memory_space<vmem>>, vector<1x8x128xf32>
    %105 = vector.shape_cast %104 : vector<1x8x128xf32> to vector<8x128xf32>
    %106 = arith.addf %103, %105 : vector<8x128xf32>
    %c1_40 = arith.constant 1 : index
    %c0_41 = arith.constant 0 : index
    %c384_42 = arith.constant 384 : index
    %107 = vector.load %arg1[%c1_40, %c0_41, %c384_42] : memref<5x8x768xf32, #tpu.memory_space<vmem>>, vector<1x8x128xf32>
    %108 = vector.shape_cast %107 : vector<1x8x128xf32> to vector<8x128xf32>
    %109 = arith.addf %106, %108 : vector<8x128xf32>
    %c1_43 = arith.constant 1 : index
    %c0_44 = arith.constant 0 : index
    %c512_45 = arith.constant 512 : index
    %110 = vector.load %arg1[%c1_43, %c0_44, %c512_45] : memref<5x8x768xf32, #tpu.memory_space<vmem>>, vector<1x8x128xf32>
    %111 = vector.shape_cast %110 : vector<1x8x128xf32> to vector<8x128xf32>
    %112 = arith.addf %109, %111 : vector<8x128xf32>
    %c1_46 = arith.constant 1 : index
    %c0_47 = arith.constant 0 : index
    %c640_48 = arith.constant 640 : index
    %113 = vector.load %arg1[%c1_46, %c0_47, %c640_48] : memref<5x8x768xf32, #tpu.memory_space<vmem>>, vector<1x8x128xf32>
    %114 = vector.shape_cast %113 : vector<1x8x128xf32> to vector<8x128xf32>
    %115 = arith.addf %112, %114 : vector<8x128xf32>
    %116 = vector.broadcast %98 : vector<8x1xf32> to vector<8x128xf32>
    %117 = arith.mulf %116, %115 : vector<8x128xf32>
    %118 = arith.addf %95, %117 : vector<8x128xf32>
    %119 = arith.mulf %64, %73 : vector<8x1xf32>
    %cst_49 = arith.constant 0.166666672 : f32
    %120 = vector.broadcast %cst_49 : f32 to vector<8x1xf32>
    %121 = arith.mulf %119, %120 : vector<8x1xf32>
    %c2 = arith.constant 2 : index
    %c0_50 = arith.constant 0 : index
    %c0_51 = arith.constant 0 : index
    %122 = vector.load %arg1[%c2, %c0_50, %c0_51] : memref<5x8x768xf32, #tpu.memory_space<vmem>>, vector<1x8x128xf32>
    %123 = vector.shape_cast %122 : vector<1x8x128xf32> to vector<8x128xf32>
    %c2_52 = arith.constant 2 : index
    %c0_53 = arith.constant 0 : index
    %c128_54 = arith.constant 128 : index
    %124 = vector.load %arg1[%c2_52, %c0_53, %c128_54] : memref<5x8x768xf32, #tpu.memory_space<vmem>>, vector<1x8x128xf32>
    %125 = vector.shape_cast %124 : vector<1x8x128xf32> to vector<8x128xf32>
    %126 = arith.addf %123, %125 : vector<8x128xf32>
    %c2_55 = arith.constant 2 : index
    %c0_56 = arith.constant 0 : index
    %c256_57 = arith.constant 256 : index
    %127 = vector.load %arg1[%c2_55, %c0_56, %c256_57] : memref<5x8x768xf32, #tpu.memory_space<vmem>>, vector<1x8x128xf32>
    %128 = vector.shape_cast %127 : vector<1x8x128xf32> to vector<8x128xf32>
    %129 = arith.addf %126, %128 : vector<8x128xf32>
    %c2_58 = arith.constant 2 : index
    %c0_59 = arith.constant 0 : index
    %c384_60 = arith.constant 384 : index
    %130 = vector.load %arg1[%c2_58, %c0_59, %c384_60] : memref<5x8x768xf32, #tpu.memory_space<vmem>>, vector<1x8x128xf32>
    %131 = vector.shape_cast %130 : vector<1x8x128xf32> to vector<8x128xf32>
    %132 = arith.addf %129, %131 : vector<8x128xf32>
    %c2_61 = arith.constant 2 : index
    %c0_62 = arith.constant 0 : index
    %c512_63 = arith.constant 512 : index
    %133 = vector.load %arg1[%c2_61, %c0_62, %c512_63] : memref<5x8x768xf32, #tpu.memory_space<vmem>>, vector<1x8x128xf32>
    %134 = vector.shape_cast %133 : vector<1x8x128xf32> to vector<8x128xf32>
    %135 = arith.addf %132, %134 : vector<8x128xf32>
    %c2_64 = arith.constant 2 : index
    %c0_65 = arith.constant 0 : index
    %c640_66 = arith.constant 640 : index
    %136 = vector.load %arg1[%c2_64, %c0_65, %c640_66] : memref<5x8x768xf32, #tpu.memory_space<vmem>>, vector<1x8x128xf32>
    %137 = vector.shape_cast %136 : vector<1x8x128xf32> to vector<8x128xf32>
    %138 = arith.addf %135, %137 : vector<8x128xf32>
    %139 = vector.broadcast %121 : vector<8x1xf32> to vector<8x128xf32>
    %140 = arith.mulf %139, %138 : vector<8x128xf32>
    %141 = arith.addf %118, %140 : vector<8x128xf32>
    %142 = arith.mulf %66, %73 : vector<8x1xf32>
    %cst_67 = arith.constant 0.166666672 : f32
    %143 = vector.broadcast %cst_67 : f32 to vector<8x1xf32>
    %144 = arith.mulf %142, %143 : vector<8x1xf32>
    %c3 = arith.constant 3 : index
    %c0_68 = arith.constant 0 : index
    %c0_69 = arith.constant 0 : index
    %145 = vector.load %arg1[%c3, %c0_68, %c0_69] : memref<5x8x768xf32, #tpu.memory_space<vmem>>, vector<1x8x128xf32>
    %146 = vector.shape_cast %145 : vector<1x8x128xf32> to vector<8x128xf32>
    %c3_70 = arith.constant 3 : index
    %c0_71 = arith.constant 0 : index
    %c128_72 = arith.constant 128 : index
    %147 = vector.load %arg1[%c3_70, %c0_71, %c128_72] : memref<5x8x768xf32, #tpu.memory_space<vmem>>, vector<1x8x128xf32>
    %148 = vector.shape_cast %147 : vector<1x8x128xf32> to vector<8x128xf32>
    %149 = arith.addf %146, %148 : vector<8x128xf32>
    %c3_73 = arith.constant 3 : index
    %c0_74 = arith.constant 0 : index
    %c256_75 = arith.constant 256 : index
    %150 = vector.load %arg1[%c3_73, %c0_74, %c256_75] : memref<5x8x768xf32, #tpu.memory_space<vmem>>, vector<1x8x128xf32>
    %151 = vector.shape_cast %150 : vector<1x8x128xf32> to vector<8x128xf32>
    %152 = arith.addf %149, %151 : vector<8x128xf32>
    %c3_76 = arith.constant 3 : index
    %c0_77 = arith.constant 0 : index
    %c384_78 = arith.constant 384 : index
    %153 = vector.load %arg1[%c3_76, %c0_77, %c384_78] : memref<5x8x768xf32, #tpu.memory_space<vmem>>, vector<1x8x128xf32>
    %154 = vector.shape_cast %153 : vector<1x8x128xf32> to vector<8x128xf32>
    %155 = arith.addf %152, %154 : vector<8x128xf32>
    %c3_79 = arith.constant 3 : index
    %c0_80 = arith.constant 0 : index
    %c512_81 = arith.constant 512 : index
    %156 = vector.load %arg1[%c3_79, %c0_80, %c512_81] : memref<5x8x768xf32, #tpu.memory_space<vmem>>, vector<1x8x128xf32>
    %157 = vector.shape_cast %156 : vector<1x8x128xf32> to vector<8x128xf32>
    %158 = arith.addf %155, %157 : vector<8x128xf32>
    %c3_82 = arith.constant 3 : index
    %c0_83 = arith.constant 0 : index
    %c640_84 = arith.constant 640 : index
    %159 = vector.load %arg1[%c3_82, %c0_83, %c640_84] : memref<5x8x768xf32, #tpu.memory_space<vmem>>, vector<1x8x128xf32>
    %160 = vector.shape_cast %159 : vector<1x8x128xf32> to vector<8x128xf32>
    %161 = arith.addf %158, %160 : vector<8x128xf32>
    %162 = vector.broadcast %144 : vector<8x1xf32> to vector<8x128xf32>
    %163 = arith.mulf %162, %161 : vector<8x128xf32>
    %164 = arith.addf %141, %163 : vector<8x128xf32>
    %165 = arith.mulf %68, %73 : vector<8x1xf32>
    %cst_85 = arith.constant 0.166666672 : f32
    %166 = vector.broadcast %cst_85 : f32 to vector<8x1xf32>
    %167 = arith.mulf %165, %166 : vector<8x1xf32>
    %c4 = arith.constant 4 : index
    %c0_86 = arith.constant 0 : index
    %c0_87 = arith.constant 0 : index
    %168 = vector.load %arg1[%c4, %c0_86, %c0_87] : memref<5x8x768xf32, #tpu.memory_space<vmem>>, vector<1x8x128xf32>
    %169 = vector.shape_cast %168 : vector<1x8x128xf32> to vector<8x128xf32>
    %c4_88 = arith.constant 4 : index
    %c0_89 = arith.constant 0 : index
    %c128_90 = arith.constant 128 : index
    %170 = vector.load %arg1[%c4_88, %c0_89, %c128_90] : memref<5x8x768xf32, #tpu.memory_space<vmem>>, vector<1x8x128xf32>
    %171 = vector.shape_cast %170 : vector<1x8x128xf32> to vector<8x128xf32>
    %172 = arith.addf %169, %171 : vector<8x128xf32>
    %c4_91 = arith.constant 4 : index
    %c0_92 = arith.constant 0 : index
    %c256_93 = arith.constant 256 : index
    %173 = vector.load %arg1[%c4_91, %c0_92, %c256_93] : memref<5x8x768xf32, #tpu.memory_space<vmem>>, vector<1x8x128xf32>
    %174 = vector.shape_cast %173 : vector<1x8x128xf32> to vector<8x128xf32>
    %175 = arith.addf %172, %174 : vector<8x128xf32>
    %c4_94 = arith.constant 4 : index
    %c0_95 = arith.constant 0 : index
    %c384_96 = arith.constant 384 : index
    %176 = vector.load %arg1[%c4_94, %c0_95, %c384_96] : memref<5x8x768xf32, #tpu.memory_space<vmem>>, vector<1x8x128xf32>
    %177 = vector.shape_cast %176 : vector<1x8x128xf32> to vector<8x128xf32>
    %178 = arith.addf %175, %177 : vector<8x128xf32>
    %c4_97 = arith.constant 4 : index
    %c0_98 = arith.constant 0 : index
    %c512_99 = arith.constant 512 : index
    %179 = vector.load %arg1[%c4_97, %c0_98, %c512_99] : memref<5x8x768xf32, #tpu.memory_space<vmem>>, vector<1x8x128xf32>
    %180 = vector.shape_cast %179 : vector<1x8x128xf32> to vector<8x128xf32>
    %181 = arith.addf %178, %180 : vector<8x128xf32>
    %c4_100 = arith.constant 4 : index
    %c0_101 = arith.constant 0 : index
    %c640_102 = arith.constant 640 : index
    %182 = vector.load %arg1[%c4_100, %c0_101, %c640_102] : memref<5x8x768xf32, #tpu.memory_space<vmem>>, vector<1x8x128xf32>
    %183 = vector.shape_cast %182 : vector<1x8x128xf32> to vector<8x128xf32>
    %184 = arith.addf %181, %183 : vector<8x128xf32>
    %185 = vector.broadcast %167 : vector<8x1xf32> to vector<8x128xf32>
    %186 = arith.mulf %185, %184 : vector<8x128xf32>
    %187 = arith.addf %164, %186 : vector<8x128xf32>
    %c0_103 = arith.constant 0 : index
    %c0_104 = arith.constant 0 : index
    %188 = vector.load %arg6[%c0_103, %c0_104] : memref<8x128xf32, #tpu.memory_space<vmem>>, vector<8x128xf32>
    tpu.vector_store %arg6[%c0_103, %c0_104], %187 {strides = array<i32>} : memref<8x128xf32, #tpu.memory_space<vmem>>, vector<8x128xf32>,
    return
  }
  func.func @transform_0(%arg0: i32) -> (i32, i32, i32) {
    %c0_i32 = arith.constant 0 : i32
    %c0_i32_0 = arith.constant 0 : i32
    %c0_i32_1 = arith.constant 0 : i32
    return %c0_i32, %arg0, %c0_i32_0 : i32, i32, i32
  }
  func.func @transform_1(%arg0: i32) -> (i32, i32) {
    %c0_i32 = arith.constant 0 : i32
    %c0_i32_0 = arith.constant 0 : i32
    %c0_i32_1 = arith.constant 0 : i32
    return %c0_i32, %c0_i32_0 : i32, i32
  }
  func.func @transform_2(%arg0: i32) -> (i32, i32) {
    %c0_i32 = arith.constant 0 : i32
    %c0_i32_0 = arith.constant 0 : i32
    %c0_i32_1 = arith.constant 0 : i32
    return %c0_i32, %c0_i32_0 : i32, i32
  }
  func.func @transform_3(%arg0: i32) -> (i32, i32) {
    %c0_i32 = arith.constant 0 : i32
    %c0_i32_0 = arith.constant 0 : i32
    %c0_i32_1 = arith.constant 0 : i32
    return %c0_i32, %c0_i32_0 : i32, i32
  }
  func.func @transform_4(%arg0: i32) -> (i32, i32) {
    %c0_i32 = arith.constant 0 : i32
    %c0_i32_0 = arith.constant 0 : i32
    %c0_i32_1 = arith.constant 0 : i32
    return %c0_i32, %c0_i32_0 : i32, i32
  }
  func.func @transform_5(%arg0: i32) -> (i32, i32) {
    %c0_i32 = arith.constant 0 : i32
    %c0_i32_0 = arith.constant 0 : i32
    return %arg0, %c0_i32 : i32, i32
  }
}

</mosaic_0001>

<llo_original>
// kernel: temporal_attention.1
$region0: #{temporal_attention.1}
  #allocation0 [shape = 'u32[]', space=smem, size = 0x4, offset = 0x4, fixed_abs, tag = 'smem constant byte address 0x4 - core index']
  #allocation1 [shape = 'u32[144,128]{1,0:T(1,128)}', space=vmem, size = 0x12000, scoped, tag = 'internal scratch']
  #allocation2 [shape = 'f32[1,1]{1,0:T(1,128)S(6)}', space=smem, size = 0x200, scoped, tag = 'scoped memory for temporal_attention.1']
  %s0 = inlined_call_operand.vmem [shape: f32[5,8,768], index: 0, kind: input, shape index: {}]
  %s1 = inlined_call_operand.vmem [shape: bf16[768,1024], index: 1, kind: input, shape index: {}]
  %s2 = inlined_call_operand.vmem [shape: f32[1,1024], index: 2, kind: input, shape index: {}]
  %s3 = inlined_call_operand.vmem [shape: bf16[1024,3], index: 3, kind: input, shape index: {}]
  %s4 = inlined_call_operand.<no memory space> [shape: f32[1,1], index: 4, kind: input, shape index: {}]
  %s5 = inlined_call_operand.vmem [shape: f32[8,128], index: 5, kind: output, shape index: {}]
  %s6 = sld [smem:[#allocation0]]
  $region30: #{temporal_attention.1} parent=0
    _
  %s8 = ssub.s32 1, %s6
  %s9 = scalar_select 0, %s8, %s6
  %10 = sst [smem:[#allocation2]] %s4
  // Predicated region
  $region2: #{temporal_attention.1} parent=0 // pred_check
    _
  $region3: #{temporal_attention.1} parent=0 // pred_check_branch
    %12 = sbr.rel (0) target = $region5
  $region4: #{temporal_attention.1} parent=0 // pred_region
    _
  $region5: #{temporal_attention.1} parent=0 // pred_fallthru
    _
  // Predicated region
  $region6: #{temporal_attention.1} parent=0 // pred_check
    _
  $region7: #{temporal_attention.1} parent=0 // pred_check_branch
    %14 = sbr.rel (0) target = $region9
  $region8: #{temporal_attention.1} parent=0 // pred_region
    _
  $region9: #{temporal_attention.1} parent=0 // pred_fallthru
    _
  // Predicated region
  $region10: #{temporal_attention.1} parent=0 // pred_check
    _
  $region11: #{temporal_attention.1} parent=0 // pred_check_branch
    %16 = sbr.rel (0) target = $region13
  $region12: #{temporal_attention.1} parent=0 // pred_region
    _
  $region13: #{temporal_attention.1} parent=0 // pred_fallthru
    _
  // Predicated region
  $region14: #{temporal_attention.1} parent=0 // pred_check
    _
  $region15: #{temporal_attention.1} parent=0 // pred_check_branch
    %18 = sbr.rel (0) target = $region17
  $region16: #{temporal_attention.1} parent=0 // pred_region
    _
  $region17: #{temporal_attention.1} parent=0 // pred_fallthru
    _
  // Predicated region
  $region18: #{temporal_attention.1} parent=0 // pred_check
    _
  $region19: #{temporal_attention.1} parent=0 // pred_check_branch
    %20 = sbr.rel (0) target = $region21
  $region20: #{temporal_attention.1} parent=0 // pred_region
    _
  $region21: #{temporal_attention.1} parent=0 // pred_fallthru
    _
  %s22 = sld [smem:[#allocation2]]
  %v23 = vld [vmem:[%s0] sm:$0xff]
  %v24 = vld [vmem:[%s0 + $0x8] sm:$0xff]
  %v25 = vld [vmem:[%s0 + $0x10] sm:$0xff]
  %v26 = vld [vmem:[%s0 + $0x18] sm:$0xff]
  %v27 = vld [vmem:[%s0 + $0x20] sm:$0xff]
  %v28 = vld [vmem:[%s0 + $0x28] sm:$0xff]
  %v29 = vld [vmem:[%s0 + $0x30] sm:$0xff]
  %v30 = vld [vmem:[%s0 + $0x38] sm:$0xff]
  %v31 = vld [vmem:[%s0 + $0x40] sm:$0xff]
  %v32 = vld [vmem:[%s0 + $0x48] sm:$0xff]
  %v33 = vld [vmem:[%s0 + $0x50] sm:$0xff]
  %v34 = vld [vmem:[%s0 + $0x58] sm:$0xff]
  %v35 = vld [vmem:[%s0 + $0x60] sm:$0xff]
  %v36 = vld [vmem:[%s0 + $0x68] sm:$0xff]
  %v37 = vld [vmem:[%s0 + $0x70] sm:$0xff]
  %v38 = vld [vmem:[%s0 + $0x78] sm:$0xff]
  %v39 = vld [vmem:[%s0 + $0x80] sm:$0xff]
  %v40 = vld [vmem:[%s0 + $0x88] sm:$0xff]
  %v41 = vld [vmem:[%s0 + $0x90] sm:$0xff]
  %v42 = vld [vmem:[%s0 + $0x98] sm:$0xff]
  %v43 = vld [vmem:[%s0 + $0xa0] sm:$0xff]
  %v44 = vld [vmem:[%s0 + $0xa8] sm:$0xff]
  %v45 = vld [vmem:[%s0 + $0xb0] sm:$0xff]
  %v46 = vld [vmem:[%s0 + $0xb8] sm:$0xff]
  %v47 = vld [vmem:[%s0 + $0xc0] sm:$0xff]
  %v48 = vld [vmem:[%s0 + $0xc8] sm:$0xff]
  %v49 = vld [vmem:[%s0 + $0xd0] sm:$0xff]
  %v50 = vld [vmem:[%s0 + $0xd8] sm:$0xff]
  %v51 = vld [vmem:[%s0 + $0xe0] sm:$0xff]
  %v52 = vld [vmem:[%s0 + $0xe8] sm:$0xff]
  %v53 = vpack.c.bf16 %v29, %v23
  %v54 = vpack.c.bf16 %v30, %v24
  %v55 = vpack.c.bf16 %v31, %v25
  %v56 = vpack.c.bf16 %v32, %v26
  %v57 = vpack.c.bf16 %v33, %v27
  %v58 = vpack.c.bf16 %v34, %v28
  %v59 = vpack.c.bf16 %v41, %v35
  %v60 = vpack.c.bf16 %v42, %v36
  %v61 = vpack.c.bf16 %v43, %v37
  %v62 = vpack.c.bf16 %v44, %v38
  %v63 = vpack.c.bf16 %v45, %v39
  %v64 = vpack.c.bf16 %v46, %v40
  %v65 = vpack.c.bf16 %v47, %v47
  %v66 = vpack.c.bf16 %v48, %v48
  %v67 = vpack.c.bf16 %v49, %v49
  %v68 = vpack.c.bf16 %v50, %v50
  %v69 = vpack.c.bf16 %v51, %v51
  %v70 = vpack.c.bf16 %v52, %v52
  %v71 = vld [vmem:[%s1] sm:$0xff]
  %v72 = vld [vmem:[%s1 + $0x8] sm:$0xff]
  %v73 = vld [vmem:[%s1 + $0x10] sm:$0xff]
  %v74 = vld [vmem:[%s1 + $0x18] sm:$0xff]
  %v75 = vld [vmem:[%s1 + $0x20] sm:$0xff]
  %v76 = vld [vmem:[%s1 + $0x28] sm:$0xff]
  %v77 = vld [vmem:[%s1 + $0x30] sm:$0xff]
  %v78 = vld [vmem:[%s1 + $0x38] sm:$0xff]
  %v79 = vld [vmem:[%s1 + $0x40] sm:$0xff]
  %v80 = vld [vmem:[%s1 + $0x48] sm:$0xff]
  %v81 = vld [vmem:[%s1 + $0x50] sm:$0xff]
  %v82 = vld [vmem:[%s1 + $0x58] sm:$0xff]
  %v83 = vld [vmem:[%s1 + $0x60] sm:$0xff]
  %v84 = vld [vmem:[%s1 + $0x68] sm:$0xff]
  %v85 = vld [vmem:[%s1 + $0x70] sm:$0xff]
  %v86 = vld [vmem:[%s1 + $0x78] sm:$0xff]
  %v87 = vld [vmem:[%s1 + $0x80] sm:$0xff]
  %v88 = vld [vmem:[%s1 + $0x88] sm:$0xff]
  %v89 = vld [vmem:[%s1 + $0x90] sm:$0xff]
  %v90 = vld [vmem:[%s1 + $0x98] sm:$0xff]
  %v91 = vld [vmem:[%s1 + $0xa0] sm:$0xff]
  %v92 = vld [vmem:[%s1 + $0xa8] sm:$0xff]
  %v93 = vld [vmem:[%s1 + $0xb0] sm:$0xff]
  %v94 = vld [vmem:[%s1 + $0xb8] sm:$0xff]
  %v95 = vld [vmem:[%s1 + $0xc0] sm:$0xff]
  %v96 = vld [vmem:[%s1 + $0xc8] sm:$0xff]
  %v97 = vld [vmem:[%s1 + $0xd0] sm:$0xff]
  %v98 = vld [vmem:[%s1 + $0xd8] sm:$0xff]
  %v99 = vld [vmem:[%s1 + $0xe0] sm:$0xff]
  %v100 = vld [vmem:[%s1 + $0xe8] sm:$0xff]
  %v101 = vld [vmem:[%s1 + $0xf0] sm:$0xff]
  %v102 = vld [vmem:[%s1 + $0xf8] sm:$0xff]
  %v103 = vld [vmem:[%s1 + $0x100] sm:$0xff]
  %v104 = vld [vmem:[%s1 + $0x108] sm:$0xff]
  %v105 = vld [vmem:[%s1 + $0x110] sm:$0xff]
  %v106 = vld [vmem:[%s1 + $0x118] sm:$0xff]
  %v107 = vld [vmem:[%s1 + $0x120] sm:$0xff]
  %v108 = vld [vmem:[%s1 + $0x128] sm:$0xff]
  %v109 = vld [vmem:[%s1 + $0x130] sm:$0xff]
  %v110 = vld [vmem:[%s1 + $0x138] sm:$0xff]
  %v111 = vld [vmem:[%s1 + $0x140] sm:$0xff]
  %v112 = vld [vmem:[%s1 + $0x148] sm:$0xff]
  %v113 = vld [vmem:[%s1 + $0x150] sm:$0xff]
  %v114 = vld [vmem:[%s1 + $0x158] sm:$0xff]
  %v115 = vld [vmem:[%s1 + $0x160] sm:$0xff]
  %v116 = vld [vmem:[%s1 + $0x168] sm:$0xff]
  %v117 = vld [vmem:[%s1 + $0x170] sm:$0xff]
  %v118 = vld [vmem:[%s1 + $0x178] sm:$0xff]
  %v119 = vld [vmem:[%s1 + $0x180] sm:$0xff]
  %v120 = vld [vmem:[%s1 + $0x188] sm:$0xff]
  %v121 = vld [vmem:[%s1 + $0x190] sm:$0xff]
  %v122 = vld [vmem:[%s1 + $0x198] sm:$0xff]
  %v123 = vld [vmem:[%s1 + $0x1a0] sm:$0xff]
  %v124 = vld [vmem:[%s1 + $0x1a8] sm:$0xff]
  %v125 = vld [vmem:[%s1 + $0x1b0] sm:$0xff]
  %v126 = vld [vmem:[%s1 + $0x1b8] sm:$0xff]
  %v127 = vld [vmem:[%s1 + $0x1c0] sm:$0xff]
  %v128 = vld [vmem:[%s1 + $0x1c8] sm:$0xff]
  %v129 = vld [vmem:[%s1 + $0x1d0] sm:$0xff]
  %v130 = vld [vmem:[%s1 + $0x1d8] sm:$0xff]
  %v131 = vld [vmem:[%s1 + $0x1e0] sm:$0xff]
  %v132 = vld [vmem:[%s1 + $0x1e8] sm:$0xff]
  %v133 = vld [vmem:[%s1 + $0x1f0] sm:$0xff]
  %v134 = vld [vmem:[%s1 + $0x1f8] sm:$0xff]
  %v135 = vld [vmem:[%s1 + $0x200] sm:$0xff]
  %v136 = vld [vmem:[%s1 + $0x208] sm:$0xff]
  %v137 = vld [vmem:[%s1 + $0x210] sm:$0xff]
  %v138 = vld [vmem:[%s1 + $0x218] sm:$0xff]
  %v139 = vld [vmem:[%s1 + $0x220] sm:$0xff]
  %v140 = vld [vmem:[%s1 + $0x228] sm:$0xff]
  %v141 = vld [vmem:[%s1 + $0x230] sm:$0xff]
  %v142 = vld [vmem:[%s1 + $0x238] sm:$0xff]
  %v143 = vld [vmem:[%s1 + $0x240] sm:$0xff]
  %v144 = vld [vmem:[%s1 + $0x248] sm:$0xff]
  %v145 = vld [vmem:[%s1 + $0x250] sm:$0xff]
  %v146 = vld [vmem:[%s1 + $0x258] sm:$0xff]
  %v147 = vld [vmem:[%s1 + $0x260] sm:$0xff]
  %v148 = vld [vmem:[%s1 + $0x268] sm:$0xff]
  %v149 = vld [vmem:[%s1 + $0x270] sm:$0xff]
  %v150 = vld [vmem:[%s1 + $0x278] sm:$0xff]
  %v151 = vld [vmem:[%s1 + $0x280] sm:$0xff]
  %v152 = vld [vmem:[%s1 + $0x288] sm:$0xff]
  %v153 = vld [vmem:[%s1 + $0x290] sm:$0xff]
  %v154 = vld [vmem:[%s1 + $0x298] sm:$0xff]
  %v155 = vld [vmem:[%s1 + $0x2a0] sm:$0xff]
  %v156 = vld [vmem:[%s1 + $0x2a8] sm:$0xff]
  %v157 = vld [vmem:[%s1 + $0x2b0] sm:$0xff]
  %v158 = vld [vmem:[%s1 + $0x2b8] sm:$0xff]
  %v159 = vld [vmem:[%s1 + $0x2c0] sm:$0xff]
  %v160 = vld [vmem:[%s1 + $0x2c8] sm:$0xff]
  %v161 = vld [vmem:[%s1 + $0x2d0] sm:$0xff]
  %v162 = vld [vmem:[%s1 + $0x2d8] sm:$0xff]
  %v163 = vld [vmem:[%s1 + $0x2e0] sm:$0xff]
  %v164 = vld [vmem:[%s1 + $0x2e8] sm:$0xff]
  %v165 = vld [vmem:[%s1 + $0x2f0] sm:$0xff]
  %v166 = vld [vmem:[%s1 + $0x2f8] sm:$0xff]
  %v167 = vld [vmem:[%s1 + $0x300] sm:$0xff]
  %v168 = vld [vmem:[%s1 + $0x308] sm:$0xff]
  %v169 = vld [vmem:[%s1 + $0x310] sm:$0xff]
  %v170 = vld [vmem:[%s1 + $0x318] sm:$0xff]
  %v171 = vld [vmem:[%s1 + $0x320] sm:$0xff]
  %v172 = vld [vmem:[%s1 + $0x328] sm:$0xff]
  %v173 = vld [vmem:[%s1 + $0x330] sm:$0xff]
  %v174 = vld [vmem:[%s1 + $0x338] sm:$0xff]
  %v175 = vld [vmem:[%s1 + $0x340] sm:$0xff]
  %v176 = vld [vmem:[%s1 + $0x348] sm:$0xff]
  %v177 = vld [vmem:[%s1 + $0x350] sm:$0xff]
  %v178 = vld [vmem:[%s1 + $0x358] sm:$0xff]
  %v179 = vld [vmem:[%s1 + $0x360] sm:$0xff]
  %v180 = vld [vmem:[%s1 + $0x368] sm:$0xff]
  %v181 = vld [vmem:[%s1 + $0x370] sm:$0xff]
  %v182 = vld [vmem:[%s1 + $0x378] sm:$0xff]
  %v183 = vld [vmem:[%s1 + $0x380] sm:$0xff]
  %v184 = vld [vmem:[%s1 + $0x388] sm:$0xff]
  %v185 = vld [vmem:[%s1 + $0x390] sm:$0xff]
  %v186 = vld [vmem:[%s1 + $0x398] sm:$0xff]
  %v187 = vld [vmem:[%s1 + $0x3a0] sm:$0xff]
  %v188 = vld [vmem:[%s1 + $0x3a8] sm:$0xff]
  %v189 = vld [vmem:[%s1 + $0x3b0] sm:$0xff]
  %v190 = vld [vmem:[%s1 + $0x3b8] sm:$0xff]
  %v191 = vld [vmem:[%s1 + $0x3c0] sm:$0xff]
  %v192 = vld [vmem:[%s1 + $0x3c8] sm:$0xff]
  %v193 = vld [vmem:[%s1 + $0x3d0] sm:$0xff]
  %v194 = vld [vmem:[%s1 + $0x3d8] sm:$0xff]
  %v195 = vld [vmem:[%s1 + $0x3e0] sm:$0xff]
  %v196 = vld [vmem:[%s1 + $0x3e8] sm:$0xff]
  %v197 = vld [vmem:[%s1 + $0x3f0] sm:$0xff]
  %v198 = vld [vmem:[%s1 + $0x3f8] sm:$0xff]
  %v199 = vld [vmem:[%s1 + $0x400] sm:$0xff]
  %v200 = vld [vmem:[%s1 + $0x408] sm:$0xff]
  %v201 = vld [vmem:[%s1 + $0x410] sm:$0xff]
  %v202 = vld [vmem:[%s1 + $0x418] sm:$0xff]
  %v203 = vld [vmem:[%s1 + $0x420] sm:$0xff]
  %v204 = vld [vmem:[%s1 + $0x428] sm:$0xff]
  %v205 = vld [vmem:[%s1 + $0x430] sm:$0xff]
  %v206 = vld [vmem:[%s1 + $0x438] sm:$0xff]
  %v207 = vld [vmem:[%s1 + $0x440] sm:$0xff]
  %v208 = vld [vmem:[%s1 + $0x448] sm:$0xff]
  %v209 = vld [vmem:[%s1 + $0x450] sm:$0xff]
  %v210 = vld [vmem:[%s1 + $0x458] sm:$0xff]
  %v211 = vld [vmem:[%s1 + $0x460] sm:$0xff]
  %v212 = vld [vmem:[%s1 + $0x468] sm:$0xff]
  %v213 = vld [vmem:[%s1 + $0x470] sm:$0xff]
  %v214 = vld [vmem:[%s1 + $0x478] sm:$0xff]
  %v215 = vld [vmem:[%s1 + $0x480] sm:$0xff]
  %v216 = vld [vmem:[%s1 + $0x488] sm:$0xff]
  %v217 = vld [vmem:[%s1 + $0x490] sm:$0xff]
  %v218 = vld [vmem:[%s1 + $0x498] sm:$0xff]
  %v219 = vld [vmem:[%s1 + $0x4a0] sm:$0xff]
  %v220 = vld [vmem:[%s1 + $0x4a8] sm:$0xff]
  %v221 = vld [vmem:[%s1 + $0x4b0] sm:$0xff]
  %v222 = vld [vmem:[%s1 + $0x4b8] sm:$0xff]
  %v223 = vld [vmem:[%s1 + $0x4c0] sm:$0xff]
  %v224 = vld [vmem:[%s1 + $0x4c8] sm:$0xff]
  %v225 = vld [vmem:[%s1 + $0x4d0] sm:$0xff]
  %v226 = vld [vmem:[%s1 + $0x4d8] sm:$0xff]
  %v227 = vld [vmem:[%s1 + $0x4e0] sm:$0xff]
  %v228 = vld [vmem:[%s1 + $0x4e8] sm:$0xff]
  %v229 = vld [vmem:[%s1 + $0x4f0] sm:$0xff]
  %v230 = vld [vmem:[%s1 + $0x4f8] sm:$0xff]
  %v231 = vld [vmem:[%s1 + $0x500] sm:$0xff]
  %v232 = vld [vmem:[%s1 + $0x508] sm:$0xff]
  %v233 = vld [vmem:[%s1 + $0x510] sm:$0xff]
  %v234 = vld [vmem:[%s1 + $0x518] sm:$0xff]
  %v235 = vld [vmem:[%s1 + $0x520] sm:$0xff]
  %v236 = vld [vmem:[%s1 + $0x528] sm:$0xff]
  %v237 = vld [vmem:[%s1 + $0x530] sm:$0xff]
  %v238 = vld [vmem:[%s1 + $0x538] sm:$0xff]
  %v239 = vld [vmem:[%s1 + $0x540] sm:$0xff]
  %v240 = vld [vmem:[%s1 + $0x548] sm:$0xff]
  %v241 = vld [vmem:[%s1 + $0x550] sm:$0xff]
  %v242 = vld [vmem:[%s1 + $0x558] sm:$0xff]
  %v243 = vld [vmem:[%s1 + $0x560] sm:$0xff]
  %v244 = vld [vmem:[%s1 + $0x568] sm:$0xff]
  %v245 = vld [vmem:[%s1 + $0x570] sm:$0xff]
  %v246 = vld [vmem:[%s1 + $0x578] sm:$0xff]
  %v247 = vld [vmem:[%s1 + $0x580] sm:$0xff]
  %v248 = vld [vmem:[%s1 + $0x588] sm:$0xff]
  %v249 = vld [vmem:[%s1 + $0x590] sm:$0xff]
  %v250 = vld [vmem:[%s1 + $0x598] sm:$0xff]
  %v251 = vld [vmem:[%s1 + $0x5a0] sm:$0xff]
  %v252 = vld [vmem:[%s1 + $0x5a8] sm:$0xff]
  %v253 = vld [vmem:[%s1 + $0x5b0] sm:$0xff]
  %v254 = vld [vmem:[%s1 + $0x5b8] sm:$0xff]
  %v255 = vld [vmem:[%s1 + $0x5c0] sm:$0xff]
  %v256 = vld [vmem:[%s1 + $0x5c8] sm:$0xff]
  %v257 = vld [vmem:[%s1 + $0x5d0] sm:$0xff]
  %v258 = vld [vmem:[%s1 + $0x5d8] sm:$0xff]
  %v259 = vld [vmem:[%s1 + $0x5e0] sm:$0xff]
  %v260 = vld [vmem:[%s1 + $0x5e8] sm:$0xff]
  %v261 = vld [vmem:[%s1 + $0x5f0] sm:$0xff]
  %v262 = vld [vmem:[%s1 + $0x5f8] sm:$0xff]
  %v263 = vld [vmem:[%s1 + $0x600] sm:$0xff]
  %v264 = vld [vmem:[%s1 + $0x608] sm:$0xff]
  %v265 = vld [vmem:[%s1 + $0x610] sm:$0xff]
  %v266 = vld [vmem:[%s1 + $0x618] sm:$0xff]
  %v267 = vld [vmem:[%s1 + $0x620] sm:$0xff]
  %v268 = vld [vmem:[%s1 + $0x628] sm:$0xff]
  %v269 = vld [vmem:[%s1 + $0x630] sm:$0xff]
  %v270 = vld [vmem:[%s1 + $0x638] sm:$0xff]
  %v271 = vld [vmem:[%s1 + $0x640] sm:$0xff]
  %v272 = vld [vmem:[%s1 + $0x648] sm:$0xff]
  %v273 = vld [vmem:[%s1 + $0x650] sm:$0xff]
  %v274 = vld [vmem:[%s1 + $0x658] sm:$0xff]
  %v275 = vld [vmem:[%s1 + $0x660] sm:$0xff]
  %v276 = vld [vmem:[%s1 + $0x668] sm:$0xff]
  %v277 = vld [vmem:[%s1 + $0x670] sm:$0xff]
  %v278 = vld [vmem:[%s1 + $0x678] sm:$0xff]
  %v279 = vld [vmem:[%s1 + $0x680] sm:$0xff]
  %v280 = vld [vmem:[%s1 + $0x688] sm:$0xff]
  %v281 = vld [vmem:[%s1 + $0x690] sm:$0xff]
  %v282 = vld [vmem:[%s1 + $0x698] sm:$0xff]
  %v283 = vld [vmem:[%s1 + $0x6a0] sm:$0xff]
  %v284 = vld [vmem:[%s1 + $0x6a8] sm:$0xff]
  %v285 = vld [vmem:[%s1 + $0x6b0] sm:$0xff]
  %v286 = vld [vmem:[%s1 + $0x6b8] sm:$0xff]
  %v287 = vld [vmem:[%s1 + $0x6c0] sm:$0xff]
  %v288 = vld [vmem:[%s1 + $0x6c8] sm:$0xff]
  %v289 = vld [vmem:[%s1 + $0x6d0] sm:$0xff]
  %v290 = vld [vmem:[%s1 + $0x6d8] sm:$0xff]
  %v291 = vld [vmem:[%s1 + $0x6e0] sm:$0xff]
  %v292 = vld [vmem:[%s1 + $0x6e8] sm:$0xff]
  %v293 = vld [vmem:[%s1 + $0x6f0] sm:$0xff]
  %v294 = vld [vmem:[%s1 + $0x6f8] sm:$0xff]
  %v295 = vld [vmem:[%s1 + $0x700] sm:$0xff]
  %v296 = vld [vmem:[%s1 + $0x708] sm:$0xff]
  %v297 = vld [vmem:[%s1 + $0x710] sm:$0xff]
  %v298 = vld [vmem:[%s1 + $0x718] sm:$0xff]
  %v299 = vld [vmem:[%s1 + $0x720] sm:$0xff]
  %v300 = vld [vmem:[%s1 + $0x728] sm:$0xff]
  %v301 = vld [vmem:[%s1 + $0x730] sm:$0xff]
  %v302 = vld [vmem:[%s1 + $0x738] sm:$0xff]
  %v303 = vld [vmem:[%s1 + $0x740] sm:$0xff]
  %v304 = vld [vmem:[%s1 + $0x748] sm:$0xff]
  %v305 = vld [vmem:[%s1 + $0x750] sm:$0xff]
  %v306 = vld [vmem:[%s1 + $0x758] sm:$0xff]
  %v307 = vld [vmem:[%s1 + $0x760] sm:$0xff]
  %v308 = vld [vmem:[%s1 + $0x768] sm:$0xff]
  %v309 = vld [vmem:[%s1 + $0x770] sm:$0xff]
  %v310 = vld [vmem:[%s1 + $0x778] sm:$0xff]
  %v311 = vld [vmem:[%s1 + $0x780] sm:$0xff]
  %v312 = vld [vmem:[%s1 + $0x788] sm:$0xff]
  %v313 = vld [vmem:[%s1 + $0x790] sm:$0xff]
  %v314 = vld [vmem:[%s1 + $0x798] sm:$0xff]
  %v315 = vld [vmem:[%s1 + $0x7a0] sm:$0xff]
  %v316 = vld [vmem:[%s1 + $0x7a8] sm:$0xff]
  %v317 = vld [vmem:[%s1 + $0x7b0] sm:$0xff]
  %v318 = vld [vmem:[%s1 + $0x7b8] sm:$0xff]
  %v319 = vld [vmem:[%s1 + $0x7c0] sm:$0xff]
  %v320 = vld [vmem:[%s1 + $0x7c8] sm:$0xff]
  %v321 = vld [vmem:[%s1 + $0x7d0] sm:$0xff]
  %v322 = vld [vmem:[%s1 + $0x7d8] sm:$0xff]
  %v323 = vld [vmem:[%s1 + $0x7e0] sm:$0xff]
  %v324 = vld [vmem:[%s1 + $0x7e8] sm:$0xff]
  %v325 = vld [vmem:[%s1 + $0x7f0] sm:$0xff]
  %v326 = vld [vmem:[%s1 + $0x7f8] sm:$0xff]
  %v327 = vld [vmem:[%s1 + $0x800] sm:$0xff]
  %v328 = vld [vmem:[%s1 + $0x808] sm:$0xff]
  %v329 = vld [vmem:[%s1 + $0x810] sm:$0xff]
  %v330 = vld [vmem:[%s1 + $0x818] sm:$0xff]
  %v331 = vld [vmem:[%s1 + $0x820] sm:$0xff]
  %v332 = vld [vmem:[%s1 + $0x828] sm:$0xff]
  %v333 = vld [vmem:[%s1 + $0x830] sm:$0xff]
  %v334 = vld [vmem:[%s1 + $0x838] sm:$0xff]
  %v335 = vld [vmem:[%s1 + $0x840] sm:$0xff]
  %v336 = vld [vmem:[%s1 + $0x848] sm:$0xff]
  %v337 = vld [vmem:[%s1 + $0x850] sm:$0xff]
  %v338 = vld [vmem:[%s1 + $0x858] sm:$0xff]
  %v339 = vld [vmem:[%s1 + $0x860] sm:$0xff]
  %v340 = vld [vmem:[%s1 + $0x868] sm:$0xff]
  %v341 = vld [vmem:[%s1 + $0x870] sm:$0xff]
  %v342 = vld [vmem:[%s1 + $0x878] sm:$0xff]
  %v343 = vld [vmem:[%s1 + $0x880] sm:$0xff]
  %v344 = vld [vmem:[%s1 + $0x888] sm:$0xff]
  %v345 = vld [vmem:[%s1 + $0x890] sm:$0xff]
  %v346 = vld [vmem:[%s1 + $0x898] sm:$0xff]
  %v347 = vld [vmem:[%s1 + $0x8a0] sm:$0xff]
  %v348 = vld [vmem:[%s1 + $0x8a8] sm:$0xff]
  %v349 = vld [vmem:[%s1 + $0x8b0] sm:$0xff]
  %v350 = vld [vmem:[%s1 + $0x8b8] sm:$0xff]
  %v351 = vld [vmem:[%s1 + $0x8c0] sm:$0xff]
  %v352 = vld [vmem:[%s1 + $0x8c8] sm:$0xff]
  %v353 = vld [vmem:[%s1 + $0x8d0] sm:$0xff]
  %v354 = vld [vmem:[%s1 + $0x8d8] sm:$0xff]
  %v355 = vld [vmem:[%s1 + $0x8e0] sm:$0xff]
  %v356 = vld [vmem:[%s1 + $0x8e8] sm:$0xff]
  %v357 = vld [vmem:[%s1 + $0x8f0] sm:$0xff]
  %v358 = vld [vmem:[%s1 + $0x8f8] sm:$0xff]
  %v359 = vld [vmem:[%s1 + $0x900] sm:$0xff]
  %v360 = vld [vmem:[%s1 + $0x908] sm:$0xff]
  %v361 = vld [vmem:[%s1 + $0x910] sm:$0xff]
  %v362 = vld [vmem:[%s1 + $0x918] sm:$0xff]
  %v363 = vld [vmem:[%s1 + $0x920] sm:$0xff]
  %v364 = vld [vmem:[%s1 + $0x928] sm:$0xff]
  %v365 = vld [vmem:[%s1 + $0x930] sm:$0xff]
  %v366 = vld [vmem:[%s1 + $0x938] sm:$0xff]
  %v367 = vld [vmem:[%s1 + $0x940] sm:$0xff]
  %v368 = vld [vmem:[%s1 + $0x948] sm:$0xff]
  %v369 = vld [vmem:[%s1 + $0x950] sm:$0xff]
  %v370 = vld [vmem:[%s1 + $0x958] sm:$0xff]
  %v371 = vld [vmem:[%s1 + $0x960] sm:$0xff]
  %v372 = vld [vmem:[%s1 + $0x968] sm:$0xff]
  %v373 = vld [vmem:[%s1 + $0x970] sm:$0xff]
  %v374 = vld [vmem:[%s1 + $0x978] sm:$0xff]
  %v375 = vld [vmem:[%s1 + $0x980] sm:$0xff]
  %v376 = vld [vmem:[%s1 + $0x988] sm:$0xff]
  %v377 = vld [vmem:[%s1 + $0x990] sm:$0xff]
  %v378 = vld [vmem:[%s1 + $0x998] sm:$0xff]
  %v379 = vld [vmem:[%s1 + $0x9a0] sm:$0xff]
  %v380 = vld [vmem:[%s1 + $0x9a8] sm:$0xff]
  %v381 = vld [vmem:[%s1 + $0x9b0] sm:$0xff]
  %v382 = vld [vmem:[%s1 + $0x9b8] sm:$0xff]
  %v383 = vld [vmem:[%s1 + $0x9c0] sm:$0xff]
  %v384 = vld [vmem:[%s1 + $0x9c8] sm:$0xff]
  %v385 = vld [vmem:[%s1 + $0x9d0] sm:$0xff]
  %v386 = vld [vmem:[%s1 + $0x9d8] sm:$0xff]
  %v387 = vld [vmem:[%s1 + $0x9e0] sm:$0xff]
  %v388 = vld [vmem:[%s1 + $0x9e8] sm:$0xff]
  %v389 = vld [vmem:[%s1 + $0x9f0] sm:$0xff]
  %v390 = vld [vmem:[%s1 + $0x9f8] sm:$0xff]
  %v391 = vld [vmem:[%s1 + $0xa00] sm:$0xff]
  %v392 = vld [vmem:[%s1 + $0xa08] sm:$0xff]
  %v393 = vld [vmem:[%s1 + $0xa10] sm:$0xff]
  %v394 = vld [vmem:[%s1 + $0xa18] sm:$0xff]
  %v395 = vld [vmem:[%s1 + $0xa20] sm:$0xff]
  %v396 = vld [vmem:[%s1 + $0xa28] sm:$0xff]
  %v397 = vld [vmem:[%s1 + $0xa30] sm:$0xff]
  %v398 = vld [vmem:[%s1 + $0xa38] sm:$0xff]
  %v399 = vld [vmem:[%s1 + $0xa40] sm:$0xff]
  %v400 = vld [vmem:[%s1 + $0xa48] sm:$0xff]
  %v401 = vld [vmem:[%s1 + $0xa50] sm:$0xff]
  %v402 = vld [vmem:[%s1 + $0xa58] sm:$0xff]
  %v403 = vld [vmem:[%s1 + $0xa60] sm:$0xff]
  %v404 = vld [vmem:[%s1 + $0xa68] sm:$0xff]
  %v405 = vld [vmem:[%s1 + $0xa70] sm:$0xff]
  %v406 = vld [vmem:[%s1 + $0xa78] sm:$0xff]
  %v407 = vld [vmem:[%s1 + $0xa80] sm:$0xff]
  %v408 = vld [vmem:[%s1 + $0xa88] sm:$0xff]
  %v409 = vld [vmem:[%s1 + $0xa90] sm:$0xff]
  %v410 = vld [vmem:[%s1 + $0xa98] sm:$0xff]
  %v411 = vld [vmem:[%s1 + $0xaa0] sm:$0xff]
  %v412 = vld [vmem:[%s1 + $0xaa8] sm:$0xff]
  %v413 = vld [vmem:[%s1 + $0xab0] sm:$0xff]
  %v414 = vld [vmem:[%s1 + $0xab8] sm:$0xff]
  %v415 = vld [vmem:[%s1 + $0xac0] sm:$0xff]
  %v416 = vld [vmem:[%s1 + $0xac8] sm:$0xff]
  %v417 = vld [vmem:[%s1 + $0xad0] sm:$0xff]
  %v418 = vld [vmem:[%s1 + $0xad8] sm:$0xff]
  %v419 = vld [vmem:[%s1 + $0xae0] sm:$0xff]
  %v420 = vld [vmem:[%s1 + $0xae8] sm:$0xff]
  %v421 = vld [vmem:[%s1 + $0xaf0] sm:$0xff]
  %v422 = vld [vmem:[%s1 + $0xaf8] sm:$0xff]
  %v423 = vld [vmem:[%s1 + $0xb00] sm:$0xff]
  %v424 = vld [vmem:[%s1 + $0xb08] sm:$0xff]
  %v425 = vld [vmem:[%s1 + $0xb10] sm:$0xff]
  %v426 = vld [vmem:[%s1 + $0xb18] sm:$0xff]
  %v427 = vld [vmem:[%s1 + $0xb20] sm:$0xff]
  %v428 = vld [vmem:[%s1 + $0xb28] sm:$0xff]
  %v429 = vld [vmem:[%s1 + $0xb30] sm:$0xff]
  %v430 = vld [vmem:[%s1 + $0xb38] sm:$0xff]
  %v431 = vld [vmem:[%s1 + $0xb40] sm:$0xff]
  %v432 = vld [vmem:[%s1 + $0xb48] sm:$0xff]
  %v433 = vld [vmem:[%s1 + $0xb50] sm:$0xff]
  %v434 = vld [vmem:[%s1 + $0xb58] sm:$0xff]
  %v435 = vld [vmem:[%s1 + $0xb60] sm:$0xff]
  %v436 = vld [vmem:[%s1 + $0xb68] sm:$0xff]
  %v437 = vld [vmem:[%s1 + $0xb70] sm:$0xff]
  %v438 = vld [vmem:[%s1 + $0xb78] sm:$0xff]
  %v439 = vld [vmem:[%s1 + $0xb80] sm:$0xff]
  %v440 = vld [vmem:[%s1 + $0xb88] sm:$0xff]
  %v441 = vld [vmem:[%s1 + $0xb90] sm:$0xff]
  %v442 = vld [vmem:[%s1 + $0xb98] sm:$0xff]
  %v443 = vld [vmem:[%s1 + $0xba0] sm:$0xff]
  %v444 = vld [vmem:[%s1 + $0xba8] sm:$0xff]
  %v445 = vld [vmem:[%s1 + $0xbb0] sm:$0xff]
  %v446 = vld [vmem:[%s1 + $0xbb8] sm:$0xff]
  %v447 = vld [vmem:[%s1 + $0xbc0] sm:$0xff]
  %v448 = vld [vmem:[%s1 + $0xbc8] sm:$0xff]
  %v449 = vld [vmem:[%s1 + $0xbd0] sm:$0xff]
  %v450 = vld [vmem:[%s1 + $0xbd8] sm:$0xff]
  %v451 = vld [vmem:[%s1 + $0xbe0] sm:$0xff]
  %v452 = vld [vmem:[%s1 + $0xbe8] sm:$0xff]
  %v453 = vld [vmem:[%s1 + $0xbf0] sm:$0xff]
  %v454 = vld [vmem:[%s1 + $0xbf8] sm:$0xff]
  %v455 = vld [vmem:[%s2] sm:$0xff]
  %v457 = vlaneseq
  %v458 = vshrl.u32 %v457, 7
  %v459 = vsub.s32 0, %v458
  %v460 = vrot.slane %v455, %v459
  %v461 = vlaneseq
  %v462 = vshrl.u32 %v461, 7
  %v463 = vsub.s32 1, %v462
  %v464 = vrot.slane %v455, %v463
  %v465 = vlaneseq
  %v466 = vshrl.u32 %v465, 7
  %v467 = vsub.s32 2, %v466
  %v468 = vrot.slane %v455, %v467
  %v469 = vlaneseq
  %v470 = vshrl.u32 %v469, 7
  %v471 = vsub.s32 3, %v470
  %v472 = vrot.slane %v455, %v471
  %v473 = vlaneseq
  %v474 = vshrl.u32 %v473, 7
  %v475 = vsub.s32 4, %v474
  %v476 = vrot.slane %v455, %v475
  %v477 = vlaneseq
  %v478 = vshrl.u32 %v477, 7
  %v479 = vsub.s32 5, %v478
  %v480 = vrot.slane %v455, %v479
  %v481 = vlaneseq
  %v482 = vshrl.u32 %v481, 7
  %v483 = vsub.s32 6, %v482
  %v484 = vrot.slane %v455, %v483
  %v485 = vlaneseq
  %v486 = vshrl.u32 %v485, 7
  %v487 = vsub.s32 7, %v486
  %v488 = vrot.slane %v455, %v487
  %v881 = vunpack.c.l.b16 %v71
  %v882 = vunpack.c.h.b16 %v71
  %v883 = vunpack.c.l.b16 %v72
  %v884 = vunpack.c.h.b16 %v72
  %v885 = vunpack.c.l.b16 %v73
  %v886 = vunpack.c.h.b16 %v73
  %v887 = vunpack.c.l.b16 %v74
  %v888 = vunpack.c.h.b16 %v74
  %v889 = vunpack.c.l.b16 %v75
  %v890 = vunpack.c.h.b16 %v75
  %v891 = vunpack.c.l.b16 %v76
  %v892 = vunpack.c.h.b16 %v76
  %v893 = vunpack.c.l.b16 %v77
  %v894 = vunpack.c.h.b16 %v77
  %v895 = vunpack.c.l.b16 %v78
  %v896 = vunpack.c.h.b16 %v78
  %v897 = vunpack.c.l.b16 %v79
  %v898 = vunpack.c.h.b16 %v79
  %v899 = vunpack.c.l.b16 %v80
  %v900 = vunpack.c.h.b16 %v80
  %v901 = vunpack.c.l.b16 %v81
  %v902 = vunpack.c.h.b16 %v81
  %v903 = vunpack.c.l.b16 %v82
  %v904 = vunpack.c.h.b16 %v82
  %v905 = vunpack.c.l.b16 %v83
  %v906 = vunpack.c.h.b16 %v83
  %v907 = vunpack.c.l.b16 %v84
  %v908 = vunpack.c.h.b16 %v84
  %v909 = vunpack.c.l.b16 %v85
  %v910 = vunpack.c.h.b16 %v85
  %v911 = vunpack.c.l.b16 %v86
  %v912 = vunpack.c.h.b16 %v86
  %v913 = vunpack.c.l.b16 %v87
  %v914 = vunpack.c.h.b16 %v87
  %v915 = vunpack.c.l.b16 %v88
  %v916 = vunpack.c.h.b16 %v88
  %v917 = vunpack.c.l.b16 %v89
  %v918 = vunpack.c.h.b16 %v89
  %v919 = vunpack.c.l.b16 %v90
  %v920 = vunpack.c.h.b16 %v90
  %v921 = vunpack.c.l.b16 %v91
  %v922 = vunpack.c.h.b16 %v91
  %v923 = vunpack.c.l.b16 %v92
  %v924 = vunpack.c.h.b16 %v92
  %v925 = vunpack.c.l.b16 %v93
  %v926 = vunpack.c.h.b16 %v93
  %v927 = vunpack.c.l.b16 %v94
  %v928 = vunpack.c.h.b16 %v94
  %v929 = vunpack.c.l.b16 %v95
  %v930 = vunpack.c.h.b16 %v95
  %v931 = vunpack.c.l.b16 %v96
  %v932 = vunpack.c.h.b16 %v96
  %v933 = vunpack.c.l.b16 %v97
  %v934 = vunpack.c.h.b16 %v97
  %v935 = vunpack.c.l.b16 %v98
  %v936 = vunpack.c.h.b16 %v98
  %v937 = vunpack.c.l.b16 %v99
  %v938 = vunpack.c.h.b16 %v99
  %v939 = vunpack.c.l.b16 %v100
  %v940 = vunpack.c.h.b16 %v100
  %v941 = vunpack.c.l.b16 %v101
  %v942 = vunpack.c.h.b16 %v101
  %v943 = vunpack.c.l.b16 %v102
  %v944 = vunpack.c.h.b16 %v102
  %v945 = vunpack.c.l.b16 %v103
  %v946 = vunpack.c.h.b16 %v103
  %v947 = vunpack.c.l.b16 %v104
  %v948 = vunpack.c.h.b16 %v104
  %v949 = vunpack.c.l.b16 %v105
  %v950 = vunpack.c.h.b16 %v105
  %v951 = vunpack.c.l.b16 %v106
  %v952 = vunpack.c.h.b16 %v106
  %v953 = vunpack.c.l.b16 %v107
  %v954 = vunpack.c.h.b16 %v107
  %v955 = vunpack.c.l.b16 %v108
  %v956 = vunpack.c.h.b16 %v108
  %v957 = vunpack.c.l.b16 %v109
  %v958 = vunpack.c.h.b16 %v109
  %v959 = vunpack.c.l.b16 %v110
  %v960 = vunpack.c.h.b16 %v110
  %v961 = vunpack.c.l.b16 %v111
  %v962 = vunpack.c.h.b16 %v111
  %v963 = vunpack.c.l.b16 %v112
  %v964 = vunpack.c.h.b16 %v112
  %v965 = vunpack.c.l.b16 %v113
  %v966 = vunpack.c.h.b16 %v113
  %v967 = vunpack.c.l.b16 %v114
  %v968 = vunpack.c.h.b16 %v114
  %v969 = vunpack.c.l.b16 %v115
  %v970 = vunpack.c.h.b16 %v115
  %v971 = vunpack.c.l.b16 %v116
  %v972 = vunpack.c.h.b16 %v116
  %v973 = vunpack.c.l.b16 %v117
  %v974 = vunpack.c.h.b16 %v117
  %v975 = vunpack.c.l.b16 %v118
  %v976 = vunpack.c.h.b16 %v118
  %v977 = vunpack.c.l.b16 %v119
  %v978 = vunpack.c.h.b16 %v119
  %v979 = vunpack.c.l.b16 %v120
  %v980 = vunpack.c.h.b16 %v120
  %v981 = vunpack.c.l.b16 %v121
  %v982 = vunpack.c.h.b16 %v121
  %v983 = vunpack.c.l.b16 %v122
  %v984 = vunpack.c.h.b16 %v122
  %v985 = vunpack.c.l.b16 %v123
  %v986 = vunpack.c.h.b16 %v123
  %v987 = vunpack.c.l.b16 %v124
  %v988 = vunpack.c.h.b16 %v124
  %v989 = vunpack.c.l.b16 %v125
  %v990 = vunpack.c.h.b16 %v125
  %v991 = vunpack.c.l.b16 %v126
  %v992 = vunpack.c.h.b16 %v126
  %v993 = vunpack.c.l.b16 %v127
  %v994 = vunpack.c.h.b16 %v127
  %v995 = vunpack.c.l.b16 %v128
  %v996 = vunpack.c.h.b16 %v128
  %v997 = vunpack.c.l.b16 %v129
  %v998 = vunpack.c.h.b16 %v129
  %v999 = vunpack.c.l.b16 %v130
  %v1000 = vunpack.c.h.b16 %v130
  %v1001 = vunpack.c.l.b16 %v131
  %v1002 = vunpack.c.h.b16 %v131
  %v1003 = vunpack.c.l.b16 %v132
  %v1004 = vunpack.c.h.b16 %v132
  %v1005 = vunpack.c.l.b16 %v133
  %v1006 = vunpack.c.h.b16 %v133
  %v1007 = vunpack.c.l.b16 %v134
  %v1008 = vunpack.c.h.b16 %v134
  %v1009 = vunpack.c.l.b16 %v135
  %v1010 = vunpack.c.h.b16 %v135
  %v1011 = vunpack.c.l.b16 %v136
  %v1012 = vunpack.c.h.b16 %v136
  %v1013 = vunpack.c.l.b16 %v137
  %v1014 = vunpack.c.h.b16 %v137
  %v1015 = vunpack.c.l.b16 %v138
  %v1016 = vunpack.c.h.b16 %v138
  %v1017 = vunpack.c.l.b16 %v139
  %v1018 = vunpack.c.h.b16 %v139
  %v1019 = vunpack.c.l.b16 %v140
  %v1020 = vunpack.c.h.b16 %v140
  %v1021 = vunpack.c.l.b16 %v141
  %v1022 = vunpack.c.h.b16 %v141
  %v1023 = vunpack.c.l.b16 %v142
  %v1024 = vunpack.c.h.b16 %v142
  %v1025 = vunpack.c.l.b16 %v143
  %v1026 = vunpack.c.h.b16 %v143
  %v1027 = vunpack.c.l.b16 %v144
  %v1028 = vunpack.c.h.b16 %v144
  %v1029 = vunpack.c.l.b16 %v145
  %v1030 = vunpack.c.h.b16 %v145
  %v1031 = vunpack.c.l.b16 %v146
  %v1032 = vunpack.c.h.b16 %v146
  %v1033 = vunpack.c.l.b16 %v147
  %v1034 = vunpack.c.h.b16 %v147
  %v1035 = vunpack.c.l.b16 %v148
  %v1036 = vunpack.c.h.b16 %v148
  %v1037 = vunpack.c.l.b16 %v149
  %v1038 = vunpack.c.h.b16 %v149
  %v1039 = vunpack.c.l.b16 %v150
  %v1040 = vunpack.c.h.b16 %v150
  %v1041 = vunpack.c.l.b16 %v151
  %v1042 = vunpack.c.h.b16 %v151
  %v1043 = vunpack.c.l.b16 %v152
  %v1044 = vunpack.c.h.b16 %v152
  %v1045 = vunpack.c.l.b16 %v153
  %v1046 = vunpack.c.h.b16 %v153
  %v1047 = vunpack.c.l.b16 %v154
  %v1048 = vunpack.c.h.b16 %v154
  %v1049 = vunpack.c.l.b16 %v155
  %v1050 = vunpack.c.h.b16 %v155
  %v1051 = vunpack.c.l.b16 %v156
  %v1052 = vunpack.c.h.b16 %v156
  %v1053 = vunpack.c.l.b16 %v157
  %v1054 = vunpack.c.h.b16 %v157
  %v1055 = vunpack.c.l.b16 %v158
  %v1056 = vunpack.c.h.b16 %v158
  %v1057 = vunpack.c.l.b16 %v159
  %v1058 = vunpack.c.h.b16 %v159
  %v1059 = vunpack.c.l.b16 %v160
  %v1060 = vunpack.c.h.b16 %v160
  %v1061 = vunpack.c.l.b16 %v161
  %v1062 = vunpack.c.h.b16 %v161
  %v1063 = vunpack.c.l.b16 %v162
  %v1064 = vunpack.c.h.b16 %v162
  %v1065 = vunpack.c.l.b16 %v163
  %v1066 = vunpack.c.h.b16 %v163
  %v1067 = vunpack.c.l.b16 %v164
  %v1068 = vunpack.c.h.b16 %v164
  %v1069 = vunpack.c.l.b16 %v165
  %v1070 = vunpack.c.h.b16 %v165
  %v1071 = vunpack.c.l.b16 %v166
  %v1072 = vunpack.c.h.b16 %v166
  %v1073 = vunpack.c.l.b16 %v167
  %v1074 = vunpack.c.h.b16 %v167
  %v1075 = vunpack.c.l.b16 %v168
  %v1076 = vunpack.c.h.b16 %v168
  %v1077 = vunpack.c.l.b16 %v169
  %v1078 = vunpack.c.h.b16 %v169
  %v1079 = vunpack.c.l.b16 %v170
  %v1080 = vunpack.c.h.b16 %v170
  %v1081 = vunpack.c.l.b16 %v171
  %v1082 = vunpack.c.h.b16 %v171
  %v1083 = vunpack.c.l.b16 %v172
  %v1084 = vunpack.c.h.b16 %v172
  %v1085 = vunpack.c.l.b16 %v173
  %v1086 = vunpack.c.h.b16 %v173
  %v1087 = vunpack.c.l.b16 %v174
  %v1088 = vunpack.c.h.b16 %v174
  %v1089 = vunpack.c.l.b16 %v175
  %v1090 = vunpack.c.h.b16 %v175
  %v1091 = vunpack.c.l.b16 %v176
  %v1092 = vunpack.c.h.b16 %v176
  %v1093 = vunpack.c.l.b16 %v177
  %v1094 = vunpack.c.h.b16 %v177
  %v1095 = vunpack.c.l.b16 %v178
  %v1096 = vunpack.c.h.b16 %v178
  %v1097 = vunpack.c.l.b16 %v179
  %v1098 = vunpack.c.h.b16 %v179
  %v1099 = vunpack.c.l.b16 %v180
  %v1100 = vunpack.c.h.b16 %v180
  %v1101 = vunpack.c.l.b16 %v181
  %v1102 = vunpack.c.h.b16 %v181
  %v1103 = vunpack.c.l.b16 %v182
  %v1104 = vunpack.c.h.b16 %v182
  %v1105 = vunpack.c.l.b16 %v183
  %v1106 = vunpack.c.h.b16 %v183
  %v1107 = vunpack.c.l.b16 %v184
  %v1108 = vunpack.c.h.b16 %v184
  %v1109 = vunpack.c.l.b16 %v185
  %v1110 = vunpack.c.h.b16 %v185
  %v1111 = vunpack.c.l.b16 %v186
  %v1112 = vunpack.c.h.b16 %v186
  %v1113 = vunpack.c.l.b16 %v187
  %v1114 = vunpack.c.h.b16 %v187
  %v1115 = vunpack.c.l.b16 %v188
  %v1116 = vunpack.c.h.b16 %v188
  %v1117 = vunpack.c.l.b16 %v189
  %v1118 = vunpack.c.h.b16 %v189
  %v1119 = vunpack.c.l.b16 %v190
  %v1120 = vunpack.c.h.b16 %v190
  %v1121 = vunpack.c.l.b16 %v191
  %v1122 = vunpack.c.h.b16 %v191
  %v1123 = vunpack.c.l.b16 %v192
  %v1124 = vunpack.c.h.b16 %v192
  %v1125 = vunpack.c.l.b16 %v193
  %v1126 = vunpack.c.h.b16 %v193
  %v1127 = vunpack.c.l.b16 %v194
  %v1128 = vunpack.c.h.b16 %v194
  %v1129 = vunpack.c.l.b16 %v195
  %v1130 = vunpack.c.h.b16 %v195
  %v1131 = vunpack.c.l.b16 %v196
  %v1132 = vunpack.c.h.b16 %v196
  %v1133 = vunpack.c.l.b16 %v197
  %v1134 = vunpack.c.h.b16 %v197
  %v1135 = vunpack.c.l.b16 %v198
  %v1136 = vunpack.c.h.b16 %v198
  %v1137 = vunpack.c.l.b16 %v199
  %v1138 = vunpack.c.h.b16 %v199
  %v1139 = vunpack.c.l.b16 %v200
  %v1140 = vunpack.c.h.b16 %v200
  %v1141 = vunpack.c.l.b16 %v201
  %v1142 = vunpack.c.h.b16 %v201
  %v1143 = vunpack.c.l.b16 %v202
  %v1144 = vunpack.c.h.b16 %v202
  %v1145 = vunpack.c.l.b16 %v203
  %v1146 = vunpack.c.h.b16 %v203
  %v1147 = vunpack.c.l.b16 %v204
  %v1148 = vunpack.c.h.b16 %v204
  %v1149 = vunpack.c.l.b16 %v205
  %v1150 = vunpack.c.h.b16 %v205
  %v1151 = vunpack.c.l.b16 %v206
  %v1152 = vunpack.c.h.b16 %v206
  %v1153 = vunpack.c.l.b16 %v207
  %v1154 = vunpack.c.h.b16 %v207
  %v1155 = vunpack.c.l.b16 %v208
  %v1156 = vunpack.c.h.b16 %v208
  %v1157 = vunpack.c.l.b16 %v209
  %v1158 = vunpack.c.h.b16 %v209
  %v1159 = vunpack.c.l.b16 %v210
  %v1160 = vunpack.c.h.b16 %v210
  %v1161 = vunpack.c.l.b16 %v211
  %v1162 = vunpack.c.h.b16 %v211
  %v1163 = vunpack.c.l.b16 %v212
  %v1164 = vunpack.c.h.b16 %v212
  %v1165 = vunpack.c.l.b16 %v213
  %v1166 = vunpack.c.h.b16 %v213
  %v1167 = vunpack.c.l.b16 %v214
  %v1168 = vunpack.c.h.b16 %v214
  %v1169 = vunpack.c.l.b16 %v215
  %v1170 = vunpack.c.h.b16 %v215
  %v1171 = vunpack.c.l.b16 %v216
  %v1172 = vunpack.c.h.b16 %v216
  %v1173 = vunpack.c.l.b16 %v217
  %v1174 = vunpack.c.h.b16 %v217
  %v1175 = vunpack.c.l.b16 %v218
  %v1176 = vunpack.c.h.b16 %v218
  %v1177 = vunpack.c.l.b16 %v219
  %v1178 = vunpack.c.h.b16 %v219
  %v1179 = vunpack.c.l.b16 %v220
  %v1180 = vunpack.c.h.b16 %v220
  %v1181 = vunpack.c.l.b16 %v221
  %v1182 = vunpack.c.h.b16 %v221
  %v1183 = vunpack.c.l.b16 %v222
  %v1184 = vunpack.c.h.b16 %v222
  %v1185 = vunpack.c.l.b16 %v223
  %v1186 = vunpack.c.h.b16 %v223
  %v1187 = vunpack.c.l.b16 %v224
  %v1188 = vunpack.c.h.b16 %v224
  %v1189 = vunpack.c.l.b16 %v225
  %v1190 = vunpack.c.h.b16 %v225
  %v1191 = vunpack.c.l.b16 %v226
  %v1192 = vunpack.c.h.b16 %v226
  %v1193 = vunpack.c.l.b16 %v227
  %v1194 = vunpack.c.h.b16 %v227
  %v1195 = vunpack.c.l.b16 %v228
  %v1196 = vunpack.c.h.b16 %v228
  %v1197 = vunpack.c.l.b16 %v229
  %v1198 = vunpack.c.h.b16 %v229
  %v1199 = vunpack.c.l.b16 %v230
  %v1200 = vunpack.c.h.b16 %v230
  %v1201 = vunpack.c.l.b16 %v231
  %v1202 = vunpack.c.h.b16 %v231
  %v1203 = vunpack.c.l.b16 %v232
  %v1204 = vunpack.c.h.b16 %v232
  %v1205 = vunpack.c.l.b16 %v233
  %v1206 = vunpack.c.h.b16 %v233
  %v1207 = vunpack.c.l.b16 %v234
  %v1208 = vunpack.c.h.b16 %v234
  %v1209 = vunpack.c.l.b16 %v235
  %v1210 = vunpack.c.h.b16 %v235
  %v1211 = vunpack.c.l.b16 %v236
  %v1212 = vunpack.c.h.b16 %v236
  %v1213 = vunpack.c.l.b16 %v237
  %v1214 = vunpack.c.h.b16 %v237
  %v1215 = vunpack.c.l.b16 %v238
  %v1216 = vunpack.c.h.b16 %v238
  %v1217 = vunpack.c.l.b16 %v239
  %v1218 = vunpack.c.h.b16 %v239
  %v1219 = vunpack.c.l.b16 %v240
  %v1220 = vunpack.c.h.b16 %v240
  %v1221 = vunpack.c.l.b16 %v241
  %v1222 = vunpack.c.h.b16 %v241
  %v1223 = vunpack.c.l.b16 %v242
  %v1224 = vunpack.c.h.b16 %v242
  %v1225 = vunpack.c.l.b16 %v243
  %v1226 = vunpack.c.h.b16 %v243
  %v1227 = vunpack.c.l.b16 %v244
  %v1228 = vunpack.c.h.b16 %v244
  %v1229 = vunpack.c.l.b16 %v245
  %v1230 = vunpack.c.h.b16 %v245
  %v1231 = vunpack.c.l.b16 %v246
  %v1232 = vunpack.c.h.b16 %v246
  %v1233 = vunpack.c.l.b16 %v247
  %v1234 = vunpack.c.h.b16 %v247
  %v1235 = vunpack.c.l.b16 %v248
  %v1236 = vunpack.c.h.b16 %v248
  %v1237 = vunpack.c.l.b16 %v249
  %v1238 = vunpack.c.h.b16 %v249
  %v1239 = vunpack.c.l.b16 %v250
  %v1240 = vunpack.c.h.b16 %v250
  %v1241 = vunpack.c.l.b16 %v251
  %v1242 = vunpack.c.h.b16 %v251
  %v1243 = vunpack.c.l.b16 %v252
  %v1244 = vunpack.c.h.b16 %v252
  %v1245 = vunpack.c.l.b16 %v253
  %v1246 = vunpack.c.h.b16 %v253
  %v1247 = vunpack.c.l.b16 %v254
  %v1248 = vunpack.c.h.b16 %v254
  %v1249 = vunpack.c.l.b16 %v255
  %v1250 = vunpack.c.h.b16 %v255
  %v1251 = vunpack.c.l.b16 %v256
  %v1252 = vunpack.c.h.b16 %v256
  %v1253 = vunpack.c.l.b16 %v257
  %v1254 = vunpack.c.h.b16 %v257
  %v1255 = vunpack.c.l.b16 %v258
  %v1256 = vunpack.c.h.b16 %v258
  %v1257 = vunpack.c.l.b16 %v259
  %v1258 = vunpack.c.h.b16 %v259
  %v1259 = vunpack.c.l.b16 %v260
  %v1260 = vunpack.c.h.b16 %v260
  %v1261 = vunpack.c.l.b16 %v261
  %v1262 = vunpack.c.h.b16 %v261
  %v1263 = vunpack.c.l.b16 %v262
  %v1264 = vunpack.c.h.b16 %v262
  %v1265 = vunpack.c.l.b16 %v263
  %v1266 = vunpack.c.h.b16 %v263
  %v1267 = vunpack.c.l.b16 %v264
  %v1268 = vunpack.c.h.b16 %v264
  %v1269 = vunpack.c.l.b16 %v265
  %v1270 = vunpack.c.h.b16 %v265
  %v1271 = vunpack.c.l.b16 %v266
  %v1272 = vunpack.c.h.b16 %v266
  %v1273 = vunpack.c.l.b16 %v267
  %v1274 = vunpack.c.h.b16 %v267
  %v1275 = vunpack.c.l.b16 %v268
  %v1276 = vunpack.c.h.b16 %v268
  %v1277 = vunpack.c.l.b16 %v269
  %v1278 = vunpack.c.h.b16 %v269
  %v1279 = vunpack.c.l.b16 %v270
  %v1280 = vunpack.c.h.b16 %v270
  %v1281 = vunpack.c.l.b16 %v271
  %v1282 = vunpack.c.h.b16 %v271
  %v1283 = vunpack.c.l.b16 %v272
  %v1284 = vunpack.c.h.b16 %v272
  %v1285 = vunpack.c.l.b16 %v273
  %v1286 = vunpack.c.h.b16 %v273
  %v1287 = vunpack.c.l.b16 %v274
  %v1288 = vunpack.c.h.b16 %v274
  %v1289 = vunpack.c.l.b16 %v275
  %v1290 = vunpack.c.h.b16 %v275
  %v1291 = vunpack.c.l.b16 %v276
  %v1292 = vunpack.c.h.b16 %v276
  %v1293 = vunpack.c.l.b16 %v277
  %v1294 = vunpack.c.h.b16 %v277
  %v1295 = vunpack.c.l.b16 %v278
  %v1296 = vunpack.c.h.b16 %v278
  %v1297 = vunpack.c.l.b16 %v279
  %v1298 = vunpack.c.h.b16 %v279
  %v1299 = vunpack.c.l.b16 %v280
  %v1300 = vunpack.c.h.b16 %v280
  %v1301 = vunpack.c.l.b16 %v281
  %v1302 = vunpack.c.h.b16 %v281
  %v1303 = vunpack.c.l.b16 %v282
  %v1304 = vunpack.c.h.b16 %v282
  %v1305 = vunpack.c.l.b16 %v283
  %v1306 = vunpack.c.h.b16 %v283
  %v1307 = vunpack.c.l.b16 %v284
  %v1308 = vunpack.c.h.b16 %v284
  %v1309 = vunpack.c.l.b16 %v285
  %v1310 = vunpack.c.h.b16 %v285
  %v1311 = vunpack.c.l.b16 %v286
  %v1312 = vunpack.c.h.b16 %v286
  %v1313 = vunpack.c.l.b16 %v287
  %v1314 = vunpack.c.h.b16 %v287
  %v1315 = vunpack.c.l.b16 %v288
  %v1316 = vunpack.c.h.b16 %v288
  %v1317 = vunpack.c.l.b16 %v289
  %v1318 = vunpack.c.h.b16 %v289
  %v1319 = vunpack.c.l.b16 %v290
  %v1320 = vunpack.c.h.b16 %v290
  %v1321 = vunpack.c.l.b16 %v291
  %v1322 = vunpack.c.h.b16 %v291
  %v1323 = vunpack.c.l.b16 %v292
  %v1324 = vunpack.c.h.b16 %v292
  %v1325 = vunpack.c.l.b16 %v293
  %v1326 = vunpack.c.h.b16 %v293
  %v1327 = vunpack.c.l.b16 %v294
  %v1328 = vunpack.c.h.b16 %v294
  %v1329 = vunpack.c.l.b16 %v295
  %v1330 = vunpack.c.h.b16 %v295
  %v1331 = vunpack.c.l.b16 %v296
  %v1332 = vunpack.c.h.b16 %v296
  %v1333 = vunpack.c.l.b16 %v297
  %v1334 = vunpack.c.h.b16 %v297
  %v1335 = vunpack.c.l.b16 %v298
  %v1336 = vunpack.c.h.b16 %v298
  %v1337 = vunpack.c.l.b16 %v299
  %v1338 = vunpack.c.h.b16 %v299
  %v1339 = vunpack.c.l.b16 %v300
  %v1340 = vunpack.c.h.b16 %v300
  %v1341 = vunpack.c.l.b16 %v301
  %v1342 = vunpack.c.h.b16 %v301
  %v1343 = vunpack.c.l.b16 %v302
  %v1344 = vunpack.c.h.b16 %v302
  %v1345 = vunpack.c.l.b16 %v303
  %v1346 = vunpack.c.h.b16 %v303
  %v1347 = vunpack.c.l.b16 %v304
  %v1348 = vunpack.c.h.b16 %v304
  %v1349 = vunpack.c.l.b16 %v305
  %v1350 = vunpack.c.h.b16 %v305
  %v1351 = vunpack.c.l.b16 %v306
  %v1352 = vunpack.c.h.b16 %v306
  %v1353 = vunpack.c.l.b16 %v307
  %v1354 = vunpack.c.h.b16 %v307
  %v1355 = vunpack.c.l.b16 %v308
  %v1356 = vunpack.c.h.b16 %v308
  %v1357 = vunpack.c.l.b16 %v309
  %v1358 = vunpack.c.h.b16 %v309
  %v1359 = vunpack.c.l.b16 %v310
  %v1360 = vunpack.c.h.b16 %v310
  %v1361 = vunpack.c.l.b16 %v311
  %v1362 = vunpack.c.h.b16 %v311
  %v1363 = vunpack.c.l.b16 %v312
  %v1364 = vunpack.c.h.b16 %v312
  %v1365 = vunpack.c.l.b16 %v313
  %v1366 = vunpack.c.h.b16 %v313
  %v1367 = vunpack.c.l.b16 %v314
  %v1368 = vunpack.c.h.b16 %v314
  %v1369 = vunpack.c.l.b16 %v315
  %v1370 = vunpack.c.h.b16 %v315
  %v1371 = vunpack.c.l.b16 %v316
  %v1372 = vunpack.c.h.b16 %v316
  %v1373 = vunpack.c.l.b16 %v317
  %v1374 = vunpack.c.h.b16 %v317
  %v1375 = vunpack.c.l.b16 %v318
  %v1376 = vunpack.c.h.b16 %v318
  %v1377 = vunpack.c.l.b16 %v319
  %v1378 = vunpack.c.h.b16 %v319
  %v1379 = vunpack.c.l.b16 %v320
  %v1380 = vunpack.c.h.b16 %v320
  %v1381 = vunpack.c.l.b16 %v321
  %v1382 = vunpack.c.h.b16 %v321
  %v1383 = vunpack.c.l.b16 %v322
  %v1384 = vunpack.c.h.b16 %v322
  %v1385 = vunpack.c.l.b16 %v323
  %v1386 = vunpack.c.h.b16 %v323
  %v1387 = vunpack.c.l.b16 %v324
  %v1388 = vunpack.c.h.b16 %v324
  %v1389 = vunpack.c.l.b16 %v325
  %v1390 = vunpack.c.h.b16 %v325
  %v1391 = vunpack.c.l.b16 %v326
  %v1392 = vunpack.c.h.b16 %v326
  %v1393 = vunpack.c.l.b16 %v327
  %v1394 = vunpack.c.h.b16 %v327
  %v1395 = vunpack.c.l.b16 %v328
  %v1396 = vunpack.c.h.b16 %v328
  %v1397 = vunpack.c.l.b16 %v329
  %v1398 = vunpack.c.h.b16 %v329
  %v1399 = vunpack.c.l.b16 %v330
  %v1400 = vunpack.c.h.b16 %v330
  %v1401 = vunpack.c.l.b16 %v331
  %v1402 = vunpack.c.h.b16 %v331
  %v1403 = vunpack.c.l.b16 %v332
  %v1404 = vunpack.c.h.b16 %v332
  %v1405 = vunpack.c.l.b16 %v333
  %v1406 = vunpack.c.h.b16 %v333
  %v1407 = vunpack.c.l.b16 %v334
  %v1408 = vunpack.c.h.b16 %v334
  %v1409 = vunpack.c.l.b16 %v335
  %v1410 = vunpack.c.h.b16 %v335
  %v1411 = vunpack.c.l.b16 %v336
  %v1412 = vunpack.c.h.b16 %v336
  %v1413 = vunpack.c.l.b16 %v337
  %v1414 = vunpack.c.h.b16 %v337
  %v1415 = vunpack.c.l.b16 %v338
  %v1416 = vunpack.c.h.b16 %v338
  %v1417 = vunpack.c.l.b16 %v339
  %v1418 = vunpack.c.h.b16 %v339
  %v1419 = vunpack.c.l.b16 %v340
  %v1420 = vunpack.c.h.b16 %v340
  %v1421 = vunpack.c.l.b16 %v341
  %v1422 = vunpack.c.h.b16 %v341
  %v1423 = vunpack.c.l.b16 %v342
  %v1424 = vunpack.c.h.b16 %v342
  %v1425 = vunpack.c.l.b16 %v343
  %v1426 = vunpack.c.h.b16 %v343
  %v1427 = vunpack.c.l.b16 %v344
  %v1428 = vunpack.c.h.b16 %v344
  %v1429 = vunpack.c.l.b16 %v345
  %v1430 = vunpack.c.h.b16 %v345
  %v1431 = vunpack.c.l.b16 %v346
  %v1432 = vunpack.c.h.b16 %v346
  %v1433 = vunpack.c.l.b16 %v347
  %v1434 = vunpack.c.h.b16 %v347
  %v1435 = vunpack.c.l.b16 %v348
  %v1436 = vunpack.c.h.b16 %v348
  %v1437 = vunpack.c.l.b16 %v349
  %v1438 = vunpack.c.h.b16 %v349
  %v1439 = vunpack.c.l.b16 %v350
  %v1440 = vunpack.c.h.b16 %v350
  %v1441 = vunpack.c.l.b16 %v351
  %v1442 = vunpack.c.h.b16 %v351
  %v1443 = vunpack.c.l.b16 %v352
  %v1444 = vunpack.c.h.b16 %v352
  %v1445 = vunpack.c.l.b16 %v353
  %v1446 = vunpack.c.h.b16 %v353
  %v1447 = vunpack.c.l.b16 %v354
  %v1448 = vunpack.c.h.b16 %v354
  %v1449 = vunpack.c.l.b16 %v355
  %v1450 = vunpack.c.h.b16 %v355
  %v1451 = vunpack.c.l.b16 %v356
  %v1452 = vunpack.c.h.b16 %v356
  %v1453 = vunpack.c.l.b16 %v357
  %v1454 = vunpack.c.h.b16 %v357
  %v1455 = vunpack.c.l.b16 %v358
  %v1456 = vunpack.c.h.b16 %v358
  %v1457 = vunpack.c.l.b16 %v359
  %v1458 = vunpack.c.h.b16 %v359
  %v1459 = vunpack.c.l.b16 %v360
  %v1460 = vunpack.c.h.b16 %v360
  %v1461 = vunpack.c.l.b16 %v361
  %v1462 = vunpack.c.h.b16 %v361
  %v1463 = vunpack.c.l.b16 %v362
  %v1464 = vunpack.c.h.b16 %v362
  %v1465 = vunpack.c.l.b16 %v363
  %v1466 = vunpack.c.h.b16 %v363
  %v1467 = vunpack.c.l.b16 %v364
  %v1468 = vunpack.c.h.b16 %v364
  %v1469 = vunpack.c.l.b16 %v365
  %v1470 = vunpack.c.h.b16 %v365
  %v1471 = vunpack.c.l.b16 %v366
  %v1472 = vunpack.c.h.b16 %v366
  %v1473 = vunpack.c.l.b16 %v367
  %v1474 = vunpack.c.h.b16 %v367
  %v1475 = vunpack.c.l.b16 %v368
  %v1476 = vunpack.c.h.b16 %v368
  %v1477 = vunpack.c.l.b16 %v369
  %v1478 = vunpack.c.h.b16 %v369
  %v1479 = vunpack.c.l.b16 %v370
  %v1480 = vunpack.c.h.b16 %v370
  %v1481 = vunpack.c.l.b16 %v371
  %v1482 = vunpack.c.h.b16 %v371
  %v1483 = vunpack.c.l.b16 %v372
  %v1484 = vunpack.c.h.b16 %v372
  %v1485 = vunpack.c.l.b16 %v373
  %v1486 = vunpack.c.h.b16 %v373
  %v1487 = vunpack.c.l.b16 %v374
  %v1488 = vunpack.c.h.b16 %v374
  %v1489 = vunpack.c.l.b16 %v375
  %v1490 = vunpack.c.h.b16 %v375
  %v1491 = vunpack.c.l.b16 %v376
  %v1492 = vunpack.c.h.b16 %v376
  %v1493 = vunpack.c.l.b16 %v377
  %v1494 = vunpack.c.h.b16 %v377
  %v1495 = vunpack.c.l.b16 %v378
  %v1496 = vunpack.c.h.b16 %v378
  %v1497 = vunpack.c.l.b16 %v379
  %v1498 = vunpack.c.h.b16 %v379
  %v1499 = vunpack.c.l.b16 %v380
  %v1500 = vunpack.c.h.b16 %v380
  %v1501 = vunpack.c.l.b16 %v381
  %v1502 = vunpack.c.h.b16 %v381
  %v1503 = vunpack.c.l.b16 %v382
  %v1504 = vunpack.c.h.b16 %v382
  %v1505 = vunpack.c.l.b16 %v383
  %v1506 = vunpack.c.h.b16 %v383
  %v1507 = vunpack.c.l.b16 %v384
  %v1508 = vunpack.c.h.b16 %v384
  %v1509 = vunpack.c.l.b16 %v385
  %v1510 = vunpack.c.h.b16 %v385
  %v1511 = vunpack.c.l.b16 %v386
  %v1512 = vunpack.c.h.b16 %v386
  %v1513 = vunpack.c.l.b16 %v387
  %v1514 = vunpack.c.h.b16 %v387
  %v1515 = vunpack.c.l.b16 %v388
  %v1516 = vunpack.c.h.b16 %v388
  %v1517 = vunpack.c.l.b16 %v389
  %v1518 = vunpack.c.h.b16 %v389
  %v1519 = vunpack.c.l.b16 %v390
  %v1520 = vunpack.c.h.b16 %v390
  %v1521 = vunpack.c.l.b16 %v391
  %v1522 = vunpack.c.h.b16 %v391
  %v1523 = vunpack.c.l.b16 %v392
  %v1524 = vunpack.c.h.b16 %v392
  %v1525 = vunpack.c.l.b16 %v393
  %v1526 = vunpack.c.h.b16 %v393
  %v1527 = vunpack.c.l.b16 %v394
  %v1528 = vunpack.c.h.b16 %v394
  %v1529 = vunpack.c.l.b16 %v395
  %v1530 = vunpack.c.h.b16 %v395
  %v1531 = vunpack.c.l.b16 %v396
  %v1532 = vunpack.c.h.b16 %v396
  %v1533 = vunpack.c.l.b16 %v397
  %v1534 = vunpack.c.h.b16 %v397
  %v1535 = vunpack.c.l.b16 %v398
  %v1536 = vunpack.c.h.b16 %v398
  %v1537 = vunpack.c.l.b16 %v399
  %v1538 = vunpack.c.h.b16 %v399
  %v1539 = vunpack.c.l.b16 %v400
  %v1540 = vunpack.c.h.b16 %v400
  %v1541 = vunpack.c.l.b16 %v401
  %v1542 = vunpack.c.h.b16 %v401
  %v1543 = vunpack.c.l.b16 %v402
  %v1544 = vunpack.c.h.b16 %v402
  %v1545 = vunpack.c.l.b16 %v403
  %v1546 = vunpack.c.h.b16 %v403
  %v1547 = vunpack.c.l.b16 %v404
  %v1548 = vunpack.c.h.b16 %v404
  %v1549 = vunpack.c.l.b16 %v405
  %v1550 = vunpack.c.h.b16 %v405
  %v1551 = vunpack.c.l.b16 %v406
  %v1552 = vunpack.c.h.b16 %v406
  %v1553 = vunpack.c.l.b16 %v407
  %v1554 = vunpack.c.h.b16 %v407
  %v1555 = vunpack.c.l.b16 %v408
  %v1556 = vunpack.c.h.b16 %v408
  %v1557 = vunpack.c.l.b16 %v409
  %v1558 = vunpack.c.h.b16 %v409
  %v1559 = vunpack.c.l.b16 %v410
  %v1560 = vunpack.c.h.b16 %v410
  %v1561 = vunpack.c.l.b16 %v411
  %v1562 = vunpack.c.h.b16 %v411
  %v1563 = vunpack.c.l.b16 %v412
  %v1564 = vunpack.c.h.b16 %v412
  %v1565 = vunpack.c.l.b16 %v413
  %v1566 = vunpack.c.h.b16 %v413
  %v1567 = vunpack.c.l.b16 %v414
  %v1568 = vunpack.c.h.b16 %v414
  %v1569 = vunpack.c.l.b16 %v415
  %v1570 = vunpack.c.h.b16 %v415
  %v1571 = vunpack.c.l.b16 %v416
  %v1572 = vunpack.c.h.b16 %v416
  %v1573 = vunpack.c.l.b16 %v417
  %v1574 = vunpack.c.h.b16 %v417
  %v1575 = vunpack.c.l.b16 %v418
  %v1576 = vunpack.c.h.b16 %v418
  %v1577 = vunpack.c.l.b16 %v419
  %v1578 = vunpack.c.h.b16 %v419
  %v1579 = vunpack.c.l.b16 %v420
  %v1580 = vunpack.c.h.b16 %v420
  %v1581 = vunpack.c.l.b16 %v421
  %v1582 = vunpack.c.h.b16 %v421
  %v1583 = vunpack.c.l.b16 %v422
  %v1584 = vunpack.c.h.b16 %v422
  %v1585 = vunpack.c.l.b16 %v423
  %v1586 = vunpack.c.h.b16 %v423
  %v1587 = vunpack.c.l.b16 %v424
  %v1588 = vunpack.c.h.b16 %v424
  %v1589 = vunpack.c.l.b16 %v425
  %v1590 = vunpack.c.h.b16 %v425
  %v1591 = vunpack.c.l.b16 %v426
  %v1592 = vunpack.c.h.b16 %v426
  %v1593 = vunpack.c.l.b16 %v427
  %v1594 = vunpack.c.h.b16 %v427
  %v1595 = vunpack.c.l.b16 %v428
  %v1596 = vunpack.c.h.b16 %v428
  %v1597 = vunpack.c.l.b16 %v429
  %v1598 = vunpack.c.h.b16 %v429
  %v1599 = vunpack.c.l.b16 %v430
  %v1600 = vunpack.c.h.b16 %v430
  %v1601 = vunpack.c.l.b16 %v431
  %v1602 = vunpack.c.h.b16 %v431
  %v1603 = vunpack.c.l.b16 %v432
  %v1604 = vunpack.c.h.b16 %v432
  %v1605 = vunpack.c.l.b16 %v433
  %v1606 = vunpack.c.h.b16 %v433
  %v1607 = vunpack.c.l.b16 %v434
  %v1608 = vunpack.c.h.b16 %v434
  %v1609 = vunpack.c.l.b16 %v435
  %v1610 = vunpack.c.h.b16 %v435
  %v1611 = vunpack.c.l.b16 %v436
  %v1612 = vunpack.c.h.b16 %v436
  %v1613 = vunpack.c.l.b16 %v437
  %v1614 = vunpack.c.h.b16 %v437
  %v1615 = vunpack.c.l.b16 %v438
  %v1616 = vunpack.c.h.b16 %v438
  %v1617 = vunpack.c.l.b16 %v439
  %v1618 = vunpack.c.h.b16 %v439
  %v1619 = vunpack.c.l.b16 %v440
  %v1620 = vunpack.c.h.b16 %v440
  %v1621 = vunpack.c.l.b16 %v441
  %v1622 = vunpack.c.h.b16 %v441
  %v1623 = vunpack.c.l.b16 %v442
  %v1624 = vunpack.c.h.b16 %v442
  %v1625 = vunpack.c.l.b16 %v443
  %v1626 = vunpack.c.h.b16 %v443
  %v1627 = vunpack.c.l.b16 %v444
  %v1628 = vunpack.c.h.b16 %v444
  %v1629 = vunpack.c.l.b16 %v445
  %v1630 = vunpack.c.h.b16 %v445
  %v1631 = vunpack.c.l.b16 %v446
  %v1632 = vunpack.c.h.b16 %v446
  %v1633 = vunpack.c.l.b16 %v447
  %v1634 = vunpack.c.h.b16 %v447
  %v1635 = vunpack.c.l.b16 %v448
  %v1636 = vunpack.c.h.b16 %v448
  %v1637 = vunpack.c.l.b16 %v449
  %v1638 = vunpack.c.h.b16 %v449
  %v1639 = vunpack.c.l.b16 %v450
  %v1640 = vunpack.c.h.b16 %v450
  %v1641 = vunpack.c.l.b16 %v451
  %v1642 = vunpack.c.h.b16 %v451
  %v1643 = vunpack.c.l.b16 %v452
  %v1644 = vunpack.c.h.b16 %v452
  %v1645 = vunpack.c.l.b16 %v453
  %v1646 = vunpack.c.h.b16 %v453
  %v1647 = vunpack.c.l.b16 %v454
  %v1648 = vunpack.c.h.b16 %v454
  %v1649 = vpack.c.b16 %v889, %v881
  %v1650 = vpack.c.b16 %v890, %v882
  %v1651 = vpack.c.b16 %v891, %v883
  %v1652 = vpack.c.b16 %v892, %v884
  %v1653 = vpack.c.b16 %v893, %v885
  %v1654 = vpack.c.b16 %v894, %v886
  %v1655 = vpack.c.b16 %v895, %v887
  %v1656 = vpack.c.b16 %v896, %v888
  %v1657 = vpack.c.b16 %v905, %v897
  %v1658 = vpack.c.b16 %v906, %v898
  %v1659 = vpack.c.b16 %v907, %v899
  %v1660 = vpack.c.b16 %v908, %v900
  %v1661 = vpack.c.b16 %v909, %v901
  %v1662 = vpack.c.b16 %v910, %v902
  %v1663 = vpack.c.b16 %v911, %v903
  %v1664 = vpack.c.b16 %v912, %v904
  %v1665 = vpack.c.b16 %v921, %v913
  %v1666 = vpack.c.b16 %v922, %v914
  %v1667 = vpack.c.b16 %v923, %v915
  %v1668 = vpack.c.b16 %v924, %v916
  %v1669 = vpack.c.b16 %v925, %v917
  %v1670 = vpack.c.b16 %v926, %v918
  %v1671 = vpack.c.b16 %v927, %v919
  %v1672 = vpack.c.b16 %v928, %v920
  %v1673 = vpack.c.b16 %v937, %v929
  %v1674 = vpack.c.b16 %v938, %v930
  %v1675 = vpack.c.b16 %v939, %v931
  %v1676 = vpack.c.b16 %v940, %v932
  %v1677 = vpack.c.b16 %v941, %v933
  %v1678 = vpack.c.b16 %v942, %v934
  %v1679 = vpack.c.b16 %v943, %v935
  %v1680 = vpack.c.b16 %v944, %v936
  %v1681 = vpack.c.b16 %v953, %v945
  %v1682 = vpack.c.b16 %v954, %v946
  %v1683 = vpack.c.b16 %v955, %v947
  %v1684 = vpack.c.b16 %v956, %v948
  %v1685 = vpack.c.b16 %v957, %v949
  %v1686 = vpack.c.b16 %v958, %v950
  %v1687 = vpack.c.b16 %v959, %v951
  %v1688 = vpack.c.b16 %v960, %v952
  %v1689 = vpack.c.b16 %v969, %v961
  %v1690 = vpack.c.b16 %v970, %v962
  %v1691 = vpack.c.b16 %v971, %v963
  %v1692 = vpack.c.b16 %v972, %v964
  %v1693 = vpack.c.b16 %v973, %v965
  %v1694 = vpack.c.b16 %v974, %v966
  %v1695 = vpack.c.b16 %v975, %v967
  %v1696 = vpack.c.b16 %v976, %v968
  %v1697 = vpack.c.b16 %v985, %v977
  %v1698 = vpack.c.b16 %v986, %v978
  %v1699 = vpack.c.b16 %v987, %v979
  %v1700 = vpack.c.b16 %v988, %v980
  %v1701 = vpack.c.b16 %v989, %v981
  %v1702 = vpack.c.b16 %v990, %v982
  %v1703 = vpack.c.b16 %v991, %v983
  %v1704 = vpack.c.b16 %v992, %v984
  %v1705 = vpack.c.b16 %v1001, %v993
  %v1706 = vpack.c.b16 %v1002, %v994
  %v1707 = vpack.c.b16 %v1003, %v995
  %v1708 = vpack.c.b16 %v1004, %v996
  %v1709 = vpack.c.b16 %v1005, %v997
  %v1710 = vpack.c.b16 %v1006, %v998
  %v1711 = vpack.c.b16 %v1007, %v999
  %v1712 = vpack.c.b16 %v1008, %v1000
  %v1713 = vpack.c.b16 %v1017, %v1009
  %v1714 = vpack.c.b16 %v1018, %v1010
  %v1715 = vpack.c.b16 %v1019, %v1011
  %v1716 = vpack.c.b16 %v1020, %v1012
  %v1717 = vpack.c.b16 %v1021, %v1013
  %v1718 = vpack.c.b16 %v1022, %v1014
  %v1719 = vpack.c.b16 %v1023, %v1015
  %v1720 = vpack.c.b16 %v1024, %v1016
  %v1721 = vpack.c.b16 %v1033, %v1025
  %v1722 = vpack.c.b16 %v1034, %v1026
  %v1723 = vpack.c.b16 %v1035, %v1027
  %v1724 = vpack.c.b16 %v1036, %v1028
  %v1725 = vpack.c.b16 %v1037, %v1029
  %v1726 = vpack.c.b16 %v1038, %v1030
  %v1727 = vpack.c.b16 %v1039, %v1031
  %v1728 = vpack.c.b16 %v1040, %v1032
  %v1729 = vpack.c.b16 %v1049, %v1041
  %v1730 = vpack.c.b16 %v1050, %v1042
  %v1731 = vpack.c.b16 %v1051, %v1043
  %v1732 = vpack.c.b16 %v1052, %v1044
  %v1733 = vpack.c.b16 %v1053, %v1045
  %v1734 = vpack.c.b16 %v1054, %v1046
  %v1735 = vpack.c.b16 %v1055, %v1047
  %v1736 = vpack.c.b16 %v1056, %v1048
  %v1737 = vpack.c.b16 %v1065, %v1057
  %v1738 = vpack.c.b16 %v1066, %v1058
  %v1739 = vpack.c.b16 %v1067, %v1059
  %v1740 = vpack.c.b16 %v1068, %v1060
  %v1741 = vpack.c.b16 %v1069, %v1061
  %v1742 = vpack.c.b16 %v1070, %v1062
  %v1743 = vpack.c.b16 %v1071, %v1063
  %v1744 = vpack.c.b16 %v1072, %v1064
  %v1745 = vpack.c.b16 %v1081, %v1073
  %v1746 = vpack.c.b16 %v1082, %v1074
  %v1747 = vpack.c.b16 %v1083, %v1075
  %v1748 = vpack.c.b16 %v1084, %v1076
  %v1749 = vpack.c.b16 %v1085, %v1077
  %v1750 = vpack.c.b16 %v1086, %v1078
  %v1751 = vpack.c.b16 %v1087, %v1079
  %v1752 = vpack.c.b16 %v1088, %v1080
  %v1753 = vpack.c.b16 %v1097, %v1089
  %v1754 = vpack.c.b16 %v1098, %v1090
  %v1755 = vpack.c.b16 %v1099, %v1091
  %v1756 = vpack.c.b16 %v1100, %v1092
  %v1757 = vpack.c.b16 %v1101, %v1093
  %v1758 = vpack.c.b16 %v1102, %v1094
  %v1759 = vpack.c.b16 %v1103, %v1095
  %v1760 = vpack.c.b16 %v1104, %v1096
  %v1761 = vpack.c.b16 %v1113, %v1105
  %v1762 = vpack.c.b16 %v1114, %v1106
  %v1763 = vpack.c.b16 %v1115, %v1107
  %v1764 = vpack.c.b16 %v1116, %v1108
  %v1765 = vpack.c.b16 %v1117, %v1109
  %v1766 = vpack.c.b16 %v1118, %v1110
  %v1767 = vpack.c.b16 %v1119, %v1111
  %v1768 = vpack.c.b16 %v1120, %v1112
  %v1769 = vpack.c.b16 %v1129, %v1121
  %v1770 = vpack.c.b16 %v1130, %v1122
  %v1771 = vpack.c.b16 %v1131, %v1123
  %v1772 = vpack.c.b16 %v1132, %v1124
  %v1773 = vpack.c.b16 %v1133, %v1125
  %v1774 = vpack.c.b16 %v1134, %v1126
  %v1775 = vpack.c.b16 %v1135, %v1127
  %v1776 = vpack.c.b16 %v1136, %v1128
  %v1777 = vpack.c.b16 %v1145, %v1137
  %v1778 = vpack.c.b16 %v1146, %v1138
  %v1779 = vpack.c.b16 %v1147, %v1139
  %v1780 = vpack.c.b16 %v1148, %v1140
  %v1781 = vpack.c.b16 %v1149, %v1141
  %v1782 = vpack.c.b16 %v1150, %v1142
  %v1783 = vpack.c.b16 %v1151, %v1143
  %v1784 = vpack.c.b16 %v1152, %v1144
  %v1785 = vpack.c.b16 %v1161, %v1153
  %v1786 = vpack.c.b16 %v1162, %v1154
  %v1787 = vpack.c.b16 %v1163, %v1155
  %v1788 = vpack.c.b16 %v1164, %v1156
  %v1789 = vpack.c.b16 %v1165, %v1157
  %v1790 = vpack.c.b16 %v1166, %v1158
  %v1791 = vpack.c.b16 %v1167, %v1159
  %v1792 = vpack.c.b16 %v1168, %v1160
  %v1793 = vpack.c.b16 %v1177, %v1169
  %v1794 = vpack.c.b16 %v1178, %v1170
  %v1795 = vpack.c.b16 %v1179, %v1171
  %v1796 = vpack.c.b16 %v1180, %v1172
  %v1797 = vpack.c.b16 %v1181, %v1173
  %v1798 = vpack.c.b16 %v1182, %v1174
  %v1799 = vpack.c.b16 %v1183, %v1175
  %v1800 = vpack.c.b16 %v1184, %v1176
  %v1801 = vpack.c.b16 %v1193, %v1185
  %v1802 = vpack.c.b16 %v1194, %v1186
  %v1803 = vpack.c.b16 %v1195, %v1187
  %v1804 = vpack.c.b16 %v1196, %v1188
  %v1805 = vpack.c.b16 %v1197, %v1189
  %v1806 = vpack.c.b16 %v1198, %v1190
  %v1807 = vpack.c.b16 %v1199, %v1191
  %v1808 = vpack.c.b16 %v1200, %v1192
  %v1809 = vpack.c.b16 %v1209, %v1201
  %v1810 = vpack.c.b16 %v1210, %v1202
  %v1811 = vpack.c.b16 %v1211, %v1203
  %v1812 = vpack.c.b16 %v1212, %v1204
  %v1813 = vpack.c.b16 %v1213, %v1205
  %v1814 = vpack.c.b16 %v1214, %v1206
  %v1815 = vpack.c.b16 %v1215, %v1207
  %v1816 = vpack.c.b16 %v1216, %v1208
  %v1817 = vpack.c.b16 %v1225, %v1217
  %v1818 = vpack.c.b16 %v1226, %v1218
  %v1819 = vpack.c.b16 %v1227, %v1219
  %v1820 = vpack.c.b16 %v1228, %v1220
  %v1821 = vpack.c.b16 %v1229, %v1221
  %v1822 = vpack.c.b16 %v1230, %v1222
  %v1823 = vpack.c.b16 %v1231, %v1223
  %v1824 = vpack.c.b16 %v1232, %v1224
  %v1825 = vpack.c.b16 %v1241, %v1233
  %v1826 = vpack.c.b16 %v1242, %v1234
  %v1827 = vpack.c.b16 %v1243, %v1235
  %v1828 = vpack.c.b16 %v1244, %v1236
  %v1829 = vpack.c.b16 %v1245, %v1237
  %v1830 = vpack.c.b16 %v1246, %v1238
  %v1831 = vpack.c.b16 %v1247, %v1239
  %v1832 = vpack.c.b16 %v1248, %v1240
  %v1833 = vpack.c.b16 %v1257, %v1249
  %v1834 = vpack.c.b16 %v1258, %v1250
  %v1835 = vpack.c.b16 %v1259, %v1251
  %v1836 = vpack.c.b16 %v1260, %v1252
  %v1837 = vpack.c.b16 %v1261, %v1253
  %v1838 = vpack.c.b16 %v1262, %v1254
  %v1839 = vpack.c.b16 %v1263, %v1255
  %v1840 = vpack.c.b16 %v1264, %v1256
  %v1841 = vpack.c.b16 %v1273, %v1265
  %v1842 = vpack.c.b16 %v1274, %v1266
  %v1843 = vpack.c.b16 %v1275, %v1267
  %v1844 = vpack.c.b16 %v1276, %v1268
  %v1845 = vpack.c.b16 %v1277, %v1269
  %v1846 = vpack.c.b16 %v1278, %v1270
  %v1847 = vpack.c.b16 %v1279, %v1271
  %v1848 = vpack.c.b16 %v1280, %v1272
  %v1849 = vpack.c.b16 %v1289, %v1281
  %v1850 = vpack.c.b16 %v1290, %v1282
  %v1851 = vpack.c.b16 %v1291, %v1283
  %v1852 = vpack.c.b16 %v1292, %v1284
  %v1853 = vpack.c.b16 %v1293, %v1285
  %v1854 = vpack.c.b16 %v1294, %v1286
  %v1855 = vpack.c.b16 %v1295, %v1287
  %v1856 = vpack.c.b16 %v1296, %v1288
  %v1857 = vpack.c.b16 %v1305, %v1297
  %v1858 = vpack.c.b16 %v1306, %v1298
  %v1859 = vpack.c.b16 %v1307, %v1299
  %v1860 = vpack.c.b16 %v1308, %v1300
  %v1861 = vpack.c.b16 %v1309, %v1301
  %v1862 = vpack.c.b16 %v1310, %v1302
  %v1863 = vpack.c.b16 %v1311, %v1303
  %v1864 = vpack.c.b16 %v1312, %v1304
  %v1865 = vpack.c.b16 %v1321, %v1313
  %v1866 = vpack.c.b16 %v1322, %v1314
  %v1867 = vpack.c.b16 %v1323, %v1315
  %v1868 = vpack.c.b16 %v1324, %v1316
  %v1869 = vpack.c.b16 %v1325, %v1317
  %v1870 = vpack.c.b16 %v1326, %v1318
  %v1871 = vpack.c.b16 %v1327, %v1319
  %v1872 = vpack.c.b16 %v1328, %v1320
  %v1873 = vpack.c.b16 %v1337, %v1329
  %v1874 = vpack.c.b16 %v1338, %v1330
  %v1875 = vpack.c.b16 %v1339, %v1331
  %v1876 = vpack.c.b16 %v1340, %v1332
  %v1877 = vpack.c.b16 %v1341, %v1333
  %v1878 = vpack.c.b16 %v1342, %v1334
  %v1879 = vpack.c.b16 %v1343, %v1335
  %v1880 = vpack.c.b16 %v1344, %v1336
  %v1881 = vpack.c.b16 %v1353, %v1345
  %v1882 = vpack.c.b16 %v1354, %v1346
  %v1883 = vpack.c.b16 %v1355, %v1347
  %v1884 = vpack.c.b16 %v1356, %v1348
  %v1885 = vpack.c.b16 %v1357, %v1349
  %v1886 = vpack.c.b16 %v1358, %v1350
  %v1887 = vpack.c.b16 %v1359, %v1351
  %v1888 = vpack.c.b16 %v1360, %v1352
  %v1889 = vpack.c.b16 %v1369, %v1361
  %v1890 = vpack.c.b16 %v1370, %v1362
  %v1891 = vpack.c.b16 %v1371, %v1363
  %v1892 = vpack.c.b16 %v1372, %v1364
  %v1893 = vpack.c.b16 %v1373, %v1365
  %v1894 = vpack.c.b16 %v1374, %v1366
  %v1895 = vpack.c.b16 %v1375, %v1367
  %v1896 = vpack.c.b16 %v1376, %v1368
  %v1897 = vpack.c.b16 %v1385, %v1377
  %v1898 = vpack.c.b16 %v1386, %v1378
  %v1899 = vpack.c.b16 %v1387, %v1379
  %v1900 = vpack.c.b16 %v1388, %v1380
  %v1901 = vpack.c.b16 %v1389, %v1381
  %v1902 = vpack.c.b16 %v1390, %v1382
  %v1903 = vpack.c.b16 %v1391, %v1383
  %v1904 = vpack.c.b16 %v1392, %v1384
  %v1905 = vpack.c.b16 %v1401, %v1393
  %v1906 = vpack.c.b16 %v1402, %v1394
  %v1907 = vpack.c.b16 %v1403, %v1395
  %v1908 = vpack.c.b16 %v1404, %v1396
  %v1909 = vpack.c.b16 %v1405, %v1397
  %v1910 = vpack.c.b16 %v1406, %v1398
  %v1911 = vpack.c.b16 %v1407, %v1399
  %v1912 = vpack.c.b16 %v1408, %v1400
  %v1913 = vpack.c.b16 %v1417, %v1409
  %v1914 = vpack.c.b16 %v1418, %v1410
  %v1915 = vpack.c.b16 %v1419, %v1411
  %v1916 = vpack.c.b16 %v1420, %v1412
  %v1917 = vpack.c.b16 %v1421, %v1413
  %v1918 = vpack.c.b16 %v1422, %v1414
  %v1919 = vpack.c.b16 %v1423, %v1415
  %v1920 = vpack.c.b16 %v1424, %v1416
  %v1921 = vpack.c.b16 %v1433, %v1425
  %v1922 = vpack.c.b16 %v1434, %v1426
  %v1923 = vpack.c.b16 %v1435, %v1427
  %v1924 = vpack.c.b16 %v1436, %v1428
  %v1925 = vpack.c.b16 %v1437, %v1429
  %v1926 = vpack.c.b16 %v1438, %v1430
  %v1927 = vpack.c.b16 %v1439, %v1431
  %v1928 = vpack.c.b16 %v1440, %v1432
  %v1929 = vpack.c.b16 %v1449, %v1441
  %v1930 = vpack.c.b16 %v1450, %v1442
  %v1931 = vpack.c.b16 %v1451, %v1443
  %v1932 = vpack.c.b16 %v1452, %v1444
  %v1933 = vpack.c.b16 %v1453, %v1445
  %v1934 = vpack.c.b16 %v1454, %v1446
  %v1935 = vpack.c.b16 %v1455, %v1447
  %v1936 = vpack.c.b16 %v1456, %v1448
  %v1937 = vpack.c.b16 %v1465, %v1457
  %v1938 = vpack.c.b16 %v1466, %v1458
  %v1939 = vpack.c.b16 %v1467, %v1459
  %v1940 = vpack.c.b16 %v1468, %v1460
  %v1941 = vpack.c.b16 %v1469, %v1461
  %v1942 = vpack.c.b16 %v1470, %v1462
  %v1943 = vpack.c.b16 %v1471, %v1463
  %v1944 = vpack.c.b16 %v1472, %v1464
  %v1945 = vpack.c.b16 %v1481, %v1473
  %v1946 = vpack.c.b16 %v1482, %v1474
  %v1947 = vpack.c.b16 %v1483, %v1475
  %v1948 = vpack.c.b16 %v1484, %v1476
  %v1949 = vpack.c.b16 %v1485, %v1477
  %v1950 = vpack.c.b16 %v1486, %v1478
  %v1951 = vpack.c.b16 %v1487, %v1479
  %v1952 = vpack.c.b16 %v1488, %v1480
  %v1953 = vpack.c.b16 %v1497, %v1489
  %v1954 = vpack.c.b16 %v1498, %v1490
  %v1955 = vpack.c.b16 %v1499, %v1491
  %v1956 = vpack.c.b16 %v1500, %v1492
  %v1957 = vpack.c.b16 %v1501, %v1493
  %v1958 = vpack.c.b16 %v1502, %v1494
  %v1959 = vpack.c.b16 %v1503, %v1495
  %v1960 = vpack.c.b16 %v1504, %v1496
  %v1961 = vpack.c.b16 %v1513, %v1505
  %v1962 = vpack.c.b16 %v1514, %v1506
  %v1963 = vpack.c.b16 %v1515, %v1507
  %v1964 = vpack.c.b16 %v1516, %v1508
  %v1965 = vpack.c.b16 %v1517, %v1509
  %v1966 = vpack.c.b16 %v1518, %v1510
  %v1967 = vpack.c.b16 %v1519, %v1511
  %v1968 = vpack.c.b16 %v1520, %v1512
  %v1969 = vpack.c.b16 %v1529, %v1521
  %v1970 = vpack.c.b16 %v1530, %v1522
  %v1971 = vpack.c.b16 %v1531, %v1523
  %v1972 = vpack.c.b16 %v1532, %v1524
  %v1973 = vpack.c.b16 %v1533, %v1525
  %v1974 = vpack.c.b16 %v1534, %v1526
  %v1975 = vpack.c.b16 %v1535, %v1527
  %v1976 = vpack.c.b16 %v1536, %v1528
  %v1977 = vpack.c.b16 %v1545, %v1537
  %v1978 = vpack.c.b16 %v1546, %v1538
  %v1979 = vpack.c.b16 %v1547, %v1539
  %v1980 = vpack.c.b16 %v1548, %v1540
  %v1981 = vpack.c.b16 %v1549, %v1541
  %v1982 = vpack.c.b16 %v1550, %v1542
  %v1983 = vpack.c.b16 %v1551, %v1543
  %v1984 = vpack.c.b16 %v1552, %v1544
  %v1985 = vpack.c.b16 %v1561, %v1553
  %v1986 = vpack.c.b16 %v1562, %v1554
  %v1987 = vpack.c.b16 %v1563, %v1555
  %v1988 = vpack.c.b16 %v1564, %v1556
  %v1989 = vpack.c.b16 %v1565, %v1557
  %v1990 = vpack.c.b16 %v1566, %v1558
  %v1991 = vpack.c.b16 %v1567, %v1559
  %v1992 = vpack.c.b16 %v1568, %v1560
  %v1993 = vpack.c.b16 %v1577, %v1569
  %v1994 = vpack.c.b16 %v1578, %v1570
  %v1995 = vpack.c.b16 %v1579, %v1571
  %v1996 = vpack.c.b16 %v1580, %v1572
  %v1997 = vpack.c.b16 %v1581, %v1573
  %v1998 = vpack.c.b16 %v1582, %v1574
  %v1999 = vpack.c.b16 %v1583, %v1575
  %v2000 = vpack.c.b16 %v1584, %v1576
  %v2001 = vpack.c.b16 %v1593, %v1585
  %v2002 = vpack.c.b16 %v1594, %v1586
  %v2003 = vpack.c.b16 %v1595, %v1587
  %v2004 = vpack.c.b16 %v1596, %v1588
  %v2005 = vpack.c.b16 %v1597, %v1589
  %v2006 = vpack.c.b16 %v1598, %v1590
  %v2007 = vpack.c.b16 %v1599, %v1591
  %v2008 = vpack.c.b16 %v1600, %v1592
  %v2009 = vpack.c.b16 %v1609, %v1601
  %v2010 = vpack.c.b16 %v1610, %v1602
  %v2011 = vpack.c.b16 %v1611, %v1603
  %v2012 = vpack.c.b16 %v1612, %v1604
  %v2013 = vpack.c.b16 %v1613, %v1605
  %v2014 = vpack.c.b16 %v1614, %v1606
  %v2015 = vpack.c.b16 %v1615, %v1607
  %v2016 = vpack.c.b16 %v1616, %v1608
  %v2017 = vpack.c.b16 %v1625, %v1617
  %v2018 = vpack.c.b16 %v1626, %v1618
  %v2019 = vpack.c.b16 %v1627, %v1619
  %v2020 = vpack.c.b16 %v1628, %v1620
  %v2021 = vpack.c.b16 %v1629, %v1621
  %v2022 = vpack.c.b16 %v1630, %v1622
  %v2023 = vpack.c.b16 %v1631, %v1623
  %v2024 = vpack.c.b16 %v1632, %v1624
  %v2025 = vpack.c.b16 %v1641, %v1633
  %v2026 = vpack.c.b16 %v1642, %v1634
  %v2027 = vpack.c.b16 %v1643, %v1635
  %v2028 = vpack.c.b16 %v1644, %v1636
  %v2029 = vpack.c.b16 %v1645, %v1637
  %v2030 = vpack.c.b16 %v1646, %v1638
  %v2031 = vpack.c.b16 %v1647, %v1639
  %v2032 = vpack.c.b16 %v1648, %v1640
  %2417 = vmatprep.subr.bf16.mxu0 %v1650
  %2418 = vmatpush1.bf16.msra.mxu0 %v1649
  %2419 = vmatprep.subr.bf16.mxu0 %v1658
  %2420 = vmatpush1.bf16.msra.mxu0 %v1657
  %2421 = vmatprep.subr.bf16.mxu0 %v1666
  %2422 = vmatpush1.bf16.msra.mxu0 %v1665
  %2423 = vmatprep.subr.bf16.mxu0 %v1674
  %2424 = vmatpush1.bf16.msra.mxu0 %v1673
  %2425 = vmatprep.subr.bf16.mxu0 %v1682
  %2426 = vmatpush1.bf16.msra.mxu0 %v1681
  %2427 = vmatprep.subr.bf16.mxu0 %v1690
  %2428 = vmatpush1.bf16.msra.mxu0 %v1689
  %2429 = vmatprep.subr.bf16.mxu0 %v1698
  %2430 = vmatpush1.bf16.msra.mxu0 %v1697
  %2431 = vmatprep.subr.bf16.mxu0 %v1706
  %2432 = vmatpush1.bf16.msra.mxu0 %v1705
  %2433 = vmatprep.subr.bf16.mxu0 %v1714
  %2434 = vmatpush1.bf16.msra.mxu0 %v1713
  %2435 = vmatprep.subr.bf16.mxu0 %v1722
  %2436 = vmatpush1.bf16.msra.mxu0 %v1721
  %2437 = vmatprep.subr.bf16.mxu0 %v1730
  %2438 = vmatpush1.bf16.msra.mxu0 %v1729
  %2439 = vmatprep.subr.bf16.mxu0 %v1738
  %2440 = vmatpush1.bf16.msra.mxu0 %v1737
  %2441 = vmatprep.subr.bf16.mxu0 %v1746
  %2442 = vmatpush1.bf16.msra.mxu0 %v1745
  %2443 = vmatprep.subr.bf16.mxu0 %v1754
  %2444 = vmatpush1.bf16.msra.mxu0 %v1753
  %2445 = vmatprep.subr.bf16.mxu0 %v1762
  %2446 = vmatpush1.bf16.msra.mxu0 %v1761
  %2447 = vmatprep.subr.bf16.mxu0 %v1770
  %2448 = vmatpush1.bf16.msra.mxu0 %v1769
  %2449 = vmatprep.mubr.bf16.mxu0 %v54
  %2450 = vmatmul.mubr.bf16.gmra.mrb[0].mxu0 %v53
  %v2451 = vpop.f32.mrb[0].mxu0
  %v2452 = vadd.f32 %v460, %v2451
  %v2453 = vpop.f32.mrb[0].mxu0
  %v2454 = vadd.f32 %v464, %v2453
  %v2455 = vpop.f32.mrb[0].mxu0
  %v2456 = vadd.f32 %v460, %v2455
  %v2457 = vpop.f32.mrb[0].mxu0
  %v2458 = vadd.f32 %v464, %v2457
  %2459 = vmatprep.mubr.bf16.mxu0 %v60
  %2460 = vmatmul.mubr.bf16.gmra.mrb[0].mxu0 %v59
  %v2461 = vpop.f32.mrb[0].mxu0
  %v2462 = vadd.f32 %v460, %v2461
  %v2463 = vpop.f32.mrb[0].mxu0
  %v2464 = vadd.f32 %v464, %v2463
  %v2465 = vpop.f32.mrb[0].mxu0
  %v2466 = vadd.f32 %v460, %v2465
  %v2467 = vpop.f32.mrb[0].mxu0
  %v2468 = vadd.f32 %v464, %v2467
  %2469 = vmatprep.mubr.bf16.mxu0 %v66
  %2470 = vmatmul.mubr.bf16.gmra.mrb[0].mxu0 %v65
  %v2471 = vpop.f32.mrb[0].mxu0
  %v2472 = vadd.f32 %v460, %v2471
  %v2473 = vpop.f32.mrb[0].mxu0
  %v2474 = vadd.f32 %v464, %v2473
  %v2475 = vpop.f32.mrb[0].mxu0
  %v2476 = vpop.f32.mrb[0].mxu0
  %2477 = vdwg.mxu0
  %2478 = vmatprep.subr.bf16.mxu0 %v1778
  %2479 = vmatpush1.bf16.msra.mxu0 %v1777
  %2480 = vmatprep.subr.bf16.mxu0 %v1786
  %2481 = vmatpush1.bf16.msra.mxu0 %v1785
  %2482 = vmatprep.subr.bf16.mxu0 %v1794
  %2483 = vmatpush1.bf16.msra.mxu0 %v1793
  %2484 = vmatprep.subr.bf16.mxu0 %v1802
  %2485 = vmatpush1.bf16.msra.mxu0 %v1801
  %2486 = vmatprep.subr.bf16.mxu0 %v1810
  %2487 = vmatpush1.bf16.msra.mxu0 %v1809
  %2488 = vmatprep.subr.bf16.mxu0 %v1818
  %2489 = vmatpush1.bf16.msra.mxu0 %v1817
  %2490 = vmatprep.subr.bf16.mxu0 %v1826
  %2491 = vmatpush1.bf16.msra.mxu0 %v1825
  %2492 = vmatprep.subr.bf16.mxu0 %v1834
  %2493 = vmatpush1.bf16.msra.mxu0 %v1833
  %2494 = vmatprep.subr.bf16.mxu0 %v1842
  %2495 = vmatpush1.bf16.msra.mxu0 %v1841
  %2496 = vmatprep.subr.bf16.mxu0 %v1850
  %2497 = vmatpush1.bf16.msra.mxu0 %v1849
  %2498 = vmatprep.subr.bf16.mxu0 %v1858
  %2499 = vmatpush1.bf16.msra.mxu0 %v1857
  %2500 = vmatprep.subr.bf16.mxu0 %v1866
  %2501 = vmatpush1.bf16.msra.mxu0 %v1865
  %2502 = vmatprep.subr.bf16.mxu0 %v1874
  %2503 = vmatpush1.bf16.msra.mxu0 %v1873
  %2504 = vmatprep.subr.bf16.mxu0 %v1882
  %2505 = vmatpush1.bf16.msra.mxu0 %v1881
  %2506 = vmatprep.subr.bf16.mxu0 %v1890
  %2507 = vmatpush1.bf16.msra.mxu0 %v1889
  %2508 = vmatprep.subr.bf16.mxu0 %v1898
  %2509 = vmatpush1.bf16.msra.mxu0 %v1897
  %2510 = vmatprep.mubr.bf16.mxu0 %v56
  %2511 = vmatmul.mubr.bf16.gmra.mrb[0].mxu0 %v55
  %v2512 = vpop.f32.mrb[0].mxu0
  %v2513 = vadd.f32 %v2452, %v2512
  %v2514 = vpop.f32.mrb[0].mxu0
  %v2515 = vadd.f32 %v2454, %v2514
  %v2516 = vpop.f32.mrb[0].mxu0
  %v2517 = vadd.f32 %v2456, %v2516
  %v2518 = vpop.f32.mrb[0].mxu0
  %v2519 = vadd.f32 %v2458, %v2518
  %2520 = vmatprep.mubr.bf16.mxu0 %v62
  %2521 = vmatmul.mubr.bf16.gmra.mrb[0].mxu0 %v61
  %v2522 = vpop.f32.mrb[0].mxu0
  %v2523 = vadd.f32 %v2462, %v2522
  %v2524 = vpop.f32.mrb[0].mxu0
  %v2525 = vadd.f32 %v2464, %v2524
  %v2526 = vpop.f32.mrb[0].mxu0
  %v2527 = vadd.f32 %v2466, %v2526
  %v2528 = vpop.f32.mrb[0].mxu0
  %v2529 = vadd.f32 %v2468, %v2528
  %2530 = vmatprep.mubr.bf16.mxu0 %v68
  %2531 = vmatmul.mubr.bf16.gmra.mrb[0].mxu0 %v67
  %v2532 = vpop.f32.mrb[0].mxu0
  %v2533 = vadd.f32 %v2472, %v2532
  %v2534 = vpop.f32.mrb[0].mxu0
  %v2535 = vadd.f32 %v2474, %v2534
  %v2536 = vpop.f32.mrb[0].mxu0
  %v2537 = vpop.f32.mrb[0].mxu0
  %2538 = vdwg.mxu0
  %2539 = vmatprep.subr.bf16.mxu0 %v1906
  %2540 = vmatpush1.bf16.msra.mxu0 %v1905
  %2541 = vmatprep.subr.bf16.mxu0 %v1914
  %2542 = vmatpush1.bf16.msra.mxu0 %v1913
  %2543 = vmatprep.subr.bf16.mxu0 %v1922
  %2544 = vmatpush1.bf16.msra.mxu0 %v1921
  %2545 = vmatprep.subr.bf16.mxu0 %v1930
  %2546 = vmatpush1.bf16.msra.mxu0 %v1929
  %2547 = vmatprep.subr.bf16.mxu0 %v1938
  %2548 = vmatpush1.bf16.msra.mxu0 %v1937
  %2549 = vmatprep.subr.bf16.mxu0 %v1946
  %2550 = vmatpush1.bf16.msra.mxu0 %v1945
  %2551 = vmatprep.subr.bf16.mxu0 %v1954
  %2552 = vmatpush1.bf16.msra.mxu0 %v1953
  %2553 = vmatprep.subr.bf16.mxu0 %v1962
  %2554 = vmatpush1.bf16.msra.mxu0 %v1961
  %2555 = vmatprep.subr.bf16.mxu0 %v1970
  %2556 = vmatpush1.bf16.msra.mxu0 %v1969
  %2557 = vmatprep.subr.bf16.mxu0 %v1978
  %2558 = vmatpush1.bf16.msra.mxu0 %v1977
  %2559 = vmatprep.subr.bf16.mxu0 %v1986
  %2560 = vmatpush1.bf16.msra.mxu0 %v1985
  %2561 = vmatprep.subr.bf16.mxu0 %v1994
  %2562 = vmatpush1.bf16.msra.mxu0 %v1993
  %2563 = vmatprep.subr.bf16.mxu0 %v2002
  %2564 = vmatpush1.bf16.msra.mxu0 %v2001
  %2565 = vmatprep.subr.bf16.mxu0 %v2010
  %2566 = vmatpush1.bf16.msra.mxu0 %v2009
  %2567 = vmatprep.subr.bf16.mxu0 %v2018
  %2568 = vmatpush1.bf16.msra.mxu0 %v2017
  %2569 = vmatprep.subr.bf16.mxu0 %v2026
  %2570 = vmatpush1.bf16.msra.mxu0 %v2025
  %2571 = vmatprep.mubr.bf16.mxu0 %v58
  %2572 = vmatmul.mubr.bf16.gmra.mrb[0].mxu0 %v57
  %v2573 = vpop.f32.mrb[0].mxu0
  %v2574 = vadd.f32 %v2513, %v2573
  %v2575 = vpop.f32.mrb[0].mxu0
  %v2576 = vadd.f32 %v2515, %v2575
  %v2577 = vpop.f32.mrb[0].mxu0
  %v2578 = vadd.f32 %v2517, %v2577
  %v2579 = vpop.f32.mrb[0].mxu0
  %v2580 = vadd.f32 %v2519, %v2579
  %2581 = vmatprep.mubr.bf16.mxu0 %v64
  %2582 = vmatmul.mubr.bf16.gmra.mrb[0].mxu0 %v63
  %v2583 = vpop.f32.mrb[0].mxu0
  %v2584 = vadd.f32 %v2523, %v2583
  %v2585 = vpop.f32.mrb[0].mxu0
  %v2586 = vadd.f32 %v2525, %v2585
  %v2587 = vpop.f32.mrb[0].mxu0
  %v2588 = vadd.f32 %v2527, %v2587
  %v2589 = vpop.f32.mrb[0].mxu0
  %v2590 = vadd.f32 %v2529, %v2589
  %2591 = vmatprep.mubr.bf16.mxu0 %v70
  %2592 = vmatmul.mubr.bf16.gmra.mrb[0].mxu0 %v69
  %v2593 = vpop.f32.mrb[0].mxu0
  %v2594 = vadd.f32 %v2533, %v2593
  %v2595 = vpop.f32.mrb[0].mxu0
  %v2596 = vadd.f32 %v2535, %v2595
  %v2597 = vpop.f32.mrb[0].mxu0
  %v2598 = vpop.f32.mrb[0].mxu0
  %2599 = vdwg.mxu0
  %2600 = vmatprep.subr.bf16.mxu0 %v1652
  %2601 = vmatpush1.bf16.msra.mxu0 %v1651
  %2602 = vmatprep.subr.bf16.mxu0 %v1660
  %2603 = vmatpush1.bf16.msra.mxu0 %v1659
  %2604 = vmatprep.subr.bf16.mxu0 %v1668
  %2605 = vmatpush1.bf16.msra.mxu0 %v1667
  %2606 = vmatprep.subr.bf16.mxu0 %v1676
  %2607 = vmatpush1.bf16.msra.mxu0 %v1675
  %2608 = vmatprep.subr.bf16.mxu0 %v1684
  %2609 = vmatpush1.bf16.msra.mxu0 %v1683
  %2610 = vmatprep.subr.bf16.mxu0 %v1692
  %2611 = vmatpush1.bf16.msra.mxu0 %v1691
  %2612 = vmatprep.subr.bf16.mxu0 %v1700
  %2613 = vmatpush1.bf16.msra.mxu0 %v1699
  %2614 = vmatprep.subr.bf16.mxu0 %v1708
  %2615 = vmatpush1.bf16.msra.mxu0 %v1707
  %2616 = vmatprep.subr.bf16.mxu0 %v1716
  %2617 = vmatpush1.bf16.msra.mxu0 %v1715
  %2618 = vmatprep.subr.bf16.mxu0 %v1724
  %2619 = vmatpush1.bf16.msra.mxu0 %v1723
  %2620 = vmatprep.subr.bf16.mxu0 %v1732
  %2621 = vmatpush1.bf16.msra.mxu0 %v1731
  %2622 = vmatprep.subr.bf16.mxu0 %v1740
  %2623 = vmatpush1.bf16.msra.mxu0 %v1739
  %2624 = vmatprep.subr.bf16.mxu0 %v1748
  %2625 = vmatpush1.bf16.msra.mxu0 %v1747
  %2626 = vmatprep.subr.bf16.mxu0 %v1756
  %2627 = vmatpush1.bf16.msra.mxu0 %v1755
  %2628 = vmatprep.subr.bf16.mxu0 %v1764
  %2629 = vmatpush1.bf16.msra.mxu0 %v1763
  %2630 = vmatprep.subr.bf16.mxu0 %v1772
  %2631 = vmatpush1.bf16.msra.mxu0 %v1771
  %2632 = vmatprep.mubr.bf16.mxu0 %v54
  %2633 = vmatmul.mubr.bf16.gmra.mrb[0].mxu0 %v53
  %v2634 = vpop.f32.mrb[0].mxu0
  %v2635 = vadd.f32 %v468, %v2634
  %v2636 = vpop.f32.mrb[0].mxu0
  %v2637 = vadd.f32 %v472, %v2636
  %v2638 = vpop.f32.mrb[0].mxu0
  %v2639 = vadd.f32 %v468, %v2638
  %v2640 = vpop.f32.mrb[0].mxu0
  %v2641 = vadd.f32 %v472, %v2640
  %2642 = vmatprep.mubr.bf16.mxu0 %v60
  %2643 = vmatmul.mubr.bf16.gmra.mrb[0].mxu0 %v59
  %v2644 = vpop.f32.mrb[0].mxu0
  %v2645 = vadd.f32 %v468, %v2644
  %v2646 = vpop.f32.mrb[0].mxu0
  %v2647 = vadd.f32 %v472, %v2646
  %v2648 = vpop.f32.mrb[0].mxu0
  %v2649 = vadd.f32 %v468, %v2648
  %v2650 = vpop.f32.mrb[0].mxu0
  %v2651 = vadd.f32 %v472, %v2650
  %2652 = vmatprep.mubr.bf16.mxu0 %v66
  %2653 = vmatmul.mubr.bf16.gmra.mrb[0].mxu0 %v65
  %v2654 = vpop.f32.mrb[0].mxu0
  %v2655 = vadd.f32 %v468, %v2654
  %v2656 = vpop.f32.mrb[0].mxu0
  %v2657 = vadd.f32 %v472, %v2656
  %v2658 = vpop.f32.mrb[0].mxu0
  %v2659 = vpop.f32.mrb[0].mxu0
  %2660 = vdwg.mxu0
  %2661 = vmatprep.subr.bf16.mxu0 %v1780
  %2662 = vmatpush1.bf16.msra.mxu0 %v1779
  %2663 = vmatprep.subr.bf16.mxu0 %v1788
  %2664 = vmatpush1.bf16.msra.mxu0 %v1787
  %2665 = vmatprep.subr.bf16.mxu0 %v1796
  %2666 = vmatpush1.bf16.msra.mxu0 %v1795
  %2667 = vmatprep.subr.bf16.mxu0 %v1804
  %2668 = vmatpush1.bf16.msra.mxu0 %v1803
  %2669 = vmatprep.subr.bf16.mxu0 %v1812
  %2670 = vmatpush1.bf16.msra.mxu0 %v1811
  %2671 = vmatprep.subr.bf16.mxu0 %v1820
  %2672 = vmatpush1.bf16.msra.mxu0 %v1819
  %2673 = vmatprep.subr.bf16.mxu0 %v1828
  %2674 = vmatpush1.bf16.msra.mxu0 %v1827
  %2675 = vmatprep.subr.bf16.mxu0 %v1836
  %2676 = vmatpush1.bf16.msra.mxu0 %v1835
  %2677 = vmatprep.subr.bf16.mxu0 %v1844
  %2678 = vmatpush1.bf16.msra.mxu0 %v1843
  %2679 = vmatprep.subr.bf16.mxu0 %v1852
  %2680 = vmatpush1.bf16.msra.mxu0 %v1851
  %2681 = vmatprep.subr.bf16.mxu0 %v1860
  %2682 = vmatpush1.bf16.msra.mxu0 %v1859
  %2683 = vmatprep.subr.bf16.mxu0 %v1868
  %2684 = vmatpush1.bf16.msra.mxu0 %v1867
  %2685 = vmatprep.subr.bf16.mxu0 %v1876
  %2686 = vmatpush1.bf16.msra.mxu0 %v1875
  %2687 = vmatprep.subr.bf16.mxu0 %v1884
  %2688 = vmatpush1.bf16.msra.mxu0 %v1883
  %2689 = vmatprep.subr.bf16.mxu0 %v1892
  %2690 = vmatpush1.bf16.msra.mxu0 %v1891
  %2691 = vmatprep.subr.bf16.mxu0 %v1900
  %2692 = vmatpush1.bf16.msra.mxu0 %v1899
  %2693 = vmatprep.mubr.bf16.mxu0 %v56
  %2694 = vmatmul.mubr.bf16.gmra.mrb[0].mxu0 %v55
  %v2695 = vpop.f32.mrb[0].mxu0
  %v2696 = vadd.f32 %v2635, %v2695
  %v2697 = vpop.f32.mrb[0].mxu0
  %v2698 = vadd.f32 %v2637, %v2697
  %v2699 = vpop.f32.mrb[0].mxu0
  %v2700 = vadd.f32 %v2639, %v2699
  %v2701 = vpop.f32.mrb[0].mxu0
  %v2702 = vadd.f32 %v2641, %v2701
  %2703 = vmatprep.mubr.bf16.mxu0 %v62
  %2704 = vmatmul.mubr.bf16.gmra.mrb[0].mxu0 %v61
  %v2705 = vpop.f32.mrb[0].mxu0
  %v2706 = vadd.f32 %v2645, %v2705
  %v2707 = vpop.f32.mrb[0].mxu0
  %v2708 = vadd.f32 %v2647, %v2707
  %v2709 = vpop.f32.mrb[0].mxu0
  %v2710 = vadd.f32 %v2649, %v2709
  %v2711 = vpop.f32.mrb[0].mxu0
  %v2712 = vadd.f32 %v2651, %v2711
  %2713 = vmatprep.mubr.bf16.mxu0 %v68
  %2714 = vmatmul.mubr.bf16.gmra.mrb[0].mxu0 %v67
  %v2715 = vpop.f32.mrb[0].mxu0
  %v2716 = vadd.f32 %v2655, %v2715
  %v2717 = vpop.f32.mrb[0].mxu0
  %v2718 = vadd.f32 %v2657, %v2717
  %v2719 = vpop.f32.mrb[0].mxu0
  %v2720 = vpop.f32.mrb[0].mxu0
  %2721 = vdwg.mxu0
  %2722 = vmatprep.subr.bf16.mxu0 %v1908
  %2723 = vmatpush1.bf16.msra.mxu0 %v1907
  %2724 = vmatprep.subr.bf16.mxu0 %v1916
  %2725 = vmatpush1.bf16.msra.mxu0 %v1915
  %2726 = vmatprep.subr.bf16.mxu0 %v1924
  %2727 = vmatpush1.bf16.msra.mxu0 %v1923
  %2728 = vmatprep.subr.bf16.mxu0 %v1932
  %2729 = vmatpush1.bf16.msra.mxu0 %v1931
  %2730 = vmatprep.subr.bf16.mxu0 %v1940
  %2731 = vmatpush1.bf16.msra.mxu0 %v1939
  %2732 = vmatprep.subr.bf16.mxu0 %v1948
  %2733 = vmatpush1.bf16.msra.mxu0 %v1947
  %2734 = vmatprep.subr.bf16.mxu0 %v1956
  %2735 = vmatpush1.bf16.msra.mxu0 %v1955
  %2736 = vmatprep.subr.bf16.mxu0 %v1964
  %2737 = vmatpush1.bf16.msra.mxu0 %v1963
  %2738 = vmatprep.subr.bf16.mxu0 %v1972
  %2739 = vmatpush1.bf16.msra.mxu0 %v1971
  %2740 = vmatprep.subr.bf16.mxu0 %v1980
  %2741 = vmatpush1.bf16.msra.mxu0 %v1979
  %2742 = vmatprep.subr.bf16.mxu0 %v1988
  %2743 = vmatpush1.bf16.msra.mxu0 %v1987
  %2744 = vmatprep.subr.bf16.mxu0 %v1996
  %2745 = vmatpush1.bf16.msra.mxu0 %v1995
  %2746 = vmatprep.subr.bf16.mxu0 %v2004
  %2747 = vmatpush1.bf16.msra.mxu0 %v2003
  %2748 = vmatprep.subr.bf16.mxu0 %v2012
  %2749 = vmatpush1.bf16.msra.mxu0 %v2011
  %2750 = vmatprep.subr.bf16.mxu0 %v2020
  %2751 = vmatpush1.bf16.msra.mxu0 %v2019
  %2752 = vmatprep.subr.bf16.mxu0 %v2028
  %2753 = vmatpush1.bf16.msra.mxu0 %v2027
  %2754 = vmatprep.mubr.bf16.mxu0 %v58
  %2755 = vmatmul.mubr.bf16.gmra.mrb[0].mxu0 %v57
  %v2756 = vpop.f32.mrb[0].mxu0
  %v2757 = vadd.f32 %v2696, %v2756
  %v2758 = vpop.f32.mrb[0].mxu0
  %v2759 = vadd.f32 %v2698, %v2758
  %v2760 = vpop.f32.mrb[0].mxu0
  %v2761 = vadd.f32 %v2700, %v2760
  %v2762 = vpop.f32.mrb[0].mxu0
  %v2763 = vadd.f32 %v2702, %v2762
  %2764 = vmatprep.mubr.bf16.mxu0 %v64
  %2765 = vmatmul.mubr.bf16.gmra.mrb[0].mxu0 %v63
  %v2766 = vpop.f32.mrb[0].mxu0
  %v2767 = vadd.f32 %v2706, %v2766
  %v2768 = vpop.f32.mrb[0].mxu0
  %v2769 = vadd.f32 %v2708, %v2768
  %v2770 = vpop.f32.mrb[0].mxu0
  %v2771 = vadd.f32 %v2710, %v2770
  %v2772 = vpop.f32.mrb[0].mxu0
  %v2773 = vadd.f32 %v2712, %v2772
  %2774 = vmatprep.mubr.bf16.mxu0 %v70
  %2775 = vmatmul.mubr.bf16.gmra.mrb[0].mxu0 %v69
  %v2776 = vpop.f32.mrb[0].mxu0
  %v2777 = vadd.f32 %v2716, %v2776
  %v2778 = vpop.f32.mrb[0].mxu0
  %v2779 = vadd.f32 %v2718, %v2778
  %v2780 = vpop.f32.mrb[0].mxu0
  %v2781 = vpop.f32.mrb[0].mxu0
  %2782 = vdwg.mxu0
  %2783 = vmatprep.subr.bf16.mxu0 %v1654
  %2784 = vmatpush1.bf16.msra.mxu0 %v1653
  %2785 = vmatprep.subr.bf16.mxu0 %v1662
  %2786 = vmatpush1.bf16.msra.mxu0 %v1661
  %2787 = vmatprep.subr.bf16.mxu0 %v1670
  %2788 = vmatpush1.bf16.msra.mxu0 %v1669
  %2789 = vmatprep.subr.bf16.mxu0 %v1678
  %2790 = vmatpush1.bf16.msra.mxu0 %v1677
  %2791 = vmatprep.subr.bf16.mxu0 %v1686
  %2792 = vmatpush1.bf16.msra.mxu0 %v1685
  %2793 = vmatprep.subr.bf16.mxu0 %v1694
  %2794 = vmatpush1.bf16.msra.mxu0 %v1693
  %2795 = vmatprep.subr.bf16.mxu0 %v1702
  %2796 = vmatpush1.bf16.msra.mxu0 %v1701
  %2797 = vmatprep.subr.bf16.mxu0 %v1710
  %2798 = vmatpush1.bf16.msra.mxu0 %v1709
  %2799 = vmatprep.subr.bf16.mxu0 %v1718
  %2800 = vmatpush1.bf16.msra.mxu0 %v1717
  %2801 = vmatprep.subr.bf16.mxu0 %v1726
  %2802 = vmatpush1.bf16.msra.mxu0 %v1725
  %2803 = vmatprep.subr.bf16.mxu0 %v1734
  %2804 = vmatpush1.bf16.msra.mxu0 %v1733
  %2805 = vmatprep.subr.bf16.mxu0 %v1742
  %2806 = vmatpush1.bf16.msra.mxu0 %v1741
  %2807 = vmatprep.subr.bf16.mxu0 %v1750
  %2808 = vmatpush1.bf16.msra.mxu0 %v1749
  %2809 = vmatprep.subr.bf16.mxu0 %v1758
  %2810 = vmatpush1.bf16.msra.mxu0 %v1757
  %2811 = vmatprep.subr.bf16.mxu0 %v1766
  %2812 = vmatpush1.bf16.msra.mxu0 %v1765
  %2813 = vmatprep.subr.bf16.mxu0 %v1774
  %2814 = vmatpush1.bf16.msra.mxu0 %v1773
  %2815 = vmatprep.mubr.bf16.mxu0 %v54
  %2816 = vmatmul.mubr.bf16.gmra.mrb[0].mxu0 %v53
  %v2817 = vpop.f32.mrb[0].mxu0
  %v2818 = vadd.f32 %v476, %v2817
  %v2819 = vpop.f32.mrb[0].mxu0
  %v2820 = vadd.f32 %v480, %v2819
  %v2821 = vpop.f32.mrb[0].mxu0
  %v2822 = vadd.f32 %v476, %v2821
  %v2823 = vpop.f32.mrb[0].mxu0
  %v2824 = vadd.f32 %v480, %v2823
  %2825 = vmatprep.mubr.bf16.mxu0 %v60
  %2826 = vmatmul.mubr.bf16.gmra.mrb[0].mxu0 %v59
  %v2827 = vpop.f32.mrb[0].mxu0
  %v2828 = vadd.f32 %v476, %v2827
  %v2829 = vpop.f32.mrb[0].mxu0
  %v2830 = vadd.f32 %v480, %v2829
  %v2831 = vpop.f32.mrb[0].mxu0
  %v2832 = vadd.f32 %v476, %v2831
  %v2833 = vpop.f32.mrb[0].mxu0
  %v2834 = vadd.f32 %v480, %v2833
  %2835 = vmatprep.mubr.bf16.mxu0 %v66
  %2836 = vmatmul.mubr.bf16.gmra.mrb[0].mxu0 %v65
  %v2837 = vpop.f32.mrb[0].mxu0
  %v2838 = vadd.f32 %v476, %v2837
  %v2839 = vpop.f32.mrb[0].mxu0
  %v2840 = vadd.f32 %v480, %v2839
  %v2841 = vpop.f32.mrb[0].mxu0
  %v2842 = vpop.f32.mrb[0].mxu0
  %2843 = vdwg.mxu0
  %2844 = vmatprep.subr.bf16.mxu0 %v1782
  %2845 = vmatpush1.bf16.msra.mxu0 %v1781
  %2846 = vmatprep.subr.bf16.mxu0 %v1790
  %2847 = vmatpush1.bf16.msra.mxu0 %v1789
  %2848 = vmatprep.subr.bf16.mxu0 %v1798
  %2849 = vmatpush1.bf16.msra.mxu0 %v1797
  %2850 = vmatprep.subr.bf16.mxu0 %v1806
  %2851 = vmatpush1.bf16.msra.mxu0 %v1805
  %2852 = vmatprep.subr.bf16.mxu0 %v1814
  %2853 = vmatpush1.bf16.msra.mxu0 %v1813
  %2854 = vmatprep.subr.bf16.mxu0 %v1822
  %2855 = vmatpush1.bf16.msra.mxu0 %v1821
  %2856 = vmatprep.subr.bf16.mxu0 %v1830
  %2857 = vmatpush1.bf16.msra.mxu0 %v1829
  %2858 = vmatprep.subr.bf16.mxu0 %v1838
  %2859 = vmatpush1.bf16.msra.mxu0 %v1837
  %2860 = vmatprep.subr.bf16.mxu0 %v1846
  %2861 = vmatpush1.bf16.msra.mxu0 %v1845
  %2862 = vmatprep.subr.bf16.mxu0 %v1854
  %2863 = vmatpush1.bf16.msra.mxu0 %v1853
  %2864 = vmatprep.subr.bf16.mxu0 %v1862
  %2865 = vmatpush1.bf16.msra.mxu0 %v1861
  %2866 = vmatprep.subr.bf16.mxu0 %v1870
  %2867 = vmatpush1.bf16.msra.mxu0 %v1869
  %2868 = vmatprep.subr.bf16.mxu0 %v1878
  %2869 = vmatpush1.bf16.msra.mxu0 %v1877
  %2870 = vmatprep.subr.bf16.mxu0 %v1886
  %2871 = vmatpush1.bf16.msra.mxu0 %v1885
  %2872 = vmatprep.subr.bf16.mxu0 %v1894
  %2873 = vmatpush1.bf16.msra.mxu0 %v1893
  %2874 = vmatprep.subr.bf16.mxu0 %v1902
  %2875 = vmatpush1.bf16.msra.mxu0 %v1901
  %2876 = vmatprep.mubr.bf16.mxu0 %v56
  %2877 = vmatmul.mubr.bf16.gmra.mrb[0].mxu0 %v55
  %v2878 = vpop.f32.mrb[0].mxu0
  %v2879 = vadd.f32 %v2818, %v2878
  %v2880 = vpop.f32.mrb[0].mxu0
  %v2881 = vadd.f32 %v2820, %v2880
  %v2882 = vpop.f32.mrb[0].mxu0
  %v2883 = vadd.f32 %v2822, %v2882
  %v2884 = vpop.f32.mrb[0].mxu0
  %v2885 = vadd.f32 %v2824, %v2884
  %2886 = vmatprep.mubr.bf16.mxu0 %v62
  %2887 = vmatmul.mubr.bf16.gmra.mrb[0].mxu0 %v61
  %v2888 = vpop.f32.mrb[0].mxu0
  %v2889 = vadd.f32 %v2828, %v2888
  %v2890 = vpop.f32.mrb[0].mxu0
  %v2891 = vadd.f32 %v2830, %v2890
  %v2892 = vpop.f32.mrb[0].mxu0
  %v2893 = vadd.f32 %v2832, %v2892
  %v2894 = vpop.f32.mrb[0].mxu0
  %v2895 = vadd.f32 %v2834, %v2894
  %2896 = vmatprep.mubr.bf16.mxu0 %v68
  %2897 = vmatmul.mubr.bf16.gmra.mrb[0].mxu0 %v67
  %v2898 = vpop.f32.mrb[0].mxu0
  %v2899 = vadd.f32 %v2838, %v2898
  %v2900 = vpop.f32.mrb[0].mxu0
  %v2901 = vadd.f32 %v2840, %v2900
  %v2902 = vpop.f32.mrb[0].mxu0
  %v2903 = vpop.f32.mrb[0].mxu0
  %2904 = vdwg.mxu0
  %2905 = vmatprep.subr.bf16.mxu0 %v1910
  %2906 = vmatpush1.bf16.msra.mxu0 %v1909
  %2907 = vmatprep.subr.bf16.mxu0 %v1918
  %2908 = vmatpush1.bf16.msra.mxu0 %v1917
  %2909 = vmatprep.subr.bf16.mxu0 %v1926
  %2910 = vmatpush1.bf16.msra.mxu0 %v1925
  %2911 = vmatprep.subr.bf16.mxu0 %v1934
  %2912 = vmatpush1.bf16.msra.mxu0 %v1933
  %2913 = vmatprep.subr.bf16.mxu0 %v1942
  %2914 = vmatpush1.bf16.msra.mxu0 %v1941
  %2915 = vmatprep.subr.bf16.mxu0 %v1950
  %2916 = vmatpush1.bf16.msra.mxu0 %v1949
  %2917 = vmatprep.subr.bf16.mxu0 %v1958
  %2918 = vmatpush1.bf16.msra.mxu0 %v1957
  %2919 = vmatprep.subr.bf16.mxu0 %v1966
  %2920 = vmatpush1.bf16.msra.mxu0 %v1965
  %2921 = vmatprep.subr.bf16.mxu0 %v1974
  %2922 = vmatpush1.bf16.msra.mxu0 %v1973
  %2923 = vmatprep.subr.bf16.mxu0 %v1982
  %2924 = vmatpush1.bf16.msra.mxu0 %v1981
  %2925 = vmatprep.subr.bf16.mxu0 %v1990
  %2926 = vmatpush1.bf16.msra.mxu0 %v1989
  %2927 = vmatprep.subr.bf16.mxu0 %v1998
  %2928 = vmatpush1.bf16.msra.mxu0 %v1997
  %2929 = vmatprep.subr.bf16.mxu0 %v2006
  %2930 = vmatpush1.bf16.msra.mxu0 %v2005
  %2931 = vmatprep.subr.bf16.mxu0 %v2014
  %2932 = vmatpush1.bf16.msra.mxu0 %v2013
  %2933 = vmatprep.subr.bf16.mxu0 %v2022
  %2934 = vmatpush1.bf16.msra.mxu0 %v2021
  %2935 = vmatprep.subr.bf16.mxu0 %v2030
  %2936 = vmatpush1.bf16.msra.mxu0 %v2029
  %2937 = vmatprep.mubr.bf16.mxu0 %v58
  %2938 = vmatmul.mubr.bf16.gmra.mrb[0].mxu0 %v57
  %v2939 = vpop.f32.mrb[0].mxu0
  %v2940 = vadd.f32 %v2879, %v2939
  %v2941 = vpop.f32.mrb[0].mxu0
  %v2942 = vadd.f32 %v2881, %v2941
  %v2943 = vpop.f32.mrb[0].mxu0
  %v2944 = vadd.f32 %v2883, %v2943
  %v2945 = vpop.f32.mrb[0].mxu0
  %v2946 = vadd.f32 %v2885, %v2945
  %2947 = vmatprep.mubr.bf16.mxu0 %v64
  %2948 = vmatmul.mubr.bf16.gmra.mrb[0].mxu0 %v63
  %v2949 = vpop.f32.mrb[0].mxu0
  %v2950 = vadd.f32 %v2889, %v2949
  %v2951 = vpop.f32.mrb[0].mxu0
  %v2952 = vadd.f32 %v2891, %v2951
  %v2953 = vpop.f32.mrb[0].mxu0
  %v2954 = vadd.f32 %v2893, %v2953
  %v2955 = vpop.f32.mrb[0].mxu0
  %v2956 = vadd.f32 %v2895, %v2955
  %2957 = vmatprep.mubr.bf16.mxu0 %v70
  %2958 = vmatmul.mubr.bf16.gmra.mrb[0].mxu0 %v69
  %v2959 = vpop.f32.mrb[0].mxu0
  %v2960 = vadd.f32 %v2899, %v2959
  %v2961 = vpop.f32.mrb[0].mxu0
  %v2962 = vadd.f32 %v2901, %v2961
  %v2963 = vpop.f32.mrb[0].mxu0
  %v2964 = vpop.f32.mrb[0].mxu0
  %2965 = vdwg.mxu0
  %2966 = vmatprep.subr.bf16.mxu0 %v1656
  %2967 = vmatpush1.bf16.msra.mxu0 %v1655
  %2968 = vmatprep.subr.bf16.mxu0 %v1664
  %2969 = vmatpush1.bf16.msra.mxu0 %v1663
  %2970 = vmatprep.subr.bf16.mxu0 %v1672
  %2971 = vmatpush1.bf16.msra.mxu0 %v1671
  %2972 = vmatprep.subr.bf16.mxu0 %v1680
  %2973 = vmatpush1.bf16.msra.mxu0 %v1679
  %2974 = vmatprep.subr.bf16.mxu0 %v1688
  %2975 = vmatpush1.bf16.msra.mxu0 %v1687
  %2976 = vmatprep.subr.bf16.mxu0 %v1696
  %2977 = vmatpush1.bf16.msra.mxu0 %v1695
  %2978 = vmatprep.subr.bf16.mxu0 %v1704
  %2979 = vmatpush1.bf16.msra.mxu0 %v1703
  %2980 = vmatprep.subr.bf16.mxu0 %v1712
  %2981 = vmatpush1.bf16.msra.mxu0 %v1711
  %2982 = vmatprep.subr.bf16.mxu0 %v1720
  %2983 = vmatpush1.bf16.msra.mxu0 %v1719
  %2984 = vmatprep.subr.bf16.mxu0 %v1728
  %2985 = vmatpush1.bf16.msra.mxu0 %v1727
  %2986 = vmatprep.subr.bf16.mxu0 %v1736
  %2987 = vmatpush1.bf16.msra.mxu0 %v1735
  %2988 = vmatprep.subr.bf16.mxu0 %v1744
  %2989 = vmatpush1.bf16.msra.mxu0 %v1743
  %2990 = vmatprep.subr.bf16.mxu0 %v1752
  %2991 = vmatpush1.bf16.msra.mxu0 %v1751
  %2992 = vmatprep.subr.bf16.mxu0 %v1760
  %2993 = vmatpush1.bf16.msra.mxu0 %v1759
  %2994 = vmatprep.subr.bf16.mxu0 %v1768
  %2995 = vmatpush1.bf16.msra.mxu0 %v1767
  %2996 = vmatprep.subr.bf16.mxu0 %v1776
  %2997 = vmatpush1.bf16.msra.mxu0 %v1775
  %2998 = vmatprep.mubr.bf16.mxu0 %v54
  %2999 = vmatmul.mubr.bf16.gmra.mrb[0].mxu0 %v53
  %v3000 = vpop.f32.mrb[0].mxu0
  %v3001 = vadd.f32 %v484, %v3000
  %v3002 = vpop.f32.mrb[0].mxu0
  %v3003 = vadd.f32 %v488, %v3002
  %v3004 = vpop.f32.mrb[0].mxu0
  %v3005 = vadd.f32 %v484, %v3004
  %v3006 = vpop.f32.mrb[0].mxu0
  %v3007 = vadd.f32 %v488, %v3006
  %3008 = vmatprep.mubr.bf16.mxu0 %v60
  %3009 = vmatmul.mubr.bf16.gmra.mrb[0].mxu0 %v59
  %v3010 = vpop.f32.mrb[0].mxu0
  %v3011 = vadd.f32 %v484, %v3010
  %v3012 = vpop.f32.mrb[0].mxu0
  %v3013 = vadd.f32 %v488, %v3012
  %v3014 = vpop.f32.mrb[0].mxu0
  %v3015 = vadd.f32 %v484, %v3014
  %v3016 = vpop.f32.mrb[0].mxu0
  %v3017 = vadd.f32 %v488, %v3016
  %3018 = vmatprep.mubr.bf16.mxu0 %v66
  %3019 = vmatmul.mubr.bf16.gmra.mrb[0].mxu0 %v65
  %v3020 = vpop.f32.mrb[0].mxu0
  %v3021 = vadd.f32 %v484, %v3020
  %v3022 = vpop.f32.mrb[0].mxu0
  %v3023 = vadd.f32 %v488, %v3022
  %v3024 = vpop.f32.mrb[0].mxu0
  %v3025 = vpop.f32.mrb[0].mxu0
  %3026 = vdwg.mxu0
  %3027 = vmatprep.subr.bf16.mxu0 %v1784
  %3028 = vmatpush1.bf16.msra.mxu0 %v1783
  %3029 = vmatprep.subr.bf16.mxu0 %v1792
  %3030 = vmatpush1.bf16.msra.mxu0 %v1791
  %3031 = vmatprep.subr.bf16.mxu0 %v1800
  %3032 = vmatpush1.bf16.msra.mxu0 %v1799
  %3033 = vmatprep.subr.bf16.mxu0 %v1808
  %3034 = vmatpush1.bf16.msra.mxu0 %v1807
  %3035 = vmatprep.subr.bf16.mxu0 %v1816
  %3036 = vmatpush1.bf16.msra.mxu0 %v1815
  %3037 = vmatprep.subr.bf16.mxu0 %v1824
  %3038 = vmatpush1.bf16.msra.mxu0 %v1823
  %3039 = vmatprep.subr.bf16.mxu0 %v1832
  %3040 = vmatpush1.bf16.msra.mxu0 %v1831
  %3041 = vmatprep.subr.bf16.mxu0 %v1840
  %3042 = vmatpush1.bf16.msra.mxu0 %v1839
  %3043 = vmatprep.subr.bf16.mxu0 %v1848
  %3044 = vmatpush1.bf16.msra.mxu0 %v1847
  %3045 = vmatprep.subr.bf16.mxu0 %v1856
  %3046 = vmatpush1.bf16.msra.mxu0 %v1855
  %3047 = vmatprep.subr.bf16.mxu0 %v1864
  %3048 = vmatpush1.bf16.msra.mxu0 %v1863
  %3049 = vmatprep.subr.bf16.mxu0 %v1872
  %3050 = vmatpush1.bf16.msra.mxu0 %v1871
  %3051 = vmatprep.subr.bf16.mxu0 %v1880
  %3052 = vmatpush1.bf16.msra.mxu0 %v1879
  %3053 = vmatprep.subr.bf16.mxu0 %v1888
  %3054 = vmatpush1.bf16.msra.mxu0 %v1887
  %3055 = vmatprep.subr.bf16.mxu0 %v1896
  %3056 = vmatpush1.bf16.msra.mxu0 %v1895
  %3057 = vmatprep.subr.bf16.mxu0 %v1904
  %3058 = vmatpush1.bf16.msra.mxu0 %v1903
  %3059 = vmatprep.mubr.bf16.mxu0 %v56
  %3060 = vmatmul.mubr.bf16.gmra.mrb[0].mxu0 %v55
  %v3061 = vpop.f32.mrb[0].mxu0
  %v3062 = vadd.f32 %v3001, %v3061
  %v3063 = vpop.f32.mrb[0].mxu0
  %v3064 = vadd.f32 %v3003, %v3063
  %v3065 = vpop.f32.mrb[0].mxu0
  %v3066 = vadd.f32 %v3005, %v3065
  %v3067 = vpop.f32.mrb[0].mxu0
  %v3068 = vadd.f32 %v3007, %v3067
  %3069 = vmatprep.mubr.bf16.mxu0 %v62
  %3070 = vmatmul.mubr.bf16.gmra.mrb[0].mxu0 %v61
  %v3071 = vpop.f32.mrb[0].mxu0
  %v3072 = vadd.f32 %v3011, %v3071
  %v3073 = vpop.f32.mrb[0].mxu0
  %v3074 = vadd.f32 %v3013, %v3073
  %v3075 = vpop.f32.mrb[0].mxu0
  %v3076 = vadd.f32 %v3015, %v3075
  %v3077 = vpop.f32.mrb[0].mxu0
  %v3078 = vadd.f32 %v3017, %v3077
  %3079 = vmatprep.mubr.bf16.mxu0 %v68
  %3080 = vmatmul.mubr.bf16.gmra.mrb[0].mxu0 %v67
  %v3081 = vpop.f32.mrb[0].mxu0
  %v3082 = vadd.f32 %v3021, %v3081
  %v3083 = vpop.f32.mrb[0].mxu0
  %v3084 = vadd.f32 %v3023, %v3083
  %v3085 = vpop.f32.mrb[0].mxu0
  %v3086 = vpop.f32.mrb[0].mxu0
  %3087 = vdwg.mxu0
  %3088 = vmatprep.subr.bf16.mxu0 %v1912
  %3089 = vmatpush1.bf16.msra.mxu0 %v1911
  %3090 = vmatprep.subr.bf16.mxu0 %v1920
  %3091 = vmatpush1.bf16.msra.mxu0 %v1919
  %3092 = vmatprep.subr.bf16.mxu0 %v1928
  %3093 = vmatpush1.bf16.msra.mxu0 %v1927
  %3094 = vmatprep.subr.bf16.mxu0 %v1936
  %3095 = vmatpush1.bf16.msra.mxu0 %v1935
  %3096 = vmatprep.subr.bf16.mxu0 %v1944
  %3097 = vmatpush1.bf16.msra.mxu0 %v1943
  %3098 = vmatprep.subr.bf16.mxu0 %v1952
  %3099 = vmatpush1.bf16.msra.mxu0 %v1951
  %3100 = vmatprep.subr.bf16.mxu0 %v1960
  %3101 = vmatpush1.bf16.msra.mxu0 %v1959
  %3102 = vmatprep.subr.bf16.mxu0 %v1968
  %3103 = vmatpush1.bf16.msra.mxu0 %v1967
  %3104 = vmatprep.subr.bf16.mxu0 %v1976
  %3105 = vmatpush1.bf16.msra.mxu0 %v1975
  %3106 = vmatprep.subr.bf16.mxu0 %v1984
  %3107 = vmatpush1.bf16.msra.mxu0 %v1983
  %3108 = vmatprep.subr.bf16.mxu0 %v1992
  %3109 = vmatpush1.bf16.msra.mxu0 %v1991
  %3110 = vmatprep.subr.bf16.mxu0 %v2000
  %3111 = vmatpush1.bf16.msra.mxu0 %v1999
  %3112 = vmatprep.subr.bf16.mxu0 %v2008
  %3113 = vmatpush1.bf16.msra.mxu0 %v2007
  %3114 = vmatprep.subr.bf16.mxu0 %v2016
  %3115 = vmatpush1.bf16.msra.mxu0 %v2015
  %3116 = vmatprep.subr.bf16.mxu0 %v2024
  %3117 = vmatpush1.bf16.msra.mxu0 %v2023
  %3118 = vmatprep.subr.bf16.mxu0 %v2032
  %3119 = vmatpush1.bf16.msra.mxu0 %v2031
  %3120 = vmatprep.mubr.bf16.mxu0 %v58
  %3121 = vmatmul.mubr.bf16.gmra.mrb[0].mxu0 %v57
  %v3122 = vpop.f32.mrb[0].mxu0
  %v3123 = vadd.f32 %v3062, %v3122
  %v3124 = vpop.f32.mrb[0].mxu0
  %v3125 = vadd.f32 %v3064, %v3124
  %v3126 = vpop.f32.mrb[0].mxu0
  %v3127 = vadd.f32 %v3066, %v3126
  %v3128 = vpop.f32.mrb[0].mxu0
  %v3129 = vadd.f32 %v3068, %v3128
  %3130 = vmatprep.mubr.bf16.mxu0 %v64
  %3131 = vmatmul.mubr.bf16.gmra.mrb[0].mxu0 %v63
  %v3132 = vpop.f32.mrb[0].mxu0
  %v3133 = vadd.f32 %v3072, %v3132
  %v3134 = vpop.f32.mrb[0].mxu0
  %v3135 = vadd.f32 %v3074, %v3134
  %v3136 = vpop.f32.mrb[0].mxu0
  %v3137 = vadd.f32 %v3076, %v3136
  %v3138 = vpop.f32.mrb[0].mxu0
  %v3139 = vadd.f32 %v3078, %v3138
  %3140 = vmatprep.mubr.bf16.mxu0 %v70
  %3141 = vmatmul.mubr.bf16.gmra.mrb[0].mxu0 %v69
  %v3142 = vpop.f32.mrb[0].mxu0
  %v3143 = vadd.f32 %v3082, %v3142
  %v3144 = vpop.f32.mrb[0].mxu0
  %v3145 = vadd.f32 %v3084, %v3144
  %v3146 = vpop.f32.mrb[0].mxu0
  %v3147 = vpop.f32.mrb[0].mxu0
  %3148 = vdwg.mxu0
  %v3149 = vmax.f32 %v2574, 0.0
  %v3150 = vmax.f32 %v2576, 0.0
  %v3151 = vmax.f32 %v2757, 0.0
  %v3152 = vmax.f32 %v2759, 0.0
  %v3153 = vmax.f32 %v2940, 0.0
  %v3154 = vmax.f32 %v2942, 0.0
  %v3155 = vmax.f32 %v3123, 0.0
  %v3156 = vmax.f32 %v3125, 0.0
  %v3157 = vmax.f32 %v2578, 0.0
  %v3158 = vmax.f32 %v2580, 0.0
  %v3159 = vmax.f32 %v2761, 0.0
  %v3160 = vmax.f32 %v2763, 0.0
  %v3161 = vmax.f32 %v2944, 0.0
  %v3162 = vmax.f32 %v2946, 0.0
  %v3163 = vmax.f32 %v3127, 0.0
  %v3164 = vmax.f32 %v3129, 0.0
  %v3165 = vmax.f32 %v2584, 0.0
  %v3166 = vmax.f32 %v2586, 0.0
  %v3167 = vmax.f32 %v2767, 0.0
  %v3168 = vmax.f32 %v2769, 0.0
  %v3169 = vmax.f32 %v2950, 0.0
  %v3170 = vmax.f32 %v2952, 0.0
  %v3171 = vmax.f32 %v3133, 0.0
  %v3172 = vmax.f32 %v3135, 0.0
  %v3173 = vmax.f32 %v2588, 0.0
  %v3174 = vmax.f32 %v2590, 0.0
  %v3175 = vmax.f32 %v2771, 0.0
  %v3176 = vmax.f32 %v2773, 0.0
  %v3177 = vmax.f32 %v2954, 0.0
  %v3178 = vmax.f32 %v2956, 0.0
  %v3179 = vmax.f32 %v3137, 0.0
  %v3180 = vmax.f32 %v3139, 0.0
  %v3181 = vmax.f32 %v2594, 0.0
  %v3182 = vmax.f32 %v2596, 0.0
  %v3183 = vmax.f32 %v2777, 0.0
  %v3184 = vmax.f32 %v2779, 0.0
  %v3185 = vmax.f32 %v2960, 0.0
  %v3186 = vmax.f32 %v2962, 0.0
  %v3187 = vmax.f32 %v3143, 0.0
  %v3188 = vmax.f32 %v3145, 0.0
  %v3189 = vpack.c.bf16 %v3157, %v3149
  %v3190 = vpack.c.bf16 %v3158, %v3150
  %v3191 = vpack.c.bf16 %v3159, %v3151
  %v3192 = vpack.c.bf16 %v3160, %v3152
  %v3193 = vpack.c.bf16 %v3161, %v3153
  %v3194 = vpack.c.bf16 %v3162, %v3154
  %v3195 = vpack.c.bf16 %v3163, %v3155
  %v3196 = vpack.c.bf16 %v3164, %v3156
  %v3197 = vpack.c.bf16 %v3173, %v3165
  %v3198 = vpack.c.bf16 %v3174, %v3166
  %v3199 = vpack.c.bf16 %v3175, %v3167
  %v3200 = vpack.c.bf16 %v3176, %v3168
  %v3201 = vpack.c.bf16 %v3177, %v3169
  %v3202 = vpack.c.bf16 %v3178, %v3170
  %v3203 = vpack.c.bf16 %v3179, %v3171
  %v3204 = vpack.c.bf16 %v3180, %v3172
  %v3205 = vpack.c.bf16 %v3181, %v3181
  %v3206 = vpack.c.bf16 %v3182, %v3182
  %v3207 = vpack.c.bf16 %v3183, %v3183
  %v3208 = vpack.c.bf16 %v3184, %v3184
  %v3209 = vpack.c.bf16 %v3185, %v3185
  %v3210 = vpack.c.bf16 %v3186, %v3186
  %v3211 = vpack.c.bf16 %v3187, %v3187
  %v3212 = vpack.c.bf16 %v3188, %v3188
  %v3213 = vld [vmem:[%s3] sm:$0xf]
  %v3214 = vld [vmem:[%s3 + $0x4] sm:$0xf]
  %v3215 = vld [vmem:[%s3 + $0x8] sm:$0xf]
  %v3216 = vld [vmem:[%s3 + $0xc] sm:$0xf]
  %v3217 = vld [vmem:[%s3 + $0x10] sm:$0xf]
  %v3218 = vld [vmem:[%s3 + $0x14] sm:$0xf]
  %v3219 = vld [vmem:[%s3 + $0x18] sm:$0xf]
  %v3220 = vld [vmem:[%s3 + $0x1c] sm:$0xf]
  %v3221 = vld [vmem:[%s3 + $0x20] sm:$0xf]
  %v3222 = vld [vmem:[%s3 + $0x24] sm:$0xf]
  %v3223 = vld [vmem:[%s3 + $0x28] sm:$0xf]
  %v3224 = vld [vmem:[%s3 + $0x2c] sm:$0xf]
  %v3225 = vld [vmem:[%s3 + $0x30] sm:$0xf]
  %v3226 = vld [vmem:[%s3 + $0x34] sm:$0xf]
  %v3227 = vld [vmem:[%s3 + $0x38] sm:$0xf]
  %v3228 = vld [vmem:[%s3 + $0x3c] sm:$0xf]
  %v3229 = vld [vmem:[%s3 + $0x40] sm:$0xf]
  %v3230 = vld [vmem:[%s3 + $0x44] sm:$0xf]
  %v3231 = vld [vmem:[%s3 + $0x48] sm:$0xf]
  %v3232 = vld [vmem:[%s3 + $0x4c] sm:$0xf]
  %v3233 = vld [vmem:[%s3 + $0x50] sm:$0xf]
  %v3234 = vld [vmem:[%s3 + $0x54] sm:$0xf]
  %v3235 = vld [vmem:[%s3 + $0x58] sm:$0xf]
  %v3236 = vld [vmem:[%s3 + $0x5c] sm:$0xf]
  %v3237 = vld [vmem:[%s3 + $0x60] sm:$0xf]
  %v3238 = vld [vmem:[%s3 + $0x64] sm:$0xf]
  %v3239 = vld [vmem:[%s3 + $0x68] sm:$0xf]
  %v3240 = vld [vmem:[%s3 + $0x6c] sm:$0xf]
  %v3241 = vld [vmem:[%s3 + $0x70] sm:$0xf]
  %v3242 = vld [vmem:[%s3 + $0x74] sm:$0xf]
  %v3243 = vld [vmem:[%s3 + $0x78] sm:$0xf]
  %v3244 = vld [vmem:[%s3 + $0x7c] sm:$0xf]
  %v3245 = vld [vmem:[%s3 + $0x80] sm:$0xf]
  %v3246 = vld [vmem:[%s3 + $0x84] sm:$0xf]
  %v3247 = vld [vmem:[%s3 + $0x88] sm:$0xf]
  %v3248 = vld [vmem:[%s3 + $0x8c] sm:$0xf]
  %v3249 = vld [vmem:[%s3 + $0x90] sm:$0xf]
  %v3250 = vld [vmem:[%s3 + $0x94] sm:$0xf]
  %v3251 = vld [vmem:[%s3 + $0x98] sm:$0xf]
  %v3252 = vld [vmem:[%s3 + $0x9c] sm:$0xf]
  %v3253 = vld [vmem:[%s3 + $0xa0] sm:$0xf]
  %v3254 = vld [vmem:[%s3 + $0xa4] sm:$0xf]
  %v3255 = vld [vmem:[%s3 + $0xa8] sm:$0xf]
  %v3256 = vld [vmem:[%s3 + $0xac] sm:$0xf]
  %v3257 = vld [vmem:[%s3 + $0xb0] sm:$0xf]
  %v3258 = vld [vmem:[%s3 + $0xb4] sm:$0xf]
  %v3259 = vld [vmem:[%s3 + $0xb8] sm:$0xf]
  %v3260 = vld [vmem:[%s3 + $0xbc] sm:$0xf]
  %v3261 = vld [vmem:[%s3 + $0xc0] sm:$0xf]
  %v3262 = vld [vmem:[%s3 + $0xc4] sm:$0xf]
  %v3263 = vld [vmem:[%s3 + $0xc8] sm:$0xf]
  %v3264 = vld [vmem:[%s3 + $0xcc] sm:$0xf]
  %v3265 = vld [vmem:[%s3 + $0xd0] sm:$0xf]
  %v3266 = vld [vmem:[%s3 + $0xd4] sm:$0xf]
  %v3267 = vld [vmem:[%s3 + $0xd8] sm:$0xf]
  %v3268 = vld [vmem:[%s3 + $0xdc] sm:$0xf]
  %v3269 = vld [vmem:[%s3 + $0xe0] sm:$0xf]
  %v3270 = vld [vmem:[%s3 + $0xe4] sm:$0xf]
  %v3271 = vld [vmem:[%s3 + $0xe8] sm:$0xf]
  %v3272 = vld [vmem:[%s3 + $0xec] sm:$0xf]
  %v3273 = vld [vmem:[%s3 + $0xf0] sm:$0xf]
  %v3274 = vld [vmem:[%s3 + $0xf4] sm:$0xf]
  %v3275 = vld [vmem:[%s3 + $0xf8] sm:$0xf]
  %v3276 = vld [vmem:[%s3 + $0xfc] sm:$0xf]
  %v3277 = vld [vmem:[%s3 + $0x100] sm:$0xf]
  %v3278 = vld [vmem:[%s3 + $0x104] sm:$0xf]
  %v3279 = vld [vmem:[%s3 + $0x108] sm:$0xf]
  %v3280 = vld [vmem:[%s3 + $0x10c] sm:$0xf]
  %v3281 = vld [vmem:[%s3 + $0x110] sm:$0xf]
  %v3282 = vld [vmem:[%s3 + $0x114] sm:$0xf]
  %v3283 = vld [vmem:[%s3 + $0x118] sm:$0xf]
  %v3284 = vld [vmem:[%s3 + $0x11c] sm:$0xf]
  %v3285 = vld [vmem:[%s3 + $0x120] sm:$0xf]
  %v3286 = vld [vmem:[%s3 + $0x124] sm:$0xf]
  %v3287 = vld [vmem:[%s3 + $0x128] sm:$0xf]
  %v3288 = vld [vmem:[%s3 + $0x12c] sm:$0xf]
  %v3289 = vld [vmem:[%s3 + $0x130] sm:$0xf]
  %v3290 = vld [vmem:[%s3 + $0x134] sm:$0xf]
  %v3291 = vld [vmem:[%s3 + $0x138] sm:$0xf]
  %v3292 = vld [vmem:[%s3 + $0x13c] sm:$0xf]
  %v3293 = vld [vmem:[%s3 + $0x140] sm:$0xf]
  %v3294 = vld [vmem:[%s3 + $0x144] sm:$0xf]
  %v3295 = vld [vmem:[%s3 + $0x148] sm:$0xf]
  %v3296 = vld [vmem:[%s3 + $0x14c] sm:$0xf]
  %v3297 = vld [vmem:[%s3 + $0x150] sm:$0xf]
  %v3298 = vld [vmem:[%s3 + $0x154] sm:$0xf]
  %v3299 = vld [vmem:[%s3 + $0x158] sm:$0xf]
  %v3300 = vld [vmem:[%s3 + $0x15c] sm:$0xf]
  %v3301 = vld [vmem:[%s3 + $0x160] sm:$0xf]
  %v3302 = vld [vmem:[%s3 + $0x164] sm:$0xf]
  %v3303 = vld [vmem:[%s3 + $0x168] sm:$0xf]
  %v3304 = vld [vmem:[%s3 + $0x16c] sm:$0xf]
  %v3305 = vld [vmem:[%s3 + $0x170] sm:$0xf]
  %v3306 = vld [vmem:[%s3 + $0x174] sm:$0xf]
  %v3307 = vld [vmem:[%s3 + $0x178] sm:$0xf]
  %v3308 = vld [vmem:[%s3 + $0x17c] sm:$0xf]
  %v3309 = vld [vmem:[%s3 + $0x180] sm:$0xf]
  %v3310 = vld [vmem:[%s3 + $0x184] sm:$0xf]
  %v3311 = vld [vmem:[%s3 + $0x188] sm:$0xf]
  %v3312 = vld [vmem:[%s3 + $0x18c] sm:$0xf]
  %v3313 = vld [vmem:[%s3 + $0x190] sm:$0xf]
  %v3314 = vld [vmem:[%s3 + $0x194] sm:$0xf]
  %v3315 = vld [vmem:[%s3 + $0x198] sm:$0xf]
  %v3316 = vld [vmem:[%s3 + $0x19c] sm:$0xf]
  %v3317 = vld [vmem:[%s3 + $0x1a0] sm:$0xf]
  %v3318 = vld [vmem:[%s3 + $0x1a4] sm:$0xf]
  %v3319 = vld [vmem:[%s3 + $0x1a8] sm:$0xf]
  %v3320 = vld [vmem:[%s3 + $0x1ac] sm:$0xf]
  %v3321 = vld [vmem:[%s3 + $0x1b0] sm:$0xf]
  %v3322 = vld [vmem:[%s3 + $0x1b4] sm:$0xf]
  %v3323 = vld [vmem:[%s3 + $0x1b8] sm:$0xf]
  %v3324 = vld [vmem:[%s3 + $0x1bc] sm:$0xf]
  %v3325 = vld [vmem:[%s3 + $0x1c0] sm:$0xf]
  %v3326 = vld [vmem:[%s3 + $0x1c4] sm:$0xf]
  %v3327 = vld [vmem:[%s3 + $0x1c8] sm:$0xf]
  %v3328 = vld [vmem:[%s3 + $0x1cc] sm:$0xf]
  %v3329 = vld [vmem:[%s3 + $0x1d0] sm:$0xf]
  %v3330 = vld [vmem:[%s3 + $0x1d4] sm:$0xf]
  %v3331 = vld [vmem:[%s3 + $0x1d8] sm:$0xf]
  %v3332 = vld [vmem:[%s3 + $0x1dc] sm:$0xf]
  %v3333 = vld [vmem:[%s3 + $0x1e0] sm:$0xf]
  %v3334 = vld [vmem:[%s3 + $0x1e4] sm:$0xf]
  %v3335 = vld [vmem:[%s3 + $0x1e8] sm:$0xf]
  %v3336 = vld [vmem:[%s3 + $0x1ec] sm:$0xf]
  %v3337 = vld [vmem:[%s3 + $0x1f0] sm:$0xf]
  %v3338 = vld [vmem:[%s3 + $0x1f4] sm:$0xf]
  %v3339 = vld [vmem:[%s3 + $0x1f8] sm:$0xf]
  %v3340 = vld [vmem:[%s3 + $0x1fc] sm:$0xf]
  %v3469 = vunpack.c.l.b16 %v3213
  %v3470 = vunpack.c.l.b16 %v3214
  %v3471 = vunpack.c.l.b16 %v3215
  %v3472 = vunpack.c.l.b16 %v3216
  %v3473 = vunpack.c.l.b16 %v3217
  %v3474 = vunpack.c.l.b16 %v3218
  %v3475 = vunpack.c.l.b16 %v3219
  %v3476 = vunpack.c.l.b16 %v3220
  %v3477 = vunpack.c.l.b16 %v3221
  %v3478 = vunpack.c.l.b16 %v3222
  %v3479 = vunpack.c.l.b16 %v3223
  %v3480 = vunpack.c.l.b16 %v3224
  %v3481 = vunpack.c.l.b16 %v3225
  %v3482 = vunpack.c.l.b16 %v3226
  %v3483 = vunpack.c.l.b16 %v3227
  %v3484 = vunpack.c.l.b16 %v3228
  %v3485 = vunpack.c.l.b16 %v3229
  %v3486 = vunpack.c.l.b16 %v3230
  %v3487 = vunpack.c.l.b16 %v3231
  %v3488 = vunpack.c.l.b16 %v3232
  %v3489 = vunpack.c.l.b16 %v3233
  %v3490 = vunpack.c.l.b16 %v3234
  %v3491 = vunpack.c.l.b16 %v3235
  %v3492 = vunpack.c.l.b16 %v3236
  %v3493 = vunpack.c.l.b16 %v3237
  %v3494 = vunpack.c.l.b16 %v3238
  %v3495 = vunpack.c.l.b16 %v3239
  %v3496 = vunpack.c.l.b16 %v3240
  %v3497 = vunpack.c.l.b16 %v3241
  %v3498 = vunpack.c.l.b16 %v3242
  %v3499 = vunpack.c.l.b16 %v3243
  %v3500 = vunpack.c.l.b16 %v3244
  %v3501 = vunpack.c.l.b16 %v3245
  %v3502 = vunpack.c.l.b16 %v3246
  %v3503 = vunpack.c.l.b16 %v3247
  %v3504 = vunpack.c.l.b16 %v3248
  %v3505 = vunpack.c.l.b16 %v3249
  %v3506 = vunpack.c.l.b16 %v3250
  %v3507 = vunpack.c.l.b16 %v3251
  %v3508 = vunpack.c.l.b16 %v3252
  %v3509 = vunpack.c.l.b16 %v3253
  %v3510 = vunpack.c.l.b16 %v3254
  %v3511 = vunpack.c.l.b16 %v3255
  %v3512 = vunpack.c.l.b16 %v3256
  %v3513 = vunpack.c.l.b16 %v3257
  %v3514 = vunpack.c.l.b16 %v3258
  %v3515 = vunpack.c.l.b16 %v3259
  %v3516 = vunpack.c.l.b16 %v3260
  %v3517 = vunpack.c.l.b16 %v3261
  %v3518 = vunpack.c.l.b16 %v3262
  %v3519 = vunpack.c.l.b16 %v3263
  %v3520 = vunpack.c.l.b16 %v3264
  %v3521 = vunpack.c.l.b16 %v3265
  %v3522 = vunpack.c.l.b16 %v3266
  %v3523 = vunpack.c.l.b16 %v3267
  %v3524 = vunpack.c.l.b16 %v3268
  %v3525 = vunpack.c.l.b16 %v3269
  %v3526 = vunpack.c.l.b16 %v3270
  %v3527 = vunpack.c.l.b16 %v3271
  %v3528 = vunpack.c.l.b16 %v3272
  %v3529 = vunpack.c.l.b16 %v3273
  %v3530 = vunpack.c.l.b16 %v3274
  %v3531 = vunpack.c.l.b16 %v3275
  %v3532 = vunpack.c.l.b16 %v3276
  %v3533 = vunpack.c.l.b16 %v3277
  %v3534 = vunpack.c.l.b16 %v3278
  %v3535 = vunpack.c.l.b16 %v3279
  %v3536 = vunpack.c.l.b16 %v3280
  %v3537 = vunpack.c.l.b16 %v3281
  %v3538 = vunpack.c.l.b16 %v3282
  %v3539 = vunpack.c.l.b16 %v3283
  %v3540 = vunpack.c.l.b16 %v3284
  %v3541 = vunpack.c.l.b16 %v3285
  %v3542 = vunpack.c.l.b16 %v3286
  %v3543 = vunpack.c.l.b16 %v3287
  %v3544 = vunpack.c.l.b16 %v3288
  %v3545 = vunpack.c.l.b16 %v3289
  %v3546 = vunpack.c.l.b16 %v3290
  %v3547 = vunpack.c.l.b16 %v3291
  %v3548 = vunpack.c.l.b16 %v3292
  %v3549 = vunpack.c.l.b16 %v3293
  %v3550 = vunpack.c.l.b16 %v3294
  %v3551 = vunpack.c.l.b16 %v3295
  %v3552 = vunpack.c.l.b16 %v3296
  %v3553 = vunpack.c.l.b16 %v3297
  %v3554 = vunpack.c.l.b16 %v3298
  %v3555 = vunpack.c.l.b16 %v3299
  %v3556 = vunpack.c.l.b16 %v3300
  %v3557 = vunpack.c.l.b16 %v3301
  %v3558 = vunpack.c.l.b16 %v3302
  %v3559 = vunpack.c.l.b16 %v3303
  %v3560 = vunpack.c.l.b16 %v3304
  %v3561 = vunpack.c.l.b16 %v3305
  %v3562 = vunpack.c.l.b16 %v3306
  %v3563 = vunpack.c.l.b16 %v3307
  %v3564 = vunpack.c.l.b16 %v3308
  %v3565 = vunpack.c.l.b16 %v3309
  %v3566 = vunpack.c.l.b16 %v3310
  %v3567 = vunpack.c.l.b16 %v3311
  %v3568 = vunpack.c.l.b16 %v3312
  %v3569 = vunpack.c.l.b16 %v3313
  %v3570 = vunpack.c.l.b16 %v3314
  %v3571 = vunpack.c.l.b16 %v3315
  %v3572 = vunpack.c.l.b16 %v3316
  %v3573 = vunpack.c.l.b16 %v3317
  %v3574 = vunpack.c.l.b16 %v3318
  %v3575 = vunpack.c.l.b16 %v3319
  %v3576 = vunpack.c.l.b16 %v3320
  %v3577 = vunpack.c.l.b16 %v3321
  %v3578 = vunpack.c.l.b16 %v3322
  %v3579 = vunpack.c.l.b16 %v3323
  %v3580 = vunpack.c.l.b16 %v3324
  %v3581 = vunpack.c.l.b16 %v3325
  %v3582 = vunpack.c.l.b16 %v3326
  %v3583 = vunpack.c.l.b16 %v3327
  %v3584 = vunpack.c.l.b16 %v3328
  %v3585 = vunpack.c.l.b16 %v3329
  %v3586 = vunpack.c.l.b16 %v3330
  %v3587 = vunpack.c.l.b16 %v3331
  %v3588 = vunpack.c.l.b16 %v3332
  %v3589 = vunpack.c.l.b16 %v3333
  %v3590 = vunpack.c.l.b16 %v3334
  %v3591 = vunpack.c.l.b16 %v3335
  %v3592 = vunpack.c.l.b16 %v3336
  %v3593 = vunpack.c.l.b16 %v3337
  %v3594 = vunpack.c.l.b16 %v3338
  %v3595 = vunpack.c.l.b16 %v3339
  %v3596 = vunpack.c.l.b16 %v3340
  %v3597 = vpack.c.b16 %v3470, %v3469
  %v3598 = vpack.c.b16 %v3472, %v3471
  %v3599 = vpack.c.b16 %v3474, %v3473
  %v3600 = vpack.c.b16 %v3476, %v3475
  %v3601 = vpack.c.b16 %v3478, %v3477
  %v3602 = vpack.c.b16 %v3480, %v3479
  %v3603 = vpack.c.b16 %v3482, %v3481
  %v3604 = vpack.c.b16 %v3484, %v3483
  %v3605 = vpack.c.b16 %v3486, %v3485
  %v3606 = vpack.c.b16 %v3488, %v3487
  %v3607 = vpack.c.b16 %v3490, %v3489
  %v3608 = vpack.c.b16 %v3492, %v3491
  %v3609 = vpack.c.b16 %v3494, %v3493
  %v3610 = vpack.c.b16 %v3496, %v3495
  %v3611 = vpack.c.b16 %v3498, %v3497
  %v3612 = vpack.c.b16 %v3500, %v3499
  %v3613 = vpack.c.b16 %v3502, %v3501
  %v3614 = vpack.c.b16 %v3504, %v3503
  %v3615 = vpack.c.b16 %v3506, %v3505
  %v3616 = vpack.c.b16 %v3508, %v3507
  %v3617 = vpack.c.b16 %v3510, %v3509
  %v3618 = vpack.c.b16 %v3512, %v3511
  %v3619 = vpack.c.b16 %v3514, %v3513
  %v3620 = vpack.c.b16 %v3516, %v3515
  %v3621 = vpack.c.b16 %v3518, %v3517
  %v3622 = vpack.c.b16 %v3520, %v3519
  %v3623 = vpack.c.b16 %v3522, %v3521
  %v3624 = vpack.c.b16 %v3524, %v3523
  %v3625 = vpack.c.b16 %v3526, %v3525
  %v3626 = vpack.c.b16 %v3528, %v3527
  %v3627 = vpack.c.b16 %v3530, %v3529
  %v3628 = vpack.c.b16 %v3532, %v3531
  %v3629 = vpack.c.b16 %v3534, %v3533
  %v3630 = vpack.c.b16 %v3536, %v3535
  %v3631 = vpack.c.b16 %v3538, %v3537
  %v3632 = vpack.c.b16 %v3540, %v3539
  %v3633 = vpack.c.b16 %v3542, %v3541
  %v3634 = vpack.c.b16 %v3544, %v3543
  %v3635 = vpack.c.b16 %v3546, %v3545
  %v3636 = vpack.c.b16 %v3548, %v3547
  %v3637 = vpack.c.b16 %v3550, %v3549
  %v3638 = vpack.c.b16 %v3552, %v3551
  %v3639 = vpack.c.b16 %v3554, %v3553
  %v3640 = vpack.c.b16 %v3556, %v3555
  %v3641 = vpack.c.b16 %v3558, %v3557
  %v3642 = vpack.c.b16 %v3560, %v3559
  %v3643 = vpack.c.b16 %v3562, %v3561
  %v3644 = vpack.c.b16 %v3564, %v3563
  %v3645 = vpack.c.b16 %v3566, %v3565
  %v3646 = vpack.c.b16 %v3568, %v3567
  %v3647 = vpack.c.b16 %v3570, %v3569
  %v3648 = vpack.c.b16 %v3572, %v3571
  %v3649 = vpack.c.b16 %v3574, %v3573
  %v3650 = vpack.c.b16 %v3576, %v3575
  %v3651 = vpack.c.b16 %v3578, %v3577
  %v3652 = vpack.c.b16 %v3580, %v3579
  %v3653 = vpack.c.b16 %v3582, %v3581
  %v3654 = vpack.c.b16 %v3584, %v3583
  %v3655 = vpack.c.b16 %v3586, %v3585
  %v3656 = vpack.c.b16 %v3588, %v3587
  %v3657 = vpack.c.b16 %v3590, %v3589
  %v3658 = vpack.c.b16 %v3592, %v3591
  %v3659 = vpack.c.b16 %v3594, %v3593
  %v3660 = vpack.c.b16 %v3596, %v3595
  %3725 = vmatprep.subr.bf16.mxu0 0
  %3726 = vmatpush1.bf16.msra.mxu0 %v3597
  %3727 = vmatprep.subr.bf16.mxu0 0
  %3728 = vmatpush1.bf16.msra.mxu0 %v3598
  %3729 = vmatprep.subr.bf16.mxu0 0
  %3730 = vmatpush1.bf16.msra.mxu0 %v3599
  %3731 = vmatprep.subr.bf16.mxu0 0
  %3732 = vmatpush1.bf16.msra.mxu0 %v3600
  %3733 = vmatprep.subr.bf16.mxu0 0
  %3734 = vmatpush1.bf16.msra.mxu0 %v3601
  %3735 = vmatprep.subr.bf16.mxu0 0
  %3736 = vmatpush1.bf16.msra.mxu0 %v3602
  %3737 = vmatprep.subr.bf16.mxu0 0
  %3738 = vmatpush1.bf16.msra.mxu0 %v3603
  %3739 = vmatprep.subr.bf16.mxu0 0
  %3740 = vmatpush1.bf16.msra.mxu0 %v3604
  %3741 = vmatprep.subr.bf16.mxu0 0
  %3742 = vmatpush1.bf16.msra.mxu0 %v3605
  %3743 = vmatprep.subr.bf16.mxu0 0
  %3744 = vmatpush1.bf16.msra.mxu0 %v3606
  %3745 = vmatprep.subr.bf16.mxu0 0
  %3746 = vmatpush1.bf16.msra.mxu0 %v3607
  %3747 = vmatprep.subr.bf16.mxu0 0
  %3748 = vmatpush1.bf16.msra.mxu0 %v3608
  %3749 = vmatprep.subr.bf16.mxu0 0
  %3750 = vmatpush1.bf16.msra.mxu0 %v3609
  %3751 = vmatprep.subr.bf16.mxu0 0
  %3752 = vmatpush1.bf16.msra.mxu0 %v3610
  %3753 = vmatprep.subr.bf16.mxu0 0
  %3754 = vmatpush1.bf16.msra.mxu0 %v3611
  %3755 = vmatprep.subr.bf16.mxu0 0
  %3756 = vmatpush1.bf16.msra.mxu0 %v3612
  %3757 = vmatprep.mubr.bf16.mxu0 %v3190
  %3758 = vmatmul.mubr.bf16.gmra.mrb[0].mxu0 %v3189
  %v3759 = vpop.f32.mrb[0].mxu0
  %v3760 = vadd.f32 0.0, %v3759
  %v3761 = vpop.f32.mrb[0].mxu0
  %v3762 = vpop.f32.mrb[0].mxu0
  %v3763 = vadd.f32 0.0, %v3762
  %v3764 = vpop.f32.mrb[0].mxu0
  %3765 = vmatprep.mubr.bf16.mxu0 %v3198
  %3766 = vmatmul.mubr.bf16.gmra.mrb[0].mxu0 %v3197
  %v3767 = vpop.f32.mrb[0].mxu0
  %v3768 = vadd.f32 0.0, %v3767
  %v3769 = vpop.f32.mrb[0].mxu0
  %v3770 = vpop.f32.mrb[0].mxu0
  %v3771 = vadd.f32 0.0, %v3770
  %v3772 = vpop.f32.mrb[0].mxu0
  %3773 = vmatprep.mubr.bf16.mxu0 %v3206
  %3774 = vmatmul.mubr.bf16.gmra.mrb[0].mxu0 %v3205
  %v3775 = vpop.f32.mrb[0].mxu0
  %v3776 = vadd.f32 0.0, %v3775
  %v3777 = vpop.f32.mrb[0].mxu0
  %v3778 = vpop.f32.mrb[0].mxu0
  %v3779 = vpop.f32.mrb[0].mxu0
  %3780 = vdwg.mxu0
  %3781 = vmatprep.subr.bf16.mxu0 0
  %3782 = vmatpush1.bf16.msra.mxu0 %v3613
  %3783 = vmatprep.subr.bf16.mxu0 0
  %3784 = vmatpush1.bf16.msra.mxu0 %v3614
  %3785 = vmatprep.subr.bf16.mxu0 0
  %3786 = vmatpush1.bf16.msra.mxu0 %v3615
  %3787 = vmatprep.subr.bf16.mxu0 0
  %3788 = vmatpush1.bf16.msra.mxu0 %v3616
  %3789 = vmatprep.subr.bf16.mxu0 0
  %3790 = vmatpush1.bf16.msra.mxu0 %v3617
  %3791 = vmatprep.subr.bf16.mxu0 0
  %3792 = vmatpush1.bf16.msra.mxu0 %v3618
  %3793 = vmatprep.subr.bf16.mxu0 0
  %3794 = vmatpush1.bf16.msra.mxu0 %v3619
  %3795 = vmatprep.subr.bf16.mxu0 0
  %3796 = vmatpush1.bf16.msra.mxu0 %v3620
  %3797 = vmatprep.subr.bf16.mxu0 0
  %3798 = vmatpush1.bf16.msra.mxu0 %v3621
  %3799 = vmatprep.subr.bf16.mxu0 0
  %3800 = vmatpush1.bf16.msra.mxu0 %v3622
  %3801 = vmatprep.subr.bf16.mxu0 0
  %3802 = vmatpush1.bf16.msra.mxu0 %v3623
  %3803 = vmatprep.subr.bf16.mxu0 0
  %3804 = vmatpush1.bf16.msra.mxu0 %v3624
  %3805 = vmatprep.subr.bf16.mxu0 0
  %3806 = vmatpush1.bf16.msra.mxu0 %v3625
  %3807 = vmatprep.subr.bf16.mxu0 0
  %3808 = vmatpush1.bf16.msra.mxu0 %v3626
  %3809 = vmatprep.subr.bf16.mxu0 0
  %3810 = vmatpush1.bf16.msra.mxu0 %v3627
  %3811 = vmatprep.subr.bf16.mxu0 0
  %3812 = vmatpush1.bf16.msra.mxu0 %v3628
  %3813 = vmatprep.mubr.bf16.mxu0 %v3192
  %3814 = vmatmul.mubr.bf16.gmra.mrb[0].mxu0 %v3191
  %v3815 = vpop.f32.mrb[0].mxu0
  %v3816 = vadd.f32 %v3760, %v3815
  %v3817 = vpop.f32.mrb[0].mxu0
  %v3818 = vpop.f32.mrb[0].mxu0
  %v3819 = vadd.f32 %v3763, %v3818
  %v3820 = vpop.f32.mrb[0].mxu0
  %3821 = vmatprep.mubr.bf16.mxu0 %v3200
  %3822 = vmatmul.mubr.bf16.gmra.mrb[0].mxu0 %v3199
  %v3823 = vpop.f32.mrb[0].mxu0
  %v3824 = vadd.f32 %v3768, %v3823
  %v3825 = vpop.f32.mrb[0].mxu0
  %v3826 = vpop.f32.mrb[0].mxu0
  %v3827 = vadd.f32 %v3771, %v3826
  %v3828 = vpop.f32.mrb[0].mxu0
  %3829 = vmatprep.mubr.bf16.mxu0 %v3208
  %3830 = vmatmul.mubr.bf16.gmra.mrb[0].mxu0 %v3207
  %v3831 = vpop.f32.mrb[0].mxu0
  %v3832 = vadd.f32 %v3776, %v3831
  %v3833 = vpop.f32.mrb[0].mxu0
  %v3834 = vpop.f32.mrb[0].mxu0
  %v3835 = vpop.f32.mrb[0].mxu0
  %3836 = vdwg.mxu0
  %3837 = vmatprep.subr.bf16.mxu0 0
  %3838 = vmatpush1.bf16.msra.mxu0 %v3629
  %3839 = vmatprep.subr.bf16.mxu0 0
  %3840 = vmatpush1.bf16.msra.mxu0 %v3630
  %3841 = vmatprep.subr.bf16.mxu0 0
  %3842 = vmatpush1.bf16.msra.mxu0 %v3631
  %3843 = vmatprep.subr.bf16.mxu0 0
  %3844 = vmatpush1.bf16.msra.mxu0 %v3632
  %3845 = vmatprep.subr.bf16.mxu0 0
  %3846 = vmatpush1.bf16.msra.mxu0 %v3633
  %3847 = vmatprep.subr.bf16.mxu0 0
  %3848 = vmatpush1.bf16.msra.mxu0 %v3634
  %3849 = vmatprep.subr.bf16.mxu0 0
  %3850 = vmatpush1.bf16.msra.mxu0 %v3635
  %3851 = vmatprep.subr.bf16.mxu0 0
  %3852 = vmatpush1.bf16.msra.mxu0 %v3636
  %3853 = vmatprep.subr.bf16.mxu0 0
  %3854 = vmatpush1.bf16.msra.mxu0 %v3637
  %3855 = vmatprep.subr.bf16.mxu0 0
  %3856 = vmatpush1.bf16.msra.mxu0 %v3638
  %3857 = vmatprep.subr.bf16.mxu0 0
  %3858 = vmatpush1.bf16.msra.mxu0 %v3639
  %3859 = vmatprep.subr.bf16.mxu0 0
  %3860 = vmatpush1.bf16.msra.mxu0 %v3640
  %3861 = vmatprep.subr.bf16.mxu0 0
  %3862 = vmatpush1.bf16.msra.mxu0 %v3641
  %3863 = vmatprep.subr.bf16.mxu0 0
  %3864 = vmatpush1.bf16.msra.mxu0 %v3642
  %3865 = vmatprep.subr.bf16.mxu0 0
  %3866 = vmatpush1.bf16.msra.mxu0 %v3643
  %3867 = vmatprep.subr.bf16.mxu0 0
  %3868 = vmatpush1.bf16.msra.mxu0 %v3644
  %3869 = vmatprep.mubr.bf16.mxu0 %v3194
  %3870 = vmatmul.mubr.bf16.gmra.mrb[0].mxu0 %v3193
  %v3871 = vpop.f32.mrb[0].mxu0
  %v3872 = vadd.f32 %v3816, %v3871
  %v3873 = vpop.f32.mrb[0].mxu0
  %v3874 = vpop.f32.mrb[0].mxu0
  %v3875 = vadd.f32 %v3819, %v3874
  %v3876 = vpop.f32.mrb[0].mxu0
  %3877 = vmatprep.mubr.bf16.mxu0 %v3202
  %3878 = vmatmul.mubr.bf16.gmra.mrb[0].mxu0 %v3201
  %v3879 = vpop.f32.mrb[0].mxu0
  %v3880 = vadd.f32 %v3824, %v3879
  %v3881 = vpop.f32.mrb[0].mxu0
  %v3882 = vpop.f32.mrb[0].mxu0
  %v3883 = vadd.f32 %v3827, %v3882
  %v3884 = vpop.f32.mrb[0].mxu0
  %3885 = vmatprep.mubr.bf16.mxu0 %v3210
  %3886 = vmatmul.mubr.bf16.gmra.mrb[0].mxu0 %v3209
  %v3887 = vpop.f32.mrb[0].mxu0
  %v3888 = vadd.f32 %v3832, %v3887
  %v3889 = vpop.f32.mrb[0].mxu0
  %v3890 = vpop.f32.mrb[0].mxu0
  %v3891 = vpop.f32.mrb[0].mxu0
  %3892 = vdwg.mxu0
  %3893 = vmatprep.subr.bf16.mxu0 0
  %3894 = vmatpush1.bf16.msra.mxu0 %v3645
  %3895 = vmatprep.subr.bf16.mxu0 0
  %3896 = vmatpush1.bf16.msra.mxu0 %v3646
  %3897 = vmatprep.subr.bf16.mxu0 0
  %3898 = vmatpush1.bf16.msra.mxu0 %v3647
  %3899 = vmatprep.subr.bf16.mxu0 0
  %3900 = vmatpush1.bf16.msra.mxu0 %v3648
  %3901 = vmatprep.subr.bf16.mxu0 0
  %3902 = vmatpush1.bf16.msra.mxu0 %v3649
  %3903 = vmatprep.subr.bf16.mxu0 0
  %3904 = vmatpush1.bf16.msra.mxu0 %v3650
  %3905 = vmatprep.subr.bf16.mxu0 0
  %3906 = vmatpush1.bf16.msra.mxu0 %v3651
  %3907 = vmatprep.subr.bf16.mxu0 0
  %3908 = vmatpush1.bf16.msra.mxu0 %v3652
  %3909 = vmatprep.subr.bf16.mxu0 0
  %3910 = vmatpush1.bf16.msra.mxu0 %v3653
  %3911 = vmatprep.subr.bf16.mxu0 0
  %3912 = vmatpush1.bf16.msra.mxu0 %v3654
  %3913 = vmatprep.subr.bf16.mxu0 0
  %3914 = vmatpush1.bf16.msra.mxu0 %v3655
  %3915 = vmatprep.subr.bf16.mxu0 0
  %3916 = vmatpush1.bf16.msra.mxu0 %v3656
  %3917 = vmatprep.subr.bf16.mxu0 0
  %3918 = vmatpush1.bf16.msra.mxu0 %v3657
  %3919 = vmatprep.subr.bf16.mxu0 0
  %3920 = vmatpush1.bf16.msra.mxu0 %v3658
  %3921 = vmatprep.subr.bf16.mxu0 0
  %3922 = vmatpush1.bf16.msra.mxu0 %v3659
  %3923 = vmatprep.subr.bf16.mxu0 0
  %3924 = vmatpush1.bf16.msra.mxu0 %v3660
  %3925 = vmatprep.mubr.bf16.mxu0 %v3196
  %3926 = vmatmul.mubr.bf16.gmra.mrb[0].mxu0 %v3195
  %v3927 = vpop.f32.mrb[0].mxu0
  %v3928 = vadd.f32 %v3872, %v3927
  %v3929 = vpop.f32.mrb[0].mxu0
  %v3930 = vpop.f32.mrb[0].mxu0
  %v3931 = vadd.f32 %v3875, %v3930
  %v3932 = vpop.f32.mrb[0].mxu0
  %3933 = vmatprep.mubr.bf16.mxu0 %v3204
  %3934 = vmatmul.mubr.bf16.gmra.mrb[0].mxu0 %v3203
  %v3935 = vpop.f32.mrb[0].mxu0
  %v3936 = vadd.f32 %v3880, %v3935
  %v3937 = vpop.f32.mrb[0].mxu0
  %v3938 = vpop.f32.mrb[0].mxu0
  %v3939 = vadd.f32 %v3883, %v3938
  %v3940 = vpop.f32.mrb[0].mxu0
  %3941 = vmatprep.mubr.bf16.mxu0 %v3212
  %3942 = vmatmul.mubr.bf16.gmra.mrb[0].mxu0 %v3211
  %v3943 = vpop.f32.mrb[0].mxu0
  %v3944 = vadd.f32 %v3888, %v3943
  %v3945 = vpop.f32.mrb[0].mxu0
  %v3946 = vpop.f32.mrb[0].mxu0
  %v3947 = vpop.f32.mrb[0].mxu0
  %3948 = vdwg.mxu0
  %v3949 = vstv %s22
  %v3950 = vadd.f32 %v3928, %v3949
  %3952 = vrot.lane.b32.xlu0 %v3931, 127
  %v3953 = vpop.permute.xlu0 %3952
  %v3955 = vadd.f32 %v3950, %v3953
  %v3956 = vmax.f32 %v3955, 0.0
  %v3957 = vadd.f32 %v3931, %v3949
  %3959 = vrot.lane.b32.xlu0 %v3928, 1
  %v3960 = vpop.permute.xlu0 %3959
  %v3962 = vadd.f32 %v3957, %v3960
  %3964 = vrot.lane.b32.xlu0 %v3936, 127
  %v3965 = vpop.permute.xlu0 %3964
  %v3967 = vadd.f32 %v3962, %v3965
  %v3968 = vmax.f32 %v3967, 0.0
  %v3969 = vadd.f32 %v3936, %v3949
  %3970 = vrot.lane.b32.xlu0 %v3931, 1
  %v3971 = vpop.permute.xlu0 %3970
  %v3973 = vadd.f32 %v3969, %v3971
  %3975 = vrot.lane.b32.xlu0 %v3939, 127
  %v3976 = vpop.permute.xlu0 %3975
  %v3978 = vadd.f32 %v3973, %v3976
  %v3979 = vmax.f32 %v3978, 0.0
  %v3980 = vadd.f32 %v3939, %v3949
  %3981 = vrot.lane.b32.xlu0 %v3936, 1
  %v3982 = vpop.permute.xlu0 %3981
  %v3984 = vadd.f32 %v3980, %v3982
  %3986 = vrot.lane.b32.xlu0 %v3944, 127
  %v3987 = vpop.permute.xlu0 %3986
  %v3989 = vadd.f32 %v3984, %v3987
  %v3990 = vmax.f32 %v3989, 0.0
  %v3991 = vadd.f32 %v3944, %v3949
  %3992 = vrot.lane.b32.xlu0 %v3939, 1
  %v3993 = vpop.permute.xlu0 %3992
  %v3995 = vadd.f32 %v3991, %v3993
  %v3996 = vmax.f32 %v3995, 0.0
  %v3997 = vmax.f32 %v3956, %v3968
  %v3998 = vmax.f32 %v3997, %v3979
  %v3999 = vmax.f32 %v3998, %v3990
  %v4000 = vmax.f32 %v3999, %v3996
  %v4001 = vsub.f32 %v3956, %v4000
  %v4002 = vmul.f32 %v4001, 1.442695
  %v4003 = vpow.pop %v4002
  %v4004 = vsub.f32 %v3968, %v4000
  %v4005 = vmul.f32 %v4004, 1.442695
  %v4006 = vpow.pop %v4005
  %v4007 = vsub.f32 %v3979, %v4000
  %v4008 = vmul.f32 %v4007, 1.442695
  %v4009 = vpow.pop %v4008
  %v4010 = vsub.f32 %v3990, %v4000
  %v4011 = vmul.f32 %v4010, 1.442695
  %v4012 = vpow.pop %v4011
  %v4013 = vsub.f32 %v3996, %v4000
  %v4014 = vmul.f32 %v4013, 1.442695
  %v4015 = vpow.pop %v4014
  %v4016 = vadd.f32 %v4003, %v4006
  %v4017 = vadd.f32 %v4016, %v4009
  %v4018 = vadd.f32 %v4017, %v4012
  %v4019 = vadd.f32 %v4018, %v4015
  %v4020 = vrcp.pop %v4019
  %v4021 = vmul.f32 %v4003, %v4020
  %v4022 = vmul.f32 %v4021, 0.16666667
  %v4023 = vld [vmem:[%s0] sm:$0xff]
  %v4024 = vld [vmem:[%s0 + $0x8] sm:$0xff]
  %v4025 = vadd.f32 %v4023, %v4024
  %v4026 = vld [vmem:[%s0 + $0x10] sm:$0xff]
  %v4027 = vadd.f32 %v4025, %v4026
  %v4028 = vld [vmem:[%s0 + $0x18] sm:$0xff]
  %v4029 = vadd.f32 %v4027, %v4028
  %v4030 = vld [vmem:[%s0 + $0x20] sm:$0xff]
  %v4031 = vadd.f32 %v4029, %v4030
  %v4032 = vld [vmem:[%s0 + $0x28] sm:$0xff]
  %v4033 = vadd.f32 %v4031, %v4032
  %4035 = vset.pattern.permute.xlu0 1
  %4036 = vperm.xlu0 %4035, %v4022
  %v4037 = vpop.permute.xlu0 %4036
  %v4039 = vmul.f32 %v4037, %v4033
  %v4040 = vmul.f32 %v4006, %v4020
  %v4041 = vmul.f32 %v4040, 0.16666667
  %s4042 = scalar_lea.vmem %s0, 48
  %v4043 = vld [vmem:[%s4042] sm:$0xff]
  %v4044 = vld [vmem:[%s4042 + $0x8] sm:$0xff]
  %v4045 = vadd.f32 %v4043, %v4044
  %v4046 = vld [vmem:[%s4042 + $0x10] sm:$0xff]
  %v4047 = vadd.f32 %v4045, %v4046
  %v4048 = vld [vmem:[%s4042 + $0x18] sm:$0xff]
  %v4049 = vadd.f32 %v4047, %v4048
  %v4050 = vld [vmem:[%s4042 + $0x20] sm:$0xff]
  %v4051 = vadd.f32 %v4049, %v4050
  %v4052 = vld [vmem:[%s4042 + $0x28] sm:$0xff]
  %v4053 = vadd.f32 %v4051, %v4052
  %4055 = vset.pattern.permute.xlu0 1
  %4056 = vperm.xlu0 %4055, %v4041
  %v4057 = vpop.permute.xlu0 %4056
  %v4059 = vmul.f32 %v4057, %v4053
  %v4060 = vadd.f32 %v4039, %v4059
  %v4061 = vmul.f32 %v4009, %v4020
  %v4062 = vmul.f32 %v4061, 0.16666667
  %s4063 = scalar_lea.vmem %s0, 96
  %v4064 = vld [vmem:[%s4063] sm:$0xff]
  %v4065 = vld [vmem:[%s4063 + $0x8] sm:$0xff]
  %v4066 = vadd.f32 %v4064, %v4065
  %v4067 = vld [vmem:[%s4063 + $0x10] sm:$0xff]
  %v4068 = vadd.f32 %v4066, %v4067
  %v4069 = vld [vmem:[%s4063 + $0x18] sm:$0xff]
  %v4070 = vadd.f32 %v4068, %v4069
  %v4071 = vld [vmem:[%s4063 + $0x20] sm:$0xff]
  %v4072 = vadd.f32 %v4070, %v4071
  %v4073 = vld [vmem:[%s4063 + $0x28] sm:$0xff]
  %v4074 = vadd.f32 %v4072, %v4073
  %4076 = vset.pattern.permute.xlu0 1
  %4077 = vperm.xlu0 %4076, %v4062
  %v4078 = vpop.permute.xlu0 %4077
  %v4080 = vmul.f32 %v4078, %v4074
  %v4081 = vadd.f32 %v4060, %v4080
  %v4082 = vmul.f32 %v4012, %v4020
  %v4083 = vmul.f32 %v4082, 0.16666667
  %s4084 = scalar_lea.vmem %s0, 144
  %v4085 = vld [vmem:[%s4084] sm:$0xff]
  %v4086 = vld [vmem:[%s4084 + $0x8] sm:$0xff]
  %v4087 = vadd.f32 %v4085, %v4086
  %v4088 = vld [vmem:[%s4084 + $0x10] sm:$0xff]
  %v4089 = vadd.f32 %v4087, %v4088
  %v4090 = vld [vmem:[%s4084 + $0x18] sm:$0xff]
  %v4091 = vadd.f32 %v4089, %v4090
  %v4092 = vld [vmem:[%s4084 + $0x20] sm:$0xff]
  %v4093 = vadd.f32 %v4091, %v4092
  %v4094 = vld [vmem:[%s4084 + $0x28] sm:$0xff]
  %v4095 = vadd.f32 %v4093, %v4094
  %4097 = vset.pattern.permute.xlu0 1
  %4098 = vperm.xlu0 %4097, %v4083
  %v4099 = vpop.permute.xlu0 %4098
  %v4101 = vmul.f32 %v4099, %v4095
  %v4102 = vadd.f32 %v4081, %v4101
  %v4103 = vmul.f32 %v4015, %v4020
  %v4104 = vmul.f32 %v4103, 0.16666667
  %s4105 = scalar_lea.vmem %s0, 192
  %v4106 = vld [vmem:[%s4105] sm:$0xff]
  %v4107 = vld [vmem:[%s4105 + $0x8] sm:$0xff]
  %v4108 = vadd.f32 %v4106, %v4107
  %v4109 = vld [vmem:[%s4105 + $0x10] sm:$0xff]
  %v4110 = vadd.f32 %v4108, %v4109
  %v4111 = vld [vmem:[%s4105 + $0x18] sm:$0xff]
  %v4112 = vadd.f32 %v4110, %v4111
  %v4113 = vld [vmem:[%s4105 + $0x20] sm:$0xff]
  %v4114 = vadd.f32 %v4112, %v4113
  %v4115 = vld [vmem:[%s4105 + $0x28] sm:$0xff]
  %v4116 = vadd.f32 %v4114, %v4115
  %4118 = vset.pattern.permute.xlu0 1
  %4119 = vperm.xlu0 %4118, %v4104
  %v4120 = vpop.permute.xlu0 %4119
  %v4122 = vmul.f32 %v4120, %v4116
  %v4123 = vadd.f32 %v4102, %v4122
  %4124 = vst [vmem:[%s5] sm:$0xff] %v4123
  // Predicated region
  $region22: #{temporal_attention.1} parent=0 // pred_check
    _
  $region23: #{temporal_attention.1} parent=0 // pred_check_branch
    %4126 = sbr.rel (0) target = $region25
  $region24: #{temporal_attention.1} parent=0 // pred_region
    _
  $region25: #{temporal_attention.1} parent=0 // pred_fallthru
    _
  // Predicated region
  $region26: #{temporal_attention.1} parent=0 // pred_check
    _
  $region27: #{temporal_attention.1} parent=0 // pred_check_branch
    %4128 = sbr.rel (0) target = $region29
  $region28: #{temporal_attention.1} parent=0 // pred_region
    _
  $region29: #{temporal_attention.1} parent=0 // pred_fallthru
    _

</llo_original>
